<compile_context>
chip_gen: v5e
topology: v5e:2x2
jax: 0.10.0
libtpu: 0.0.40
codegen_flags: <defaults>
</compile_context>

<pallas_src>
import numpy as np
import jax
import jax.numpy as jnp
from jax.experimental import pallas as pl
from jax.experimental.pallas import tpu as pltpu


# --------------------------- network geometry ------------------------------
K = 5                                   # conv kernel size (5x5), both layers
H1 = W1 = 28                            # conv1 input spatial
HO1 = WO1 = H1 - K + 1                  # 24
H2 = W2 = HO1 // 2                      # 12 (after pool1)
HO2 = WO2 = H2 - K + 1                  # 8
# Flattened-spatial lengths: every tap slice x[:, off : off+Ho*W] with
# off <= (K-1)*W + (K-1) must stay in bounds -> pad the lane axis.
LIN1 = HO1 * W1 + (K - 1) * W1 + (K - 1)   # 788 (raw image is 784 -> pad 4)
LIN2 = HO2 * W2 + (K - 1) * W2 + (K - 1)   # 148 (real pooled data is 144)
LOUT2 = (HO2 // 2) * (WO2 // 2)            # 16  (4*4, feeds fc1's 16*16=256)


# ------------------------ fused conv+relu+pool kernel -----------------------

def conv_relu_pool(x, w_taps, b, sel, *, H, W, kh, kw):
    """Fused valid conv (stride 1) + bias + ReLU + 2x2/stride-2 max-pool.

    x:      (N, Cin, Lin)  activations, spatial flattened row-major with width W,
                           Lin >= Ho*W + (kh-1)*W + (kw-1) (pad values are ignored).
    w_taps: (kh*kw, Cout, Cin)  tap-major conv weights (w_taps[dy*kw+dx, co, ci]).
    b:      (Cout, 1)
    sel:    (4, Ho*W, Lout) one-hot pooling selection matrices (zero-padded cols).
    returns (N, Cout, Lout) pooled output, columns [Hp*Wp, Lout) are zero padding.
    """
    N, Cin, Lin = x.shape
    T, Cout, _ = w_taps.shape
    Ho, Wo = H - kh + 1, W - kw + 1
    Mp = Ho * W                           # conv output incl. row-wrap garbage cols
    Lout = sel.shape[2]
    assert Lin >= Mp + (kh - 1) * W + (kw - 1)

    def kernel(x_ref, w_ref, b_ref, s_ref, o_ref):
        xf = x_ref[0]                                        # (Cin, Lin)
        acc = None
        for t in range(T):                                   # 25 taps, static unroll
            dy, dx = divmod(t, kw)
            off = dy * W + dx
            xs = xf[:, off:off + Mp]                         # (Cin, Mp) contiguous lane slice
            if Cin == 1:
                term = w_ref[t] * xs                         # (Cout,1)*(1,Mp) broadcast (VPU)
            else:
                term = jnp.dot(w_ref[t], xs,                 # (Cout,Cin)@(Cin,Mp) on MXU
                               preferred_element_type=jnp.float32)
            acc = term if acc is None else acc + term
        acc = acc + b_ref[...]                               # bias, (Cout, Mp)
        # 2x2 max-pool: gather the 4 window taps via one-hot selection matmuls.
        pooled = jnp.dot(acc, s_ref[0], preferred_element_type=jnp.float32)
        for k in range(1, 4):
            pooled = jnp.maximum(
                pooled, jnp.dot(acc, s_ref[k], preferred_element_type=jnp.float32))
        o_ref[0] = jnp.maximum(pooled, 0.0)                  # ReLU (commutes with max-pool)

    return pl.pallas_call(
        kernel,
        out_shape=jax.ShapeDtypeStruct((N, Cout, Lout), jnp.float32),
        grid=(N,),
        in_specs=[
            pl.BlockSpec((1, Cin, Lin), lambda n: (n, 0, 0)),
            pl.BlockSpec((T, Cout, Cin), lambda n: (0, 0, 0)),
            pl.BlockSpec((Cout, 1), lambda n: (0, 0)),
            pl.BlockSpec((4, Mp, Lout), lambda n: (0, 0, 0)),
        ],
        out_specs=pl.BlockSpec((1, Cout, Lout), lambda n: (n, 0, 0)),
        compiler_params=pltpu.CompilerParams(dimension_semantics=("parallel",)),
    )(x, w_taps, b, sel)


# --------------------------- fused fc1->fc2->fc3 ----------------------------

def _fc_fused_kernel(a_ref, w1_ref, b1_ref, w2_ref, b2_ref, w3_ref, b3_ref, o_ref):
    h = jnp.dot(a_ref[...], w1_ref[...], preferred_element_type=jnp.float32) + b1_ref[...]
    h = jnp.maximum(h, 0.0)                                  # relu3
    h = jnp.dot(h, w2_ref[...], preferred_element_type=jnp.float32) + b2_ref[...]
    h = jnp.maximum(h, 0.0)                                  # relu4
    h = jnp.dot(h, w3_ref[...], preferred_element_type=jnp.float32) + b3_ref[...]
    o_ref[...] = jnp.maximum(h, 0.0)                         # relu5 (present in the reference)


def fc_fused(a, w1, b1, w2, b2, w3, b3):
    """a: (N, 256) -> (N, 10); all three linears + ReLUs in one kernel."""
    N, Kf = a.shape
    F3 = w3.shape[1]
    tm = N if N <= 128 else 128                              # batch tile (scales to large N)
    return pl.pallas_call(
        _fc_fused_kernel,
        out_shape=jax.ShapeDtypeStruct((N, F3), jnp.float32),
        grid=(pl.cdiv(N, tm),),
        in_specs=[
            pl.BlockSpec((tm, Kf), lambda i: (i, 0)),
            pl.BlockSpec(w1.shape, lambda i: (0, 0)),
            pl.BlockSpec(b1.shape, lambda i: (0, 0)),
            pl.BlockSpec(w2.shape, lambda i: (0, 0)),
            pl.BlockSpec(b2.shape, lambda i: (0, 0)),
            pl.BlockSpec(w3.shape, lambda i: (0, 0)),
            pl.BlockSpec(b3.shape, lambda i: (0, 0)),
        ],
        out_specs=pl.BlockSpec((tm, F3), lambda i: (i, 0)),
        compiler_params=pltpu.CompilerParams(dimension_semantics=("parallel",)),
    )(a, w1, b1, w2, b2, w3, b3)


# ------------------------------- forward ------------------------------------

def forward(params, x_nhwc):
    N = x_nhwc.shape[0]
    # NHWC (N,28,28,1); C==1 so this equals the torch permute to NCHW.  Flatten the
    # spatial map row-major and zero-pad the lane axis so all tap slices fit.
    x = x_nhwc.reshape(N, 1, H1 * W1).astype(jnp.float32)
    x = jnp.pad(x, ((0, 0), (0, 0), (0, LIN1 - H1 * W1)))
    y = conv_relu_pool(x, params['conv1_w'], params['conv1_b'], params['sel1'],
                       H=H1, W=W1, kh=K, kw=K)               # (N, 6, LIN2)  [12x12 maps]
    y = conv_relu_pool(y, params['conv2_w'], params['conv2_b'], params['sel2'],
                       H=H2, W=W2, kh=K, kw=K)               # (N, 16, 16)   [4x4 maps]
    y = y.reshape(N, 16 * LOUT2)                             # == torch .view (C,H,W order)
    return fc_fused(y, params['fc1_w'], params['fc1_b'],
                    params['fc2_w'], params['fc2_b'],
                    params['fc3_w'], params['fc3_b'])        # (N, 10)


# ------------------------------ parameters -----------------------------------

def make_pool_select(Ho, Wo, W, Lout):
    """(4, Ho*W, Lout) one-hot matrices gathering the 4 taps of each 2x2 window."""
    Hp, Wp = Ho // 2, Wo // 2
    S = np.zeros((4, Ho * W, Lout), np.float32)
    for k, (dy, dx) in enumerate(((0, 0), (0, 1), (1, 0), (1, 1))):
        for hp in range(Hp):
            for wp in range(Wp):
                S[k, (2 * hp + dy) * W + (2 * wp + dx), hp * Wp + wp] = 1.0
    return jnp.asarray(S)


def init_params(key):
    """Torch-layout params, nn.Conv2d/nn.Linear default init U(-1/sqrt(fan_in), +)."""
    ks = jax.random.split(key, 10)

    def u(k, shape, fan_in):
        bound = 1.0 / (fan_in ** 0.5)
        return jax.random.uniform(k, shape, jnp.float32, -bound, bound)

    return {
        'conv1_w': u(ks[0], (6, 1, 5, 5), 25),   'conv1_b': u(ks[1], (6,), 25),
        'conv2_w': u(ks[2], (16, 6, 5, 5), 150), 'conv2_b': u(ks[3], (16,), 150),
        'fc1_w':  u(ks[4], (120, 256), 256),     'fc1_b':  u(ks[5], (120,), 256),
        'fc2_w':  u(ks[6], (84, 120), 120),      'fc2_b':  u(ks[7], (84,), 120),
        'fc3_w':  u(ks[8], (10, 84), 84),        'fc3_b':  u(ks[9], (10,), 84),
    }


def prepare_params(p):
    """One-time conversion to kernel-ready layouts (no per-call transposes)."""
    return {
        # conv weights -> tap-major (kh*kw, Cout, Cin); biases -> (Cout, 1)
        'conv1_w': p['conv1_w'].transpose(2, 3, 0, 1).reshape(K * K, 6, 1),
        'conv1_b': p['conv1_b'].reshape(6, 1),
        'conv2_w': p['conv2_w'].transpose(2, 3, 0, 1).reshape(K * K, 16, 6),
        'conv2_b': p['conv2_b'].reshape(16, 1),
        # fc weights pre-transposed to (in, out); biases -> (1, out)
        'fc1_w': p['fc1_w'].T, 'fc1_b': p['fc1_b'].reshape(1, -1),
        'fc2_w': p['fc2_w'].T, 'fc2_b': p['fc2_b'].reshape(1, -1),
        'fc3_w': p['fc3_w'].T, 'fc3_b': p['fc3_b'].reshape(1, -1),
        # constant pooling selection matrices
        'sel1': make_pool_select(HO1, WO1, W1, LIN2),
        'sel2': make_pool_select(HO2, WO2, W2, LOUT2),
    }


if __name__ == "__main__":
    key = jax.random.PRNGKey(0)
    kx, kp = jax.random.split(key)
    # fc1 expects 256 = 16*4*4 features => 28x28x1 NHWC input
    x = jax.random.normal(kx, (2, 28, 28, 1), jnp.float32)
    params = prepare_params(init_params(kp))
    out = jax.jit(forward)(params, x)
    out = jax.block_until_ready(out)
    assert out.shape == (2, 10) and out.dtype == jnp.float32
    print("KERNEL_OK")
</pallas_src>

<mosaic_0001>
module attributes {stable_mosaic.version = 11 : i64} {
  func.func @kernel(%arg0: i32, %arg1: memref<1x1x788xf32, #tpu.memory_space<vmem>>, %arg2: memref<25x6x1xf32, #tpu.memory_space<vmem>>, %arg3: memref<6x1xf32, #tpu.memory_space<vmem>>, %arg4: memref<4x672x148xf32, #tpu.memory_space<vmem>>, %arg5: memref<1x6x148xf32, #tpu.memory_space<vmem>>) attributes {dimension_semantics = [#tpu.dimension_semantics<parallel>], iteration_bounds = array<i64: 2>, scalar_prefetch = 0 : i64, scratch_operands = 0 : i64, tpu.core_type = #tpu.core_type<tc>, window_params = [{transform_indices = @transform_0, window_bounds = array<i64: 1, 1, 788>}, {pipeline_mode = #tpu.pipeline_mode<synchronous>, transform_indices = @transform_1, window_bounds = array<i64: 25, 6, 1>}, {pipeline_mode = #tpu.pipeline_mode<synchronous>, transform_indices = @transform_2, window_bounds = array<i64: 6, 1>}, {pipeline_mode = #tpu.pipeline_mode<synchronous>, transform_indices = @transform_3, window_bounds = array<i64: 4, 672, 148>}, {transform_indices = @transform_4, window_bounds = array<i64: 1, 6, 148>}]} {
    %c0 = arith.constant 0 : index
    %c0_0 = arith.constant 0 : index
    %c0_1 = arith.constant 0 : index
    %0 = vector.load %arg1[%c0, %c0_0, %c0_1] : memref<1x1x788xf32, #tpu.memory_space<vmem>>, vector<1x1x788xf32>
    %1 = vector.shape_cast %0 : vector<1x1x788xf32> to vector<1x788xf32>
    %2 = vector.extract_strided_slice %1 {offsets = [0, 0], sizes = [1, 672], strides = [1, 1]} : vector<1x788xf32> to vector<1x672xf32>
    %c0_2 = arith.constant 0 : index
    %c0_3 = arith.constant 0 : index
    %c0_4 = arith.constant 0 : index
    %3 = vector.load %arg2[%c0_2, %c0_3, %c0_4] : memref<25x6x1xf32, #tpu.memory_space<vmem>>, vector<1x6x1xf32>
    %4 = vector.shape_cast %3 : vector<1x6x1xf32> to vector<6x1xf32>
    %5 = vector.broadcast %4 : vector<6x1xf32> to vector<6x672xf32>
    %6 = vector.broadcast %2 : vector<1x672xf32> to vector<6x672xf32>
    %7 = arith.mulf %5, %6 : vector<6x672xf32>
    %8 = vector.extract_strided_slice %1 {offsets = [0, 1], sizes = [1, 672], strides = [1, 1]} : vector<1x788xf32> to vector<1x672xf32>
    %c1 = arith.constant 1 : index
    %c0_5 = arith.constant 0 : index
    %c0_6 = arith.constant 0 : index
    %9 = vector.load %arg2[%c1, %c0_5, %c0_6] : memref<25x6x1xf32, #tpu.memory_space<vmem>>, vector<1x6x1xf32>
    %10 = vector.shape_cast %9 : vector<1x6x1xf32> to vector<6x1xf32>
    %11 = vector.broadcast %10 : vector<6x1xf32> to vector<6x672xf32>
    %12 = vector.broadcast %8 : vector<1x672xf32> to vector<6x672xf32>
    %13 = arith.mulf %11, %12 : vector<6x672xf32>
    %14 = arith.addf %7, %13 : vector<6x672xf32>
    %15 = vector.extract_strided_slice %1 {offsets = [0, 2], sizes = [1, 672], strides = [1, 1]} : vector<1x788xf32> to vector<1x672xf32>
    %c2 = arith.constant 2 : index
    %c0_7 = arith.constant 0 : index
    %c0_8 = arith.constant 0 : index
    %16 = vector.load %arg2[%c2, %c0_7, %c0_8] : memref<25x6x1xf32, #tpu.memory_space<vmem>>, vector<1x6x1xf32>
    %17 = vector.shape_cast %16 : vector<1x6x1xf32> to vector<6x1xf32>
    %18 = vector.broadcast %17 : vector<6x1xf32> to vector<6x672xf32>
    %19 = vector.broadcast %15 : vector<1x672xf32> to vector<6x672xf32>
    %20 = arith.mulf %18, %19 : vector<6x672xf32>
    %21 = arith.addf %14, %20 : vector<6x672xf32>
    %22 = vector.extract_strided_slice %1 {offsets = [0, 3], sizes = [1, 672], strides = [1, 1]} : vector<1x788xf32> to vector<1x672xf32>
    %c3 = arith.constant 3 : index
    %c0_9 = arith.constant 0 : index
    %c0_10 = arith.constant 0 : index
    %23 = vector.load %arg2[%c3, %c0_9, %c0_10] : memref<25x6x1xf32, #tpu.memory_space<vmem>>, vector<1x6x1xf32>
    %24 = vector.shape_cast %23 : vector<1x6x1xf32> to vector<6x1xf32>
    %25 = vector.broadcast %24 : vector<6x1xf32> to vector<6x672xf32>
    %26 = vector.broadcast %22 : vector<1x672xf32> to vector<6x672xf32>
    %27 = arith.mulf %25, %26 : vector<6x672xf32>
    %28 = arith.addf %21, %27 : vector<6x672xf32>
    %29 = vector.extract_strided_slice %1 {offsets = [0, 4], sizes = [1, 672], strides = [1, 1]} : vector<1x788xf32> to vector<1x672xf32>
    %c4 = arith.constant 4 : index
    %c0_11 = arith.constant 0 : index
    %c0_12 = arith.constant 0 : index
    %30 = vector.load %arg2[%c4, %c0_11, %c0_12] : memref<25x6x1xf32, #tpu.memory_space<vmem>>, vector<1x6x1xf32>
    %31 = vector.shape_cast %30 : vector<1x6x1xf32> to vector<6x1xf32>
    %32 = vector.broadcast %31 : vector<6x1xf32> to vector<6x672xf32>
    %33 = vector.broadcast %29 : vector<1x672xf32> to vector<6x672xf32>
    %34 = arith.mulf %32, %33 : vector<6x672xf32>
    %35 = arith.addf %28, %34 : vector<6x672xf32>
    %36 = vector.extract_strided_slice %1 {offsets = [0, 28], sizes = [1, 672], strides = [1, 1]} : vector<1x788xf32> to vector<1x672xf32>
    %c5 = arith.constant 5 : index
    %c0_13 = arith.constant 0 : index
    %c0_14 = arith.constant 0 : index
    %37 = vector.load %arg2[%c5, %c0_13, %c0_14] : memref<25x6x1xf32, #tpu.memory_space<vmem>>, vector<1x6x1xf32>
    %38 = vector.shape_cast %37 : vector<1x6x1xf32> to vector<6x1xf32>
    %39 = vector.broadcast %38 : vector<6x1xf32> to vector<6x672xf32>
    %40 = vector.broadcast %36 : vector<1x672xf32> to vector<6x672xf32>
    %41 = arith.mulf %39, %40 : vector<6x672xf32>
    %42 = arith.addf %35, %41 : vector<6x672xf32>
    %43 = vector.extract_strided_slice %1 {offsets = [0, 29], sizes = [1, 672], strides = [1, 1]} : vector<1x788xf32> to vector<1x672xf32>
    %c6 = arith.constant 6 : index
    %c0_15 = arith.constant 0 : index
    %c0_16 = arith.constant 0 : index
    %44 = vector.load %arg2[%c6, %c0_15, %c0_16] : memref<25x6x1xf32, #tpu.memory_space<vmem>>, vector<1x6x1xf32>
    %45 = vector.shape_cast %44 : vector<1x6x1xf32> to vector<6x1xf32>
    %46 = vector.broadcast %45 : vector<6x1xf32> to vector<6x672xf32>
    %47 = vector.broadcast %43 : vector<1x672xf32> to vector<6x672xf32>
    %48 = arith.mulf %46, %47 : vector<6x672xf32>
    %49 = arith.addf %42, %48 : vector<6x672xf32>
    %50 = vector.extract_strided_slice %1 {offsets = [0, 30], sizes = [1, 672], strides = [1, 1]} : vector<1x788xf32> to vector<1x672xf32>
    %c7 = arith.constant 7 : index
    %c0_17 = arith.constant 0 : index
    %c0_18 = arith.constant 0 : index
    %51 = vector.load %arg2[%c7, %c0_17, %c0_18] : memref<25x6x1xf32, #tpu.memory_space<vmem>>, vector<1x6x1xf32>
    %52 = vector.shape_cast %51 : vector<1x6x1xf32> to vector<6x1xf32>
    %53 = vector.broadcast %52 : vector<6x1xf32> to vector<6x672xf32>
    %54 = vector.broadcast %50 : vector<1x672xf32> to vector<6x672xf32>
    %55 = arith.mulf %53, %54 : vector<6x672xf32>
    %56 = arith.addf %49, %55 : vector<6x672xf32>
    %57 = vector.extract_strided_slice %1 {offsets = [0, 31], sizes = [1, 672], strides = [1, 1]} : vector<1x788xf32> to vector<1x672xf32>
    %c8 = arith.constant 8 : index
    %c0_19 = arith.constant 0 : index
    %c0_20 = arith.constant 0 : index
    %58 = vector.load %arg2[%c8, %c0_19, %c0_20] : memref<25x6x1xf32, #tpu.memory_space<vmem>>, vector<1x6x1xf32>
    %59 = vector.shape_cast %58 : vector<1x6x1xf32> to vector<6x1xf32>
    %60 = vector.broadcast %59 : vector<6x1xf32> to vector<6x672xf32>
    %61 = vector.broadcast %57 : vector<1x672xf32> to vector<6x672xf32>
    %62 = arith.mulf %60, %61 : vector<6x672xf32>
    %63 = arith.addf %56, %62 : vector<6x672xf32>
    %64 = vector.extract_strided_slice %1 {offsets = [0, 32], sizes = [1, 672], strides = [1, 1]} : vector<1x788xf32> to vector<1x672xf32>
    %c9 = arith.constant 9 : index
    %c0_21 = arith.constant 0 : index
    %c0_22 = arith.constant 0 : index
    %65 = vector.load %arg2[%c9, %c0_21, %c0_22] : memref<25x6x1xf32, #tpu.memory_space<vmem>>, vector<1x6x1xf32>
    %66 = vector.shape_cast %65 : vector<1x6x1xf32> to vector<6x1xf32>
    %67 = vector.broadcast %66 : vector<6x1xf32> to vector<6x672xf32>
    %68 = vector.broadcast %64 : vector<1x672xf32> to vector<6x672xf32>
    %69 = arith.mulf %67, %68 : vector<6x672xf32>
    %70 = arith.addf %63, %69 : vector<6x672xf32>
    %71 = vector.extract_strided_slice %1 {offsets = [0, 56], sizes = [1, 672], strides = [1, 1]} : vector<1x788xf32> to vector<1x672xf32>
    %c10 = arith.constant 10 : index
    %c0_23 = arith.constant 0 : index
    %c0_24 = arith.constant 0 : index
    %72 = vector.load %arg2[%c10, %c0_23, %c0_24] : memref<25x6x1xf32, #tpu.memory_space<vmem>>, vector<1x6x1xf32>
    %73 = vector.shape_cast %72 : vector<1x6x1xf32> to vector<6x1xf32>
    %74 = vector.broadcast %73 : vector<6x1xf32> to vector<6x672xf32>
    %75 = vector.broadcast %71 : vector<1x672xf32> to vector<6x672xf32>
    %76 = arith.mulf %74, %75 : vector<6x672xf32>
    %77 = arith.addf %70, %76 : vector<6x672xf32>
    %78 = vector.extract_strided_slice %1 {offsets = [0, 57], sizes = [1, 672], strides = [1, 1]} : vector<1x788xf32> to vector<1x672xf32>
    %c11 = arith.constant 11 : index
    %c0_25 = arith.constant 0 : index
    %c0_26 = arith.constant 0 : index
    %79 = vector.load %arg2[%c11, %c0_25, %c0_26] : memref<25x6x1xf32, #tpu.memory_space<vmem>>, vector<1x6x1xf32>
    %80 = vector.shape_cast %79 : vector<1x6x1xf32> to vector<6x1xf32>
    %81 = vector.broadcast %80 : vector<6x1xf32> to vector<6x672xf32>
    %82 = vector.broadcast %78 : vector<1x672xf32> to vector<6x672xf32>
    %83 = arith.mulf %81, %82 : vector<6x672xf32>
    %84 = arith.addf %77, %83 : vector<6x672xf32>
    %85 = vector.extract_strided_slice %1 {offsets = [0, 58], sizes = [1, 672], strides = [1, 1]} : vector<1x788xf32> to vector<1x672xf32>
    %c12 = arith.constant 12 : index
    %c0_27 = arith.constant 0 : index
    %c0_28 = arith.constant 0 : index
    %86 = vector.load %arg2[%c12, %c0_27, %c0_28] : memref<25x6x1xf32, #tpu.memory_space<vmem>>, vector<1x6x1xf32>
    %87 = vector.shape_cast %86 : vector<1x6x1xf32> to vector<6x1xf32>
    %88 = vector.broadcast %87 : vector<6x1xf32> to vector<6x672xf32>
    %89 = vector.broadcast %85 : vector<1x672xf32> to vector<6x672xf32>
    %90 = arith.mulf %88, %89 : vector<6x672xf32>
    %91 = arith.addf %84, %90 : vector<6x672xf32>
    %92 = vector.extract_strided_slice %1 {offsets = [0, 59], sizes = [1, 672], strides = [1, 1]} : vector<1x788xf32> to vector<1x672xf32>
    %c13 = arith.constant 13 : index
    %c0_29 = arith.constant 0 : index
    %c0_30 = arith.constant 0 : index
    %93 = vector.load %arg2[%c13, %c0_29, %c0_30] : memref<25x6x1xf32, #tpu.memory_space<vmem>>, vector<1x6x1xf32>
    %94 = vector.shape_cast %93 : vector<1x6x1xf32> to vector<6x1xf32>
    %95 = vector.broadcast %94 : vector<6x1xf32> to vector<6x672xf32>
    %96 = vector.broadcast %92 : vector<1x672xf32> to vector<6x672xf32>
    %97 = arith.mulf %95, %96 : vector<6x672xf32>
    %98 = arith.addf %91, %97 : vector<6x672xf32>
    %99 = vector.extract_strided_slice %1 {offsets = [0, 60], sizes = [1, 672], strides = [1, 1]} : vector<1x788xf32> to vector<1x672xf32>
    %c14 = arith.constant 14 : index
    %c0_31 = arith.constant 0 : index
    %c0_32 = arith.constant 0 : index
    %100 = vector.load %arg2[%c14, %c0_31, %c0_32] : memref<25x6x1xf32, #tpu.memory_space<vmem>>, vector<1x6x1xf32>
    %101 = vector.shape_cast %100 : vector<1x6x1xf32> to vector<6x1xf32>
    %102 = vector.broadcast %101 : vector<6x1xf32> to vector<6x672xf32>
    %103 = vector.broadcast %99 : vector<1x672xf32> to vector<6x672xf32>
    %104 = arith.mulf %102, %103 : vector<6x672xf32>
    %105 = arith.addf %98, %104 : vector<6x672xf32>
    %106 = vector.extract_strided_slice %1 {offsets = [0, 84], sizes = [1, 672], strides = [1, 1]} : vector<1x788xf32> to vector<1x672xf32>
    %c15 = arith.constant 15 : index
    %c0_33 = arith.constant 0 : index
    %c0_34 = arith.constant 0 : index
    %107 = vector.load %arg2[%c15, %c0_33, %c0_34] : memref<25x6x1xf32, #tpu.memory_space<vmem>>, vector<1x6x1xf32>
    %108 = vector.shape_cast %107 : vector<1x6x1xf32> to vector<6x1xf32>
    %109 = vector.broadcast %108 : vector<6x1xf32> to vector<6x672xf32>
    %110 = vector.broadcast %106 : vector<1x672xf32> to vector<6x672xf32>
    %111 = arith.mulf %109, %110 : vector<6x672xf32>
    %112 = arith.addf %105, %111 : vector<6x672xf32>
    %113 = vector.extract_strided_slice %1 {offsets = [0, 85], sizes = [1, 672], strides = [1, 1]} : vector<1x788xf32> to vector<1x672xf32>
    %c16 = arith.constant 16 : index
    %c0_35 = arith.constant 0 : index
    %c0_36 = arith.constant 0 : index
    %114 = vector.load %arg2[%c16, %c0_35, %c0_36] : memref<25x6x1xf32, #tpu.memory_space<vmem>>, vector<1x6x1xf32>
    %115 = vector.shape_cast %114 : vector<1x6x1xf32> to vector<6x1xf32>
    %116 = vector.broadcast %115 : vector<6x1xf32> to vector<6x672xf32>
    %117 = vector.broadcast %113 : vector<1x672xf32> to vector<6x672xf32>
    %118 = arith.mulf %116, %117 : vector<6x672xf32>
    %119 = arith.addf %112, %118 : vector<6x672xf32>
    %120 = vector.extract_strided_slice %1 {offsets = [0, 86], sizes = [1, 672], strides = [1, 1]} : vector<1x788xf32> to vector<1x672xf32>
    %c17 = arith.constant 17 : index
    %c0_37 = arith.constant 0 : index
    %c0_38 = arith.constant 0 : index
    %121 = vector.load %arg2[%c17, %c0_37, %c0_38] : memref<25x6x1xf32, #tpu.memory_space<vmem>>, vector<1x6x1xf32>
    %122 = vector.shape_cast %121 : vector<1x6x1xf32> to vector<6x1xf32>
    %123 = vector.broadcast %122 : vector<6x1xf32> to vector<6x672xf32>
    %124 = vector.broadcast %120 : vector<1x672xf32> to vector<6x672xf32>
    %125 = arith.mulf %123, %124 : vector<6x672xf32>
    %126 = arith.addf %119, %125 : vector<6x672xf32>
    %127 = vector.extract_strided_slice %1 {offsets = [0, 87], sizes = [1, 672], strides = [1, 1]} : vector<1x788xf32> to vector<1x672xf32>
    %c18 = arith.constant 18 : index
    %c0_39 = arith.constant 0 : index
    %c0_40 = arith.constant 0 : index
    %128 = vector.load %arg2[%c18, %c0_39, %c0_40] : memref<25x6x1xf32, #tpu.memory_space<vmem>>, vector<1x6x1xf32>
    %129 = vector.shape_cast %128 : vector<1x6x1xf32> to vector<6x1xf32>
    %130 = vector.broadcast %129 : vector<6x1xf32> to vector<6x672xf32>
    %131 = vector.broadcast %127 : vector<1x672xf32> to vector<6x672xf32>
    %132 = arith.mulf %130, %131 : vector<6x672xf32>
    %133 = arith.addf %126, %132 : vector<6x672xf32>
    %134 = vector.extract_strided_slice %1 {offsets = [0, 88], sizes = [1, 672], strides = [1, 1]} : vector<1x788xf32> to vector<1x672xf32>
    %c19 = arith.constant 19 : index
    %c0_41 = arith.constant 0 : index
    %c0_42 = arith.constant 0 : index
    %135 = vector.load %arg2[%c19, %c0_41, %c0_42] : memref<25x6x1xf32, #tpu.memory_space<vmem>>, vector<1x6x1xf32>
    %136 = vector.shape_cast %135 : vector<1x6x1xf32> to vector<6x1xf32>
    %137 = vector.broadcast %136 : vector<6x1xf32> to vector<6x672xf32>
    %138 = vector.broadcast %134 : vector<1x672xf32> to vector<6x672xf32>
    %139 = arith.mulf %137, %138 : vector<6x672xf32>
    %140 = arith.addf %133, %139 : vector<6x672xf32>
    %141 = vector.extract_strided_slice %1 {offsets = [0, 112], sizes = [1, 672], strides = [1, 1]} : vector<1x788xf32> to vector<1x672xf32>
    %c20 = arith.constant 20 : index
    %c0_43 = arith.constant 0 : index
    %c0_44 = arith.constant 0 : index
    %142 = vector.load %arg2[%c20, %c0_43, %c0_44] : memref<25x6x1xf32, #tpu.memory_space<vmem>>, vector<1x6x1xf32>
    %143 = vector.shape_cast %142 : vector<1x6x1xf32> to vector<6x1xf32>
    %144 = vector.broadcast %143 : vector<6x1xf32> to vector<6x672xf32>
    %145 = vector.broadcast %141 : vector<1x672xf32> to vector<6x672xf32>
    %146 = arith.mulf %144, %145 : vector<6x672xf32>
    %147 = arith.addf %140, %146 : vector<6x672xf32>
    %148 = vector.extract_strided_slice %1 {offsets = [0, 113], sizes = [1, 672], strides = [1, 1]} : vector<1x788xf32> to vector<1x672xf32>
    %c21 = arith.constant 21 : index
    %c0_45 = arith.constant 0 : index
    %c0_46 = arith.constant 0 : index
    %149 = vector.load %arg2[%c21, %c0_45, %c0_46] : memref<25x6x1xf32, #tpu.memory_space<vmem>>, vector<1x6x1xf32>
    %150 = vector.shape_cast %149 : vector<1x6x1xf32> to vector<6x1xf32>
    %151 = vector.broadcast %150 : vector<6x1xf32> to vector<6x672xf32>
    %152 = vector.broadcast %148 : vector<1x672xf32> to vector<6x672xf32>
    %153 = arith.mulf %151, %152 : vector<6x672xf32>
    %154 = arith.addf %147, %153 : vector<6x672xf32>
    %155 = vector.extract_strided_slice %1 {offsets = [0, 114], sizes = [1, 672], strides = [1, 1]} : vector<1x788xf32> to vector<1x672xf32>
    %c22 = arith.constant 22 : index
    %c0_47 = arith.constant 0 : index
    %c0_48 = arith.constant 0 : index
    %156 = vector.load %arg2[%c22, %c0_47, %c0_48] : memref<25x6x1xf32, #tpu.memory_space<vmem>>, vector<1x6x1xf32>
    %157 = vector.shape_cast %156 : vector<1x6x1xf32> to vector<6x1xf32>
    %158 = vector.broadcast %157 : vector<6x1xf32> to vector<6x672xf32>
    %159 = vector.broadcast %155 : vector<1x672xf32> to vector<6x672xf32>
    %160 = arith.mulf %158, %159 : vector<6x672xf32>
    %161 = arith.addf %154, %160 : vector<6x672xf32>
    %162 = vector.extract_strided_slice %1 {offsets = [0, 115], sizes = [1, 672], strides = [1, 1]} : vector<1x788xf32> to vector<1x672xf32>
    %c23 = arith.constant 23 : index
    %c0_49 = arith.constant 0 : index
    %c0_50 = arith.constant 0 : index
    %163 = vector.load %arg2[%c23, %c0_49, %c0_50] : memref<25x6x1xf32, #tpu.memory_space<vmem>>, vector<1x6x1xf32>
    %164 = vector.shape_cast %163 : vector<1x6x1xf32> to vector<6x1xf32>
    %165 = vector.broadcast %164 : vector<6x1xf32> to vector<6x672xf32>
    %166 = vector.broadcast %162 : vector<1x672xf32> to vector<6x672xf32>
    %167 = arith.mulf %165, %166 : vector<6x672xf32>
    %168 = arith.addf %161, %167 : vector<6x672xf32>
    %169 = vector.extract_strided_slice %1 {offsets = [0, 116], sizes = [1, 672], strides = [1, 1]} : vector<1x788xf32> to vector<1x672xf32>
    %c24 = arith.constant 24 : index
    %c0_51 = arith.constant 0 : index
    %c0_52 = arith.constant 0 : index
    %170 = vector.load %arg2[%c24, %c0_51, %c0_52] : memref<25x6x1xf32, #tpu.memory_space<vmem>>, vector<1x6x1xf32>
    %171 = vector.shape_cast %170 : vector<1x6x1xf32> to vector<6x1xf32>
    %172 = vector.broadcast %171 : vector<6x1xf32> to vector<6x672xf32>
    %173 = vector.broadcast %169 : vector<1x672xf32> to vector<6x672xf32>
    %174 = arith.mulf %172, %173 : vector<6x672xf32>
    %175 = arith.addf %168, %174 : vector<6x672xf32>
    %c0_53 = arith.constant 0 : index
    %c0_54 = arith.constant 0 : index
    %176 = vector.load %arg3[%c0_53, %c0_54] : memref<6x1xf32, #tpu.memory_space<vmem>>, vector<6x1xf32>
    %177 = vector.broadcast %176 : vector<6x1xf32> to vector<6x672xf32>
    %178 = arith.addf %175, %177 : vector<6x672xf32>
    %c0_55 = arith.constant 0 : index
    %c0_56 = arith.constant 0 : index
    %c0_57 = arith.constant 0 : index
    %179 = vector.load %arg4[%c0_55, %c0_56, %c0_57] : memref<4x672x148xf32, #tpu.memory_space<vmem>>, vector<1x672x148xf32>
    %180 = vector.shape_cast %179 : vector<1x672x148xf32> to vector<672x148xf32>
    %cst = arith.constant dense<0.000000e+00> : vector<6x148xf32>
    %181 = tpu.matmul %178, %180, %cst {dimension_numbers = #tpu.dot_dimension_numbers<[1], [0], [0], [1], [0, 0, 1, 1], [], []>} : vector<6x672xf32>, vector<672x148xf32>, vector<6x148xf32> -> vector<6x148xf32>
    %c1_58 = arith.constant 1 : index
    %c0_59 = arith.constant 0 : index
    %c0_60 = arith.constant 0 : index
    %182 = vector.load %arg4[%c1_58, %c0_59, %c0_60] : memref<4x672x148xf32, #tpu.memory_space<vmem>>, vector<1x672x148xf32>
    %183 = vector.shape_cast %182 : vector<1x672x148xf32> to vector<672x148xf32>
    %cst_61 = arith.constant dense<0.000000e+00> : vector<6x148xf32>
    %184 = tpu.matmul %178, %183, %cst_61 {dimension_numbers = #tpu.dot_dimension_numbers<[1], [0], [0], [1], [0, 0, 1, 1], [], []>} : vector<6x672xf32>, vector<672x148xf32>, vector<6x148xf32> -> vector<6x148xf32>
    %185 = arith.maximumf %181, %184 : vector<6x148xf32>
    %c2_62 = arith.constant 2 : index
    %c0_63 = arith.constant 0 : index
    %c0_64 = arith.constant 0 : index
    %186 = vector.load %arg4[%c2_62, %c0_63, %c0_64] : memref<4x672x148xf32, #tpu.memory_space<vmem>>, vector<1x672x148xf32>
    %187 = vector.shape_cast %186 : vector<1x672x148xf32> to vector<672x148xf32>
    %cst_65 = arith.constant dense<0.000000e+00> : vector<6x148xf32>
    %188 = tpu.matmul %178, %187, %cst_65 {dimension_numbers = #tpu.dot_dimension_numbers<[1], [0], [0], [1], [0, 0, 1, 1], [], []>} : vector<6x672xf32>, vector<672x148xf32>, vector<6x148xf32> -> vector<6x148xf32>
    %189 = arith.maximumf %185, %188 : vector<6x148xf32>
    %c3_66 = arith.constant 3 : index
    %c0_67 = arith.constant 0 : index
    %c0_68 = arith.constant 0 : index
    %190 = vector.load %arg4[%c3_66, %c0_67, %c0_68] : memref<4x672x148xf32, #tpu.memory_space<vmem>>, vector<1x672x148xf32>
    %191 = vector.shape_cast %190 : vector<1x672x148xf32> to vector<672x148xf32>
    %cst_69 = arith.constant dense<0.000000e+00> : vector<6x148xf32>
    %192 = tpu.matmul %178, %191, %cst_69 {dimension_numbers = #tpu.dot_dimension_numbers<[1], [0], [0], [1], [0, 0, 1, 1], [], []>} : vector<6x672xf32>, vector<672x148xf32>, vector<6x148xf32> -> vector<6x148xf32>
    %193 = arith.maximumf %189, %192 : vector<6x148xf32>
    %cst_70 = arith.constant 0.000000e+00 : f32
    %194 = vector.broadcast %cst_70 : f32 to vector<6x148xf32>
    %195 = arith.maximumf %193, %194 : vector<6x148xf32>
    %c0_71 = arith.constant 0 : index
    %c0_72 = arith.constant 0 : index
    %c0_73 = arith.constant 0 : index
    %196 = vector.load %arg5[%c0_71, %c0_72, %c0_73] : memref<1x6x148xf32, #tpu.memory_space<vmem>>, vector<1x6x148xf32>
    %197 = vector.shape_cast %196 : vector<1x6x148xf32> to vector<6x148xf32>
    %198 = vector.shape_cast %195 : vector<6x148xf32> to vector<1x6x148xf32>
    tpu.vector_store %arg5[%c0_71, %c0_72, %c0_73], %198 {strides = array<i32>} : memref<1x6x148xf32, #tpu.memory_space<vmem>>, vector<1x6x148xf32>,
    return
  }
  func.func @transform_0(%arg0: i32) -> (i32, i32, i32) {
    %c0_i32 = arith.constant 0 : i32
    %c0_i32_0 = arith.constant 0 : i32
    %c0_i32_1 = arith.constant 0 : i32
    return %arg0, %c0_i32, %c0_i32_0 : i32, i32, i32
  }
  func.func @transform_1(%arg0: i32) -> (i32, i32, i32) {
    %c0_i32 = arith.constant 0 : i32
    %c0_i32_0 = arith.constant 0 : i32
    %c0_i32_1 = arith.constant 0 : i32
    %c0_i32_2 = arith.constant 0 : i32
    return %c0_i32, %c0_i32_0, %c0_i32_1 : i32, i32, i32
  }
  func.func @transform_2(%arg0: i32) -> (i32, i32) {
    %c0_i32 = arith.constant 0 : i32
    %c0_i32_0 = arith.constant 0 : i32
    %c0_i32_1 = arith.constant 0 : i32
    return %c0_i32, %c0_i32_0 : i32, i32
  }
  func.func @transform_3(%arg0: i32) -> (i32, i32, i32) {
    %c0_i32 = arith.constant 0 : i32
    %c0_i32_0 = arith.constant 0 : i32
    %c0_i32_1 = arith.constant 0 : i32
    %c0_i32_2 = arith.constant 0 : i32
    return %c0_i32, %c0_i32_0, %c0_i32_1 : i32, i32, i32
  }
  func.func @transform_4(%arg0: i32) -> (i32, i32, i32) {
    %c0_i32 = arith.constant 0 : i32
    %c0_i32_0 = arith.constant 0 : i32
    %c0_i32_1 = arith.constant 0 : i32
    return %arg0, %c0_i32, %c0_i32_0 : i32, i32, i32
  }
}

module attributes {stable_mosaic.version = 11 : i64} {
  func.func @kernel(%arg0: i32, %arg1: memref<1x6x148xf32, #tpu.memory_space<vmem>>, %arg2: memref<25x16x6xf32, #tpu.memory_space<vmem>>, %arg3: memref<16x1xf32, #tpu.memory_space<vmem>>, %arg4: memref<4x96x16xf32, #tpu.memory_space<vmem>>, %arg5: memref<1x16x16xf32, #tpu.memory_space<vmem>>) attributes {dimension_semantics = [#tpu.dimension_semantics<parallel>], iteration_bounds = array<i64: 2>, scalar_prefetch = 0 : i64, scratch_operands = 0 : i64, tpu.core_type = #tpu.core_type<tc>, window_params = [{transform_indices = @transform_0, window_bounds = array<i64: 1, 6, 148>}, {pipeline_mode = #tpu.pipeline_mode<synchronous>, transform_indices = @transform_1, window_bounds = array<i64: 25, 16, 6>}, {pipeline_mode = #tpu.pipeline_mode<synchronous>, transform_indices = @transform_2, window_bounds = array<i64: 16, 1>}, {pipeline_mode = #tpu.pipeline_mode<synchronous>, transform_indices = @transform_3, window_bounds = array<i64: 4, 96, 16>}, {transform_indices = @transform_4, window_bounds = array<i64: 1, 16, 16>}]} {
    %c0 = arith.constant 0 : index
    %c0_0 = arith.constant 0 : index
    %c0_1 = arith.constant 0 : index
    %0 = vector.load %arg1[%c0, %c0_0, %c0_1] : memref<1x6x148xf32, #tpu.memory_space<vmem>>, vector<1x6x148xf32>
    %1 = vector.shape_cast %0 : vector<1x6x148xf32> to vector<6x148xf32>
    %2 = vector.extract_strided_slice %1 {offsets = [0, 0], sizes = [6, 96], strides = [1, 1]} : vector<6x148xf32> to vector<6x96xf32>
    %c0_2 = arith.constant 0 : index
    %c0_3 = arith.constant 0 : index
    %c0_4 = arith.constant 0 : index
    %3 = vector.load %arg2[%c0_2, %c0_3, %c0_4] : memref<25x16x6xf32, #tpu.memory_space<vmem>>, vector<1x16x6xf32>
    %4 = vector.shape_cast %3 : vector<1x16x6xf32> to vector<16x6xf32>
    %cst = arith.constant dense<0.000000e+00> : vector<16x96xf32>
    %5 = tpu.matmul %4, %2, %cst {dimension_numbers = #tpu.dot_dimension_numbers<[1], [0], [0], [1], [0, 0, 1, 1], [], []>} : vector<16x6xf32>, vector<6x96xf32>, vector<16x96xf32> -> vector<16x96xf32>
    %6 = vector.extract_strided_slice %1 {offsets = [0, 1], sizes = [6, 96], strides = [1, 1]} : vector<6x148xf32> to vector<6x96xf32>
    %c1 = arith.constant 1 : index
    %c0_5 = arith.constant 0 : index
    %c0_6 = arith.constant 0 : index
    %7 = vector.load %arg2[%c1, %c0_5, %c0_6] : memref<25x16x6xf32, #tpu.memory_space<vmem>>, vector<1x16x6xf32>
    %8 = vector.shape_cast %7 : vector<1x16x6xf32> to vector<16x6xf32>
    %cst_7 = arith.constant dense<0.000000e+00> : vector<16x96xf32>
    %9 = tpu.matmul %8, %6, %cst_7 {dimension_numbers = #tpu.dot_dimension_numbers<[1], [0], [0], [1], [0, 0, 1, 1], [], []>} : vector<16x6xf32>, vector<6x96xf32>, vector<16x96xf32> -> vector<16x96xf32>
    %10 = arith.addf %5, %9 : vector<16x96xf32>
    %11 = vector.extract_strided_slice %1 {offsets = [0, 2], sizes = [6, 96], strides = [1, 1]} : vector<6x148xf32> to vector<6x96xf32>
    %c2 = arith.constant 2 : index
    %c0_8 = arith.constant 0 : index
    %c0_9 = arith.constant 0 : index
    %12 = vector.load %arg2[%c2, %c0_8, %c0_9] : memref<25x16x6xf32, #tpu.memory_space<vmem>>, vector<1x16x6xf32>
    %13 = vector.shape_cast %12 : vector<1x16x6xf32> to vector<16x6xf32>
    %cst_10 = arith.constant dense<0.000000e+00> : vector<16x96xf32>
    %14 = tpu.matmul %13, %11, %cst_10 {dimension_numbers = #tpu.dot_dimension_numbers<[1], [0], [0], [1], [0, 0, 1, 1], [], []>} : vector<16x6xf32>, vector<6x96xf32>, vector<16x96xf32> -> vector<16x96xf32>
    %15 = arith.addf %10, %14 : vector<16x96xf32>
    %16 = vector.extract_strided_slice %1 {offsets = [0, 3], sizes = [6, 96], strides = [1, 1]} : vector<6x148xf32> to vector<6x96xf32>
    %c3 = arith.constant 3 : index
    %c0_11 = arith.constant 0 : index
    %c0_12 = arith.constant 0 : index
    %17 = vector.load %arg2[%c3, %c0_11, %c0_12] : memref<25x16x6xf32, #tpu.memory_space<vmem>>, vector<1x16x6xf32>
    %18 = vector.shape_cast %17 : vector<1x16x6xf32> to vector<16x6xf32>
    %cst_13 = arith.constant dense<0.000000e+00> : vector<16x96xf32>
    %19 = tpu.matmul %18, %16, %cst_13 {dimension_numbers = #tpu.dot_dimension_numbers<[1], [0], [0], [1], [0, 0, 1, 1], [], []>} : vector<16x6xf32>, vector<6x96xf32>, vector<16x96xf32> -> vector<16x96xf32>
    %20 = arith.addf %15, %19 : vector<16x96xf32>
    %21 = vector.extract_strided_slice %1 {offsets = [0, 4], sizes = [6, 96], strides = [1, 1]} : vector<6x148xf32> to vector<6x96xf32>
    %c4 = arith.constant 4 : index
    %c0_14 = arith.constant 0 : index
    %c0_15 = arith.constant 0 : index
    %22 = vector.load %arg2[%c4, %c0_14, %c0_15] : memref<25x16x6xf32, #tpu.memory_space<vmem>>, vector<1x16x6xf32>
    %23 = vector.shape_cast %22 : vector<1x16x6xf32> to vector<16x6xf32>
    %cst_16 = arith.constant dense<0.000000e+00> : vector<16x96xf32>
    %24 = tpu.matmul %23, %21, %cst_16 {dimension_numbers = #tpu.dot_dimension_numbers<[1], [0], [0], [1], [0, 0, 1, 1], [], []>} : vector<16x6xf32>, vector<6x96xf32>, vector<16x96xf32> -> vector<16x96xf32>
    %25 = arith.addf %20, %24 : vector<16x96xf32>
    %26 = vector.extract_strided_slice %1 {offsets = [0, 12], sizes = [6, 96], strides = [1, 1]} : vector<6x148xf32> to vector<6x96xf32>
    %c5 = arith.constant 5 : index
    %c0_17 = arith.constant 0 : index
    %c0_18 = arith.constant 0 : index
    %27 = vector.load %arg2[%c5, %c0_17, %c0_18] : memref<25x16x6xf32, #tpu.memory_space<vmem>>, vector<1x16x6xf32>
    %28 = vector.shape_cast %27 : vector<1x16x6xf32> to vector<16x6xf32>
    %cst_19 = arith.constant dense<0.000000e+00> : vector<16x96xf32>
    %29 = tpu.matmul %28, %26, %cst_19 {dimension_numbers = #tpu.dot_dimension_numbers<[1], [0], [0], [1], [0, 0, 1, 1], [], []>} : vector<16x6xf32>, vector<6x96xf32>, vector<16x96xf32> -> vector<16x96xf32>
    %30 = arith.addf %25, %29 : vector<16x96xf32>
    %31 = vector.extract_strided_slice %1 {offsets = [0, 13], sizes = [6, 96], strides = [1, 1]} : vector<6x148xf32> to vector<6x96xf32>
    %c6 = arith.constant 6 : index
    %c0_20 = arith.constant 0 : index
    %c0_21 = arith.constant 0 : index
    %32 = vector.load %arg2[%c6, %c0_20, %c0_21] : memref<25x16x6xf32, #tpu.memory_space<vmem>>, vector<1x16x6xf32>
    %33 = vector.shape_cast %32 : vector<1x16x6xf32> to vector<16x6xf32>
    %cst_22 = arith.constant dense<0.000000e+00> : vector<16x96xf32>
    %34 = tpu.matmul %33, %31, %cst_22 {dimension_numbers = #tpu.dot_dimension_numbers<[1], [0], [0], [1], [0, 0, 1, 1], [], []>} : vector<16x6xf32>, vector<6x96xf32>, vector<16x96xf32> -> vector<16x96xf32>
    %35 = arith.addf %30, %34 : vector<16x96xf32>
    %36 = vector.extract_strided_slice %1 {offsets = [0, 14], sizes = [6, 96], strides = [1, 1]} : vector<6x148xf32> to vector<6x96xf32>
    %c7 = arith.constant 7 : index
    %c0_23 = arith.constant 0 : index
    %c0_24 = arith.constant 0 : index
    %37 = vector.load %arg2[%c7, %c0_23, %c0_24] : memref<25x16x6xf32, #tpu.memory_space<vmem>>, vector<1x16x6xf32>
    %38 = vector.shape_cast %37 : vector<1x16x6xf32> to vector<16x6xf32>
    %cst_25 = arith.constant dense<0.000000e+00> : vector<16x96xf32>
    %39 = tpu.matmul %38, %36, %cst_25 {dimension_numbers = #tpu.dot_dimension_numbers<[1], [0], [0], [1], [0, 0, 1, 1], [], []>} : vector<16x6xf32>, vector<6x96xf32>, vector<16x96xf32> -> vector<16x96xf32>
    %40 = arith.addf %35, %39 : vector<16x96xf32>
    %41 = vector.extract_strided_slice %1 {offsets = [0, 15], sizes = [6, 96], strides = [1, 1]} : vector<6x148xf32> to vector<6x96xf32>
    %c8 = arith.constant 8 : index
    %c0_26 = arith.constant 0 : index
    %c0_27 = arith.constant 0 : index
    %42 = vector.load %arg2[%c8, %c0_26, %c0_27] : memref<25x16x6xf32, #tpu.memory_space<vmem>>, vector<1x16x6xf32>
    %43 = vector.shape_cast %42 : vector<1x16x6xf32> to vector<16x6xf32>
    %cst_28 = arith.constant dense<0.000000e+00> : vector<16x96xf32>
    %44 = tpu.matmul %43, %41, %cst_28 {dimension_numbers = #tpu.dot_dimension_numbers<[1], [0], [0], [1], [0, 0, 1, 1], [], []>} : vector<16x6xf32>, vector<6x96xf32>, vector<16x96xf32> -> vector<16x96xf32>
    %45 = arith.addf %40, %44 : vector<16x96xf32>
    %46 = vector.extract_strided_slice %1 {offsets = [0, 16], sizes = [6, 96], strides = [1, 1]} : vector<6x148xf32> to vector<6x96xf32>
    %c9 = arith.constant 9 : index
    %c0_29 = arith.constant 0 : index
    %c0_30 = arith.constant 0 : index
    %47 = vector.load %arg2[%c9, %c0_29, %c0_30] : memref<25x16x6xf32, #tpu.memory_space<vmem>>, vector<1x16x6xf32>
    %48 = vector.shape_cast %47 : vector<1x16x6xf32> to vector<16x6xf32>
    %cst_31 = arith.constant dense<0.000000e+00> : vector<16x96xf32>
    %49 = tpu.matmul %48, %46, %cst_31 {dimension_numbers = #tpu.dot_dimension_numbers<[1], [0], [0], [1], [0, 0, 1, 1], [], []>} : vector<16x6xf32>, vector<6x96xf32>, vector<16x96xf32> -> vector<16x96xf32>
    %50 = arith.addf %45, %49 : vector<16x96xf32>
    %51 = vector.extract_strided_slice %1 {offsets = [0, 24], sizes = [6, 96], strides = [1, 1]} : vector<6x148xf32> to vector<6x96xf32>
    %c10 = arith.constant 10 : index
    %c0_32 = arith.constant 0 : index
    %c0_33 = arith.constant 0 : index
    %52 = vector.load %arg2[%c10, %c0_32, %c0_33] : memref<25x16x6xf32, #tpu.memory_space<vmem>>, vector<1x16x6xf32>
    %53 = vector.shape_cast %52 : vector<1x16x6xf32> to vector<16x6xf32>
    %cst_34 = arith.constant dense<0.000000e+00> : vector<16x96xf32>
    %54 = tpu.matmul %53, %51, %cst_34 {dimension_numbers = #tpu.dot_dimension_numbers<[1], [0], [0], [1], [0, 0, 1, 1], [], []>} : vector<16x6xf32>, vector<6x96xf32>, vector<16x96xf32> -> vector<16x96xf32>
    %55 = arith.addf %50, %54 : vector<16x96xf32>
    %56 = vector.extract_strided_slice %1 {offsets = [0, 25], sizes = [6, 96], strides = [1, 1]} : vector<6x148xf32> to vector<6x96xf32>
    %c11 = arith.constant 11 : index
    %c0_35 = arith.constant 0 : index
    %c0_36 = arith.constant 0 : index
    %57 = vector.load %arg2[%c11, %c0_35, %c0_36] : memref<25x16x6xf32, #tpu.memory_space<vmem>>, vector<1x16x6xf32>
    %58 = vector.shape_cast %57 : vector<1x16x6xf32> to vector<16x6xf32>
    %cst_37 = arith.constant dense<0.000000e+00> : vector<16x96xf32>
    %59 = tpu.matmul %58, %56, %cst_37 {dimension_numbers = #tpu.dot_dimension_numbers<[1], [0], [0], [1], [0, 0, 1, 1], [], []>} : vector<16x6xf32>, vector<6x96xf32>, vector<16x96xf32> -> vector<16x96xf32>
    %60 = arith.addf %55, %59 : vector<16x96xf32>
    %61 = vector.extract_strided_slice %1 {offsets = [0, 26], sizes = [6, 96], strides = [1, 1]} : vector<6x148xf32> to vector<6x96xf32>
    %c12 = arith.constant 12 : index
    %c0_38 = arith.constant 0 : index
    %c0_39 = arith.constant 0 : index
    %62 = vector.load %arg2[%c12, %c0_38, %c0_39] : memref<25x16x6xf32, #tpu.memory_space<vmem>>, vector<1x16x6xf32>
    %63 = vector.shape_cast %62 : vector<1x16x6xf32> to vector<16x6xf32>
    %cst_40 = arith.constant dense<0.000000e+00> : vector<16x96xf32>
    %64 = tpu.matmul %63, %61, %cst_40 {dimension_numbers = #tpu.dot_dimension_numbers<[1], [0], [0], [1], [0, 0, 1, 1], [], []>} : vector<16x6xf32>, vector<6x96xf32>, vector<16x96xf32> -> vector<16x96xf32>
    %65 = arith.addf %60, %64 : vector<16x96xf32>
    %66 = vector.extract_strided_slice %1 {offsets = [0, 27], sizes = [6, 96], strides = [1, 1]} : vector<6x148xf32> to vector<6x96xf32>
    %c13 = arith.constant 13 : index
    %c0_41 = arith.constant 0 : index
    %c0_42 = arith.constant 0 : index
    %67 = vector.load %arg2[%c13, %c0_41, %c0_42] : memref<25x16x6xf32, #tpu.memory_space<vmem>>, vector<1x16x6xf32>
    %68 = vector.shape_cast %67 : vector<1x16x6xf32> to vector<16x6xf32>
    %cst_43 = arith.constant dense<0.000000e+00> : vector<16x96xf32>
    %69 = tpu.matmul %68, %66, %cst_43 {dimension_numbers = #tpu.dot_dimension_numbers<[1], [0], [0], [1], [0, 0, 1, 1], [], []>} : vector<16x6xf32>, vector<6x96xf32>, vector<16x96xf32> -> vector<16x96xf32>
    %70 = arith.addf %65, %69 : vector<16x96xf32>
    %71 = vector.extract_strided_slice %1 {offsets = [0, 28], sizes = [6, 96], strides = [1, 1]} : vector<6x148xf32> to vector<6x96xf32>
    %c14 = arith.constant 14 : index
    %c0_44 = arith.constant 0 : index
    %c0_45 = arith.constant 0 : index
    %72 = vector.load %arg2[%c14, %c0_44, %c0_45] : memref<25x16x6xf32, #tpu.memory_space<vmem>>, vector<1x16x6xf32>
    %73 = vector.shape_cast %72 : vector<1x16x6xf32> to vector<16x6xf32>
    %cst_46 = arith.constant dense<0.000000e+00> : vector<16x96xf32>
    %74 = tpu.matmul %73, %71, %cst_46 {dimension_numbers = #tpu.dot_dimension_numbers<[1], [0], [0], [1], [0, 0, 1, 1], [], []>} : vector<16x6xf32>, vector<6x96xf32>, vector<16x96xf32> -> vector<16x96xf32>
    %75 = arith.addf %70, %74 : vector<16x96xf32>
    %76 = vector.extract_strided_slice %1 {offsets = [0, 36], sizes = [6, 96], strides = [1, 1]} : vector<6x148xf32> to vector<6x96xf32>
    %c15 = arith.constant 15 : index
    %c0_47 = arith.constant 0 : index
    %c0_48 = arith.constant 0 : index
    %77 = vector.load %arg2[%c15, %c0_47, %c0_48] : memref<25x16x6xf32, #tpu.memory_space<vmem>>, vector<1x16x6xf32>
    %78 = vector.shape_cast %77 : vector<1x16x6xf32> to vector<16x6xf32>
    %cst_49 = arith.constant dense<0.000000e+00> : vector<16x96xf32>
    %79 = tpu.matmul %78, %76, %cst_49 {dimension_numbers = #tpu.dot_dimension_numbers<[1], [0], [0], [1], [0, 0, 1, 1], [], []>} : vector<16x6xf32>, vector<6x96xf32>, vector<16x96xf32> -> vector<16x96xf32>
    %80 = arith.addf %75, %79 : vector<16x96xf32>
    %81 = vector.extract_strided_slice %1 {offsets = [0, 37], sizes = [6, 96], strides = [1, 1]} : vector<6x148xf32> to vector<6x96xf32>
    %c16 = arith.constant 16 : index
    %c0_50 = arith.constant 0 : index
    %c0_51 = arith.constant 0 : index
    %82 = vector.load %arg2[%c16, %c0_50, %c0_51] : memref<25x16x6xf32, #tpu.memory_space<vmem>>, vector<1x16x6xf32>
    %83 = vector.shape_cast %82 : vector<1x16x6xf32> to vector<16x6xf32>
    %cst_52 = arith.constant dense<0.000000e+00> : vector<16x96xf32>
    %84 = tpu.matmul %83, %81, %cst_52 {dimension_numbers = #tpu.dot_dimension_numbers<[1], [0], [0], [1], [0, 0, 1, 1], [], []>} : vector<16x6xf32>, vector<6x96xf32>, vector<16x96xf32> -> vector<16x96xf32>
    %85 = arith.addf %80, %84 : vector<16x96xf32>
    %86 = vector.extract_strided_slice %1 {offsets = [0, 38], sizes = [6, 96], strides = [1, 1]} : vector<6x148xf32> to vector<6x96xf32>
    %c17 = arith.constant 17 : index
    %c0_53 = arith.constant 0 : index
    %c0_54 = arith.constant 0 : index
    %87 = vector.load %arg2[%c17, %c0_53, %c0_54] : memref<25x16x6xf32, #tpu.memory_space<vmem>>, vector<1x16x6xf32>
    %88 = vector.shape_cast %87 : vector<1x16x6xf32> to vector<16x6xf32>
    %cst_55 = arith.constant dense<0.000000e+00> : vector<16x96xf32>
    %89 = tpu.matmul %88, %86, %cst_55 {dimension_numbers = #tpu.dot_dimension_numbers<[1], [0], [0], [1], [0, 0, 1, 1], [], []>} : vector<16x6xf32>, vector<6x96xf32>, vector<16x96xf32> -> vector<16x96xf32>
    %90 = arith.addf %85, %89 : vector<16x96xf32>
    %91 = vector.extract_strided_slice %1 {offsets = [0, 39], sizes = [6, 96], strides = [1, 1]} : vector<6x148xf32> to vector<6x96xf32>
    %c18 = arith.constant 18 : index
    %c0_56 = arith.constant 0 : index
    %c0_57 = arith.constant 0 : index
    %92 = vector.load %arg2[%c18, %c0_56, %c0_57] : memref<25x16x6xf32, #tpu.memory_space<vmem>>, vector<1x16x6xf32>
    %93 = vector.shape_cast %92 : vector<1x16x6xf32> to vector<16x6xf32>
    %cst_58 = arith.constant dense<0.000000e+00> : vector<16x96xf32>
    %94 = tpu.matmul %93, %91, %cst_58 {dimension_numbers = #tpu.dot_dimension_numbers<[1], [0], [0], [1], [0, 0, 1, 1], [], []>} : vector<16x6xf32>, vector<6x96xf32>, vector<16x96xf32> -> vector<16x96xf32>
    %95 = arith.addf %90, %94 : vector<16x96xf32>
    %96 = vector.extract_strided_slice %1 {offsets = [0, 40], sizes = [6, 96], strides = [1, 1]} : vector<6x148xf32> to vector<6x96xf32>
    %c19 = arith.constant 19 : index
    %c0_59 = arith.constant 0 : index
    %c0_60 = arith.constant 0 : index
    %97 = vector.load %arg2[%c19, %c0_59, %c0_60] : memref<25x16x6xf32, #tpu.memory_space<vmem>>, vector<1x16x6xf32>
    %98 = vector.shape_cast %97 : vector<1x16x6xf32> to vector<16x6xf32>
    %cst_61 = arith.constant dense<0.000000e+00> : vector<16x96xf32>
    %99 = tpu.matmul %98, %96, %cst_61 {dimension_numbers = #tpu.dot_dimension_numbers<[1], [0], [0], [1], [0, 0, 1, 1], [], []>} : vector<16x6xf32>, vector<6x96xf32>, vector<16x96xf32> -> vector<16x96xf32>
    %100 = arith.addf %95, %99 : vector<16x96xf32>
    %101 = vector.extract_strided_slice %1 {offsets = [0, 48], sizes = [6, 96], strides = [1, 1]} : vector<6x148xf32> to vector<6x96xf32>
    %c20 = arith.constant 20 : index
    %c0_62 = arith.constant 0 : index
    %c0_63 = arith.constant 0 : index
    %102 = vector.load %arg2[%c20, %c0_62, %c0_63] : memref<25x16x6xf32, #tpu.memory_space<vmem>>, vector<1x16x6xf32>
    %103 = vector.shape_cast %102 : vector<1x16x6xf32> to vector<16x6xf32>
    %cst_64 = arith.constant dense<0.000000e+00> : vector<16x96xf32>
    %104 = tpu.matmul %103, %101, %cst_64 {dimension_numbers = #tpu.dot_dimension_numbers<[1], [0], [0], [1], [0, 0, 1, 1], [], []>} : vector<16x6xf32>, vector<6x96xf32>, vector<16x96xf32> -> vector<16x96xf32>
    %105 = arith.addf %100, %104 : vector<16x96xf32>
    %106 = vector.extract_strided_slice %1 {offsets = [0, 49], sizes = [6, 96], strides = [1, 1]} : vector<6x148xf32> to vector<6x96xf32>
    %c21 = arith.constant 21 : index
    %c0_65 = arith.constant 0 : index
    %c0_66 = arith.constant 0 : index
    %107 = vector.load %arg2[%c21, %c0_65, %c0_66] : memref<25x16x6xf32, #tpu.memory_space<vmem>>, vector<1x16x6xf32>
    %108 = vector.shape_cast %107 : vector<1x16x6xf32> to vector<16x6xf32>
    %cst_67 = arith.constant dense<0.000000e+00> : vector<16x96xf32>
    %109 = tpu.matmul %108, %106, %cst_67 {dimension_numbers = #tpu.dot_dimension_numbers<[1], [0], [0], [1], [0, 0, 1, 1], [], []>} : vector<16x6xf32>, vector<6x96xf32>, vector<16x96xf32> -> vector<16x96xf32>
    %110 = arith.addf %105, %109 : vector<16x96xf32>
    %111 = vector.extract_strided_slice %1 {offsets = [0, 50], sizes = [6, 96], strides = [1, 1]} : vector<6x148xf32> to vector<6x96xf32>
    %c22 = arith.constant 22 : index
    %c0_68 = arith.constant 0 : index
    %c0_69 = arith.constant 0 : index
    %112 = vector.load %arg2[%c22, %c0_68, %c0_69] : memref<25x16x6xf32, #tpu.memory_space<vmem>>, vector<1x16x6xf32>
    %113 = vector.shape_cast %112 : vector<1x16x6xf32> to vector<16x6xf32>
    %cst_70 = arith.constant dense<0.000000e+00> : vector<16x96xf32>
    %114 = tpu.matmul %113, %111, %cst_70 {dimension_numbers = #tpu.dot_dimension_numbers<[1], [0], [0], [1], [0, 0, 1, 1], [], []>} : vector<16x6xf32>, vector<6x96xf32>, vector<16x96xf32> -> vector<16x96xf32>
    %115 = arith.addf %110, %114 : vector<16x96xf32>
    %116 = vector.extract_strided_slice %1 {offsets = [0, 51], sizes = [6, 96], strides = [1, 1]} : vector<6x148xf32> to vector<6x96xf32>
    %c23 = arith.constant 23 : index
    %c0_71 = arith.constant 0 : index
    %c0_72 = arith.constant 0 : index
    %117 = vector.load %arg2[%c23, %c0_71, %c0_72] : memref<25x16x6xf32, #tpu.memory_space<vmem>>, vector<1x16x6xf32>
    %118 = vector.shape_cast %117 : vector<1x16x6xf32> to vector<16x6xf32>
    %cst_73 = arith.constant dense<0.000000e+00> : vector<16x96xf32>
    %119 = tpu.matmul %118, %116, %cst_73 {dimension_numbers = #tpu.dot_dimension_numbers<[1], [0], [0], [1], [0, 0, 1, 1], [], []>} : vector<16x6xf32>, vector<6x96xf32>, vector<16x96xf32> -> vector<16x96xf32>
    %120 = arith.addf %115, %119 : vector<16x96xf32>
    %121 = vector.extract_strided_slice %1 {offsets = [0, 52], sizes = [6, 96], strides = [1, 1]} : vector<6x148xf32> to vector<6x96xf32>
    %c24 = arith.constant 24 : index
    %c0_74 = arith.constant 0 : index
    %c0_75 = arith.constant 0 : index
    %122 = vector.load %arg2[%c24, %c0_74, %c0_75] : memref<25x16x6xf32, #tpu.memory_space<vmem>>, vector<1x16x6xf32>
    %123 = vector.shape_cast %122 : vector<1x16x6xf32> to vector<16x6xf32>
    %cst_76 = arith.constant dense<0.000000e+00> : vector<16x96xf32>
    %124 = tpu.matmul %123, %121, %cst_76 {dimension_numbers = #tpu.dot_dimension_numbers<[1], [0], [0], [1], [0, 0, 1, 1], [], []>} : vector<16x6xf32>, vector<6x96xf32>, vector<16x96xf32> -> vector<16x96xf32>
    %125 = arith.addf %120, %124 : vector<16x96xf32>
    %c0_77 = arith.constant 0 : index
    %c0_78 = arith.constant 0 : index
    %126 = vector.load %arg3[%c0_77, %c0_78] : memref<16x1xf32, #tpu.memory_space<vmem>>, vector<16x1xf32>
    %127 = vector.broadcast %126 : vector<16x1xf32> to vector<16x96xf32>
    %128 = arith.addf %125, %127 : vector<16x96xf32>
    %c0_79 = arith.constant 0 : index
    %c0_80 = arith.constant 0 : index
    %c0_81 = arith.constant 0 : index
    %129 = vector.load %arg4[%c0_79, %c0_80, %c0_81] : memref<4x96x16xf32, #tpu.memory_space<vmem>>, vector<1x96x16xf32>
    %130 = vector.shape_cast %129 : vector<1x96x16xf32> to vector<96x16xf32>
    %cst_82 = arith.constant dense<0.000000e+00> : vector<16x16xf32>
    %131 = tpu.matmul %128, %130, %cst_82 {dimension_numbers = #tpu.dot_dimension_numbers<[1], [0], [0], [1], [0, 0, 1, 1], [], []>} : vector<16x96xf32>, vector<96x16xf32>, vector<16x16xf32> -> vector<16x16xf32>
    %c1_83 = arith.constant 1 : index
    %c0_84 = arith.constant 0 : index
    %c0_85 = arith.constant 0 : index
    %132 = vector.load %arg4[%c1_83, %c0_84, %c0_85] : memref<4x96x16xf32, #tpu.memory_space<vmem>>, vector<1x96x16xf32>
    %133 = vector.shape_cast %132 : vector<1x96x16xf32> to vector<96x16xf32>
    %cst_86 = arith.constant dense<0.000000e+00> : vector<16x16xf32>
    %134 = tpu.matmul %128, %133, %cst_86 {dimension_numbers = #tpu.dot_dimension_numbers<[1], [0], [0], [1], [0, 0, 1, 1], [], []>} : vector<16x96xf32>, vector<96x16xf32>, vector<16x16xf32> -> vector<16x16xf32>
    %135 = arith.maximumf %131, %134 : vector<16x16xf32>
    %c2_87 = arith.constant 2 : index
    %c0_88 = arith.constant 0 : index
    %c0_89 = arith.constant 0 : index
    %136 = vector.load %arg4[%c2_87, %c0_88, %c0_89] : memref<4x96x16xf32, #tpu.memory_space<vmem>>, vector<1x96x16xf32>
    %137 = vector.shape_cast %136 : vector<1x96x16xf32> to vector<96x16xf32>
    %cst_90 = arith.constant dense<0.000000e+00> : vector<16x16xf32>
    %138 = tpu.matmul %128, %137, %cst_90 {dimension_numbers = #tpu.dot_dimension_numbers<[1], [0], [0], [1], [0, 0, 1, 1], [], []>} : vector<16x96xf32>, vector<96x16xf32>, vector<16x16xf32> -> vector<16x16xf32>
    %139 = arith.maximumf %135, %138 : vector<16x16xf32>
    %c3_91 = arith.constant 3 : index
    %c0_92 = arith.constant 0 : index
    %c0_93 = arith.constant 0 : index
    %140 = vector.load %arg4[%c3_91, %c0_92, %c0_93] : memref<4x96x16xf32, #tpu.memory_space<vmem>>, vector<1x96x16xf32>
    %141 = vector.shape_cast %140 : vector<1x96x16xf32> to vector<96x16xf32>
    %cst_94 = arith.constant dense<0.000000e+00> : vector<16x16xf32>
    %142 = tpu.matmul %128, %141, %cst_94 {dimension_numbers = #tpu.dot_dimension_numbers<[1], [0], [0], [1], [0, 0, 1, 1], [], []>} : vector<16x96xf32>, vector<96x16xf32>, vector<16x16xf32> -> vector<16x16xf32>
    %143 = arith.maximumf %139, %142 : vector<16x16xf32>
    %cst_95 = arith.constant 0.000000e+00 : f32
    %144 = vector.broadcast %cst_95 : f32 to vector<16x16xf32>
    %145 = arith.maximumf %143, %144 : vector<16x16xf32>
    %c0_96 = arith.constant 0 : index
    %c0_97 = arith.constant 0 : index
    %c0_98 = arith.constant 0 : index
    %146 = vector.load %arg5[%c0_96, %c0_97, %c0_98] : memref<1x16x16xf32, #tpu.memory_space<vmem>>, vector<1x16x16xf32>
    %147 = vector.shape_cast %146 : vector<1x16x16xf32> to vector<16x16xf32>
    %148 = vector.shape_cast %145 : vector<16x16xf32> to vector<1x16x16xf32>
    tpu.vector_store %arg5[%c0_96, %c0_97, %c0_98], %148 {strides = array<i32>} : memref<1x16x16xf32, #tpu.memory_space<vmem>>, vector<1x16x16xf32>,
    return
  }
  func.func @transform_0(%arg0: i32) -> (i32, i32, i32) {
    %c0_i32 = arith.constant 0 : i32
    %c0_i32_0 = arith.constant 0 : i32
    %c0_i32_1 = arith.constant 0 : i32
    return %arg0, %c0_i32, %c0_i32_0 : i32, i32, i32
  }
  func.func @transform_1(%arg0: i32) -> (i32, i32, i32) {
    %c0_i32 = arith.constant 0 : i32
    %c0_i32_0 = arith.constant 0 : i32
    %c0_i32_1 = arith.constant 0 : i32
    %c0_i32_2 = arith.constant 0 : i32
    return %c0_i32, %c0_i32_0, %c0_i32_1 : i32, i32, i32
  }
  func.func @transform_2(%arg0: i32) -> (i32, i32) {
    %c0_i32 = arith.constant 0 : i32
    %c0_i32_0 = arith.constant 0 : i32
    %c0_i32_1 = arith.constant 0 : i32
    return %c0_i32, %c0_i32_0 : i32, i32
  }
  func.func @transform_3(%arg0: i32) -> (i32, i32, i32) {
    %c0_i32 = arith.constant 0 : i32
    %c0_i32_0 = arith.constant 0 : i32
    %c0_i32_1 = arith.constant 0 : i32
    %c0_i32_2 = arith.constant 0 : i32
    return %c0_i32, %c0_i32_0, %c0_i32_1 : i32, i32, i32
  }
  func.func @transform_4(%arg0: i32) -> (i32, i32, i32) {
    %c0_i32 = arith.constant 0 : i32
    %c0_i32_0 = arith.constant 0 : i32
    %c0_i32_1 = arith.constant 0 : i32
    return %arg0, %c0_i32, %c0_i32_0 : i32, i32, i32
  }
}

module attributes {stable_mosaic.version = 11 : i64} {
  func.func @_fc_fused_kernel(%arg0: i32, %arg1: memref<2x256xf32, #tpu.memory_space<vmem>>, %arg2: memref<256x120xf32, #tpu.memory_space<vmem>>, %arg3: memref<1x120xf32, #tpu.memory_space<vmem>>, %arg4: memref<120x84xf32, #tpu.memory_space<vmem>>, %arg5: memref<1x84xf32, #tpu.memory_space<vmem>>, %arg6: memref<84x10xf32, #tpu.memory_space<vmem>>, %arg7: memref<1x10xf32, #tpu.memory_space<vmem>>, %arg8: memref<2x10xf32, #tpu.memory_space<vmem>>) attributes {dimension_semantics = [#tpu.dimension_semantics<parallel>], iteration_bounds = array<i64: 1>, scalar_prefetch = 0 : i64, scratch_operands = 0 : i64, tpu.core_type = #tpu.core_type<tc>, window_params = [{transform_indices = @transform_0, window_bounds = array<i64: 2, 256>}, {pipeline_mode = #tpu.pipeline_mode<synchronous>, transform_indices = @transform_1, window_bounds = array<i64: 256, 120>}, {pipeline_mode = #tpu.pipeline_mode<synchronous>, transform_indices = @transform_2, window_bounds = array<i64: 1, 120>}, {pipeline_mode = #tpu.pipeline_mode<synchronous>, transform_indices = @transform_3, window_bounds = array<i64: 120, 84>}, {pipeline_mode = #tpu.pipeline_mode<synchronous>, transform_indices = @transform_4, window_bounds = array<i64: 1, 84>}, {pipeline_mode = #tpu.pipeline_mode<synchronous>, transform_indices = @transform_5, window_bounds = array<i64: 84, 10>}, {pipeline_mode = #tpu.pipeline_mode<synchronous>, transform_indices = @transform_6, window_bounds = array<i64: 1, 10>}, {transform_indices = @transform_7, window_bounds = array<i64: 2, 10>}]} {
    %c0 = arith.constant 0 : index
    %c0_0 = arith.constant 0 : index
    %0 = vector.load %arg1[%c0, %c0_0] : memref<2x256xf32, #tpu.memory_space<vmem>>, vector<2x256xf32>
    %c0_1 = arith.constant 0 : index
    %c0_2 = arith.constant 0 : index
    %1 = vector.load %arg2[%c0_1, %c0_2] : memref<256x120xf32, #tpu.memory_space<vmem>>, vector<256x120xf32>
    %cst = arith.constant dense<0.000000e+00> : vector<2x120xf32>
    %2 = tpu.matmul %0, %1, %cst {dimension_numbers = #tpu.dot_dimension_numbers<[1], [0], [0], [1], [0, 0, 1, 1], [], []>} : vector<2x256xf32>, vector<256x120xf32>, vector<2x120xf32> -> vector<2x120xf32>
    %c0_3 = arith.constant 0 : index
    %c0_4 = arith.constant 0 : index
    %3 = vector.load %arg3[%c0_3, %c0_4] : memref<1x120xf32, #tpu.memory_space<vmem>>, vector<1x120xf32>
    %4 = vector.broadcast %3 : vector<1x120xf32> to vector<2x120xf32>
    %5 = arith.addf %2, %4 : vector<2x120xf32>
    %cst_5 = arith.constant 0.000000e+00 : f32
    %6 = vector.broadcast %cst_5 : f32 to vector<2x120xf32>
    %7 = arith.maximumf %5, %6 : vector<2x120xf32>
    %c0_6 = arith.constant 0 : index
    %c0_7 = arith.constant 0 : index
    %8 = vector.load %arg4[%c0_6, %c0_7] : memref<120x84xf32, #tpu.memory_space<vmem>>, vector<120x84xf32>
    %cst_8 = arith.constant dense<0.000000e+00> : vector<2x84xf32>
    %9 = tpu.matmul %7, %8, %cst_8 {dimension_numbers = #tpu.dot_dimension_numbers<[1], [0], [0], [1], [0, 0, 1, 1], [], []>} : vector<2x120xf32>, vector<120x84xf32>, vector<2x84xf32> -> vector<2x84xf32>
    %c0_9 = arith.constant 0 : index
    %c0_10 = arith.constant 0 : index
    %10 = vector.load %arg5[%c0_9, %c0_10] : memref<1x84xf32, #tpu.memory_space<vmem>>, vector<1x84xf32>
    %11 = vector.broadcast %10 : vector<1x84xf32> to vector<2x84xf32>
    %12 = arith.addf %9, %11 : vector<2x84xf32>
    %cst_11 = arith.constant 0.000000e+00 : f32
    %13 = vector.broadcast %cst_11 : f32 to vector<2x84xf32>
    %14 = arith.maximumf %12, %13 : vector<2x84xf32>
    %c0_12 = arith.constant 0 : index
    %c0_13 = arith.constant 0 : index
    %15 = vector.load %arg6[%c0_12, %c0_13] : memref<84x10xf32, #tpu.memory_space<vmem>>, vector<84x10xf32>
    %cst_14 = arith.constant dense<0.000000e+00> : vector<2x10xf32>
    %16 = tpu.matmul %14, %15, %cst_14 {dimension_numbers = #tpu.dot_dimension_numbers<[1], [0], [0], [1], [0, 0, 1, 1], [], []>} : vector<2x84xf32>, vector<84x10xf32>, vector<2x10xf32> -> vector<2x10xf32>
    %c0_15 = arith.constant 0 : index
    %c0_16 = arith.constant 0 : index
    %17 = vector.load %arg7[%c0_15, %c0_16] : memref<1x10xf32, #tpu.memory_space<vmem>>, vector<1x10xf32>
    %18 = vector.broadcast %17 : vector<1x10xf32> to vector<2x10xf32>
    %19 = arith.addf %16, %18 : vector<2x10xf32>
    %cst_17 = arith.constant 0.000000e+00 : f32
    %20 = vector.broadcast %cst_17 : f32 to vector<2x10xf32>
    %21 = arith.maximumf %19, %20 : vector<2x10xf32>
    %c0_18 = arith.constant 0 : index
    %c0_19 = arith.constant 0 : index
    %22 = vector.load %arg8[%c0_18, %c0_19] : memref<2x10xf32, #tpu.memory_space<vmem>>, vector<2x10xf32>
    tpu.vector_store %arg8[%c0_18, %c0_19], %21 {strides = array<i32>} : memref<2x10xf32, #tpu.memory_space<vmem>>, vector<2x10xf32>,
    return
  }
  func.func @transform_0(%arg0: i32) -> (i32, i32) {
    %c0_i32 = arith.constant 0 : i32
    %c0_i32_0 = arith.constant 0 : i32
    return %arg0, %c0_i32 : i32, i32
  }
  func.func @transform_1(%arg0: i32) -> (i32, i32) {
    %c0_i32 = arith.constant 0 : i32
    %c0_i32_0 = arith.constant 0 : i32
    %c0_i32_1 = arith.constant 0 : i32
    return %c0_i32, %c0_i32_0 : i32, i32
  }
  func.func @transform_2(%arg0: i32) -> (i32, i32) {
    %c0_i32 = arith.constant 0 : i32
    %c0_i32_0 = arith.constant 0 : i32
    %c0_i32_1 = arith.constant 0 : i32
    return %c0_i32, %c0_i32_0 : i32, i32
  }
  func.func @transform_3(%arg0: i32) -> (i32, i32) {
    %c0_i32 = arith.constant 0 : i32
    %c0_i32_0 = arith.constant 0 : i32
    %c0_i32_1 = arith.constant 0 : i32
    return %c0_i32, %c0_i32_0 : i32, i32
  }
  func.func @transform_4(%arg0: i32) -> (i32, i32) {
    %c0_i32 = arith.constant 0 : i32
    %c0_i32_0 = arith.constant 0 : i32
    %c0_i32_1 = arith.constant 0 : i32
    return %c0_i32, %c0_i32_0 : i32, i32
  }
  func.func @transform_5(%arg0: i32) -> (i32, i32) {
    %c0_i32 = arith.constant 0 : i32
    %c0_i32_0 = arith.constant 0 : i32
    %c0_i32_1 = arith.constant 0 : i32
    return %c0_i32, %c0_i32_0 : i32, i32
  }
  func.func @transform_6(%arg0: i32) -> (i32, i32) {
    %c0_i32 = arith.constant 0 : i32
    %c0_i32_0 = arith.constant 0 : i32
    %c0_i32_1 = arith.constant 0 : i32
    return %c0_i32, %c0_i32_0 : i32, i32
  }
  func.func @transform_7(%arg0: i32) -> (i32, i32) {
    %c0_i32 = arith.constant 0 : i32
    %c0_i32_0 = arith.constant 0 : i32
    return %arg0, %c0_i32 : i32, i32
  }
}

</mosaic_0001>

<llo_original>
// kernel: forward.4
$region0: #{forward.4}
  #allocation0 [shape = 'u32[]', space=smem, size = 0x4, offset = 0x4, fixed_abs, tag = 'smem constant byte address 0x4 - core index']
  #allocation1 [shape = 'u32[72,128]{1,0:T(1,128)}', space=vmem, size = 0x9000, scoped, tag = 'internal scratch']
  %s0 = inlined_call_operand.vmem [shape: f32[2,6,148], index: 0, kind: input, shape index: {}]
  %s1 = inlined_call_operand.vmem [shape: f32[25,16,6], index: 1, kind: input, shape index: {}]
  %s2 = inlined_call_operand.vmem [shape: f32[16,1], index: 2, kind: input, shape index: {}]
  %s3 = inlined_call_operand.vmem [shape: f32[4,96,16], index: 3, kind: input, shape index: {}]
  %s4 = inlined_call_operand.vmem [shape: f32[2,16,16], index: 4, kind: output, shape index: {}]
  %s5 = sld [smem:[#allocation0]]
  $region49: #{forward.4} parent=0
    _
  %s7 = ssub.s32 1, %s5
  %s8 = scalar_select 0, %s7, %s5
  loop: start=0, step=1, limit=4
  $region2: #{forward.4} parent=0 // loop_pre_header
    _
  $region3: #{forward.4} parent=0 // loop_header
    %s10 = sphi 0, %s14
    %p11 = scmp.ge.s32.totalorder %s10, 4
    %s20 = sphi 0, %s22
    %s23 = sphi 0, %s20
    %s24 = sphi 0, %s23
    %s40 = sphi 0, %s24
    %s44 = sphi 0, %s44
    %s46 = sphi 0, %s44
    %s47 = sphi 0, %s46
    %s61 = sphi 0, %s47
    %s65 = sphi 0, %s65
    %s67 = sphi 0, %s65
    %s68 = sphi 0, %s67
    %s82 = sphi 0, %s68
    %s86 = sphi 0, %s86
    %s88 = sphi 0, %s86
    %s89 = sphi 0, %s88
    %s103 = sphi 0, %s89
    %s109 = sphi 0, %s111
    %s112 = sphi 0, %s109
    %s113 = sphi 0, %s112
    %s129 = sphi 0, %s113
  $region4: #{forward.4} parent=0 // loop_header_branch
    %13 = sbr.rel (%p11) target = $region8
  $region5: #{forward.4} parent=0 // loop_body
    %s15 = ssub.s32 %s10, 1
    %s16 = ssub.s32 %s10, 2
    %s17 = sadd.s32 %s10, 1
    %s18 = ssub.s32 %s10, %s17
    %p19 = scmp.eq.s32.totalorder %s18, 0
    %s21 = sadd.s32 %s20, 1
    %s22 = scalar_select %p19, %s20, %s21
    %p25 = pneg %p19
    %p26 = scmp.eq.s32.totalorder %s10, 1
    %p27 = por %p25, %p26
    %p28 = scmp.ne.s32.totalorder %s20, %s23
    %p29 = scmp.eq.s32.totalorder %s10, 0
    %p30 = por %p28, %p29
    %p31 = scmp.ne.s32.totalorder %s20, %s23
    %p32 = scmp.eq.s32.totalorder %s15, 1
    %p33 = por %p31, %p32
    %p34 = scmp.ne.s32.totalorder %s23, %s24
    %p35 = scmp.eq.s32.totalorder %s15, 0
    %p36 = por %p34, %p35
    %p37 = scmp.ne.s32.totalorder %s23, %s24
    %p38 = scmp.eq.s32.totalorder %s16, 1
    %p39 = por %p37, %p38
    %p41 = scmp.ne.s32.totalorder %s24, %s40
    %p42 = scmp.eq.s32.totalorder %s16, 0
    %p43 = por %p41, %p42
    %s45 = sadd.s32 %s44, 1
    %p48 = scmp.eq.s32.totalorder %s10, 1
    %p49 = scmp.ne.s32.totalorder %s44, %s46
    %p50 = scmp.eq.s32.totalorder %s10, 0
    %p51 = por %p49, %p50
    %p52 = scmp.ne.s32.totalorder %s44, %s46
    %p53 = scmp.eq.s32.totalorder %s15, 1
    %p54 = por %p52, %p53
    %p55 = scmp.ne.s32.totalorder %s46, %s47
    %p56 = scmp.eq.s32.totalorder %s15, 0
    %p57 = por %p55, %p56
    %p58 = scmp.ne.s32.totalorder %s46, %s47
    %p59 = scmp.eq.s32.totalorder %s16, 1
    %p60 = por %p58, %p59
    %p62 = scmp.ne.s32.totalorder %s47, %s61
    %p63 = scmp.eq.s32.totalorder %s16, 0
    %p64 = por %p62, %p63
    %s66 = sadd.s32 %s65, 1
    %p69 = scmp.eq.s32.totalorder %s10, 1
    %p70 = scmp.ne.s32.totalorder %s65, %s67
    %p71 = scmp.eq.s32.totalorder %s10, 0
    %p72 = por %p70, %p71
    %p73 = scmp.ne.s32.totalorder %s65, %s67
    %p74 = scmp.eq.s32.totalorder %s15, 1
    %p75 = por %p73, %p74
    %p76 = scmp.ne.s32.totalorder %s67, %s68
    %p77 = scmp.eq.s32.totalorder %s15, 0
    %p78 = por %p76, %p77
    %p79 = scmp.ne.s32.totalorder %s67, %s68
    %p80 = scmp.eq.s32.totalorder %s16, 1
    %p81 = por %p79, %p80
    %p83 = scmp.ne.s32.totalorder %s68, %s82
    %p84 = scmp.eq.s32.totalorder %s16, 0
    %p85 = por %p83, %p84
    %s87 = sadd.s32 %s86, 1
    %p90 = scmp.eq.s32.totalorder %s10, 1
    %p91 = scmp.ne.s32.totalorder %s86, %s88
    %p92 = scmp.eq.s32.totalorder %s10, 0
    %p93 = por %p91, %p92
    %p94 = scmp.ne.s32.totalorder %s86, %s88
    %p95 = scmp.eq.s32.totalorder %s15, 1
    %p96 = por %p94, %p95
    %p97 = scmp.ne.s32.totalorder %s88, %s89
    %p98 = scmp.eq.s32.totalorder %s15, 0
    %p99 = por %p97, %p98
    %p100 = scmp.ne.s32.totalorder %s88, %s89
    %p101 = scmp.eq.s32.totalorder %s16, 1
    %p102 = por %p100, %p101
    %p104 = scmp.ne.s32.totalorder %s89, %s103
    %p105 = scmp.eq.s32.totalorder %s16, 0
    %p106 = por %p104, %p105
    %s107 = ssub.s32 %s10, %s17
    %p108 = scmp.eq.s32.totalorder %s107, 0
    %s110 = sadd.s32 %s109, 1
    %s111 = scalar_select %p108, %s109, %s110
    %p114 = pneg %p108
    %p115 = scmp.eq.s32.totalorder %s10, 1
    %p116 = por %p114, %p115
    %p117 = scmp.ne.s32.totalorder %s109, %s112
    %p118 = scmp.eq.s32.totalorder %s10, 0
    %p119 = por %p117, %p118
    %p120 = scmp.ne.s32.totalorder %s109, %s112
    %p121 = scmp.eq.s32.totalorder %s15, 1
    %p122 = por %p120, %p121
    %p123 = scmp.ne.s32.totalorder %s112, %s113
    %p124 = scmp.eq.s32.totalorder %s15, 0
    %p125 = por %p123, %p124
    %p126 = scmp.ne.s32.totalorder %s112, %s113
    %p127 = scmp.eq.s32.totalorder %s16, 1
    %p128 = por %p126, %p127
    %p130 = scmp.ne.s32.totalorder %s113, %s129
    %p131 = scmp.eq.s32.totalorder %s16, 0
    %p132 = por %p130, %p131
    %p133 = scmp.le.s32.totalorder 1, %s10
    %p134 = scmp.lt.s32.totalorder %s10, 3
    %p135 = pnand %p133, %p134
    %p136 = pneg %p135
    // Predicated region
    $region9: #{forward.4} parent=5 // pred_check
      _
    $region10: #{forward.4} parent=5 // pred_check_branch
      %138 = sbr.rel (%p135) target = $region12
    $region11: #{forward.4} parent=5 // pred_region
      %s139 = ssub.s32 %s10, 1
      // Predicated region
      $region13: #{forward.4} parent=11 // pred_check
        %p140 = pneg %p57
      $region14: #{forward.4} parent=11 // pred_check_branch
        %142 = sbr.rel (%p140) target = $region16
      $region15: #{forward.4} parent=11 // pred_region
        _
      $region16: #{forward.4} parent=11 // pred_fallthru
        _
      // Predicated region
      $region17: #{forward.4} parent=11 // pred_check
        %p143 = pneg %p78
      $region18: #{forward.4} parent=11 // pred_check_branch
        %145 = sbr.rel (%p143) target = $region20
      $region19: #{forward.4} parent=11 // pred_region
        _
      $region20: #{forward.4} parent=11 // pred_fallthru
        _
      // Predicated region
      $region21: #{forward.4} parent=11 // pred_check
        %p146 = pneg %p99
      $region22: #{forward.4} parent=11 // pred_check_branch
        %148 = sbr.rel (%p146) target = $region24
      $region23: #{forward.4} parent=11 // pred_region
        _
      $region24: #{forward.4} parent=11 // pred_fallthru
        _
    $region12: #{forward.4} parent=5 // pred_fallthru
      _
    %p149 = scmp.lt.s32.totalorder %s10, 2
    // Predicated region
    $region25: #{forward.4} parent=5 // pred_check
      %p150 = pneg %p149
    $region26: #{forward.4} parent=5 // pred_check_branch
      %152 = sbr.rel (%p150) target = $region28
    $region27: #{forward.4} parent=5 // pred_region
      // Predicated region
      $region29: #{forward.4} parent=27 // pred_check
        %p153 = pneg %p30
      $region30: #{forward.4} parent=27 // pred_check_branch
        %155 = sbr.rel (%p153) target = $region32
      $region31: #{forward.4} parent=27 // pred_region
        %p156 = scmp.lt.s32.totalorder %s10, 1
        %s157 = scalar_select %p156, %s10, 1
        %s158 = smul.addr %s157, 2
        %s159 = smul.addr %s158, 8
        %s160 = scalar_lea.vmem %s0, %s159
      $region32: #{forward.4} parent=27 // pred_fallthru
        _
    $region28: #{forward.4} parent=5 // pred_fallthru
      _
    %p161 = scmp.le.s32.totalorder 1, %s10
    %p162 = scmp.lt.s32.totalorder %s10, 3
    %p163 = pnand %p161, %p162
    %p164 = pneg %p163
    // Predicated region
    $region33: #{forward.4} parent=5 // pred_check
      _
    $region34: #{forward.4} parent=5 // pred_check_branch
      %166 = sbr.rel (%p163) target = $region36
    $region35: #{forward.4} parent=5 // pred_region
      %s167 = ssub.s32 %s10, 1
      %p168 = scmp.lt.s32.totalorder %s15, 1
      %s169 = scalar_select %p168, %s15, 1
      %s170 = smul.addr %s169, 2
      %s171 = smul.addr %s170, 8
      %s172 = scalar_lea.vmem %s0, %s171
      %p173 = pneg %p36
      %p174 = pneg %p33
      %p175 = pneg %p57
      %p176 = pneg %p54
      %p177 = pneg %p78
      %p178 = pneg %p75
      %p179 = pneg %p99
      %p180 = pneg %p96
      %p181 = pneg %p125
      %p182 = pneg %p122
      %p183 = scmp.lt.s32.totalorder %s15, 1
      %s184 = scalar_select %p183, %s15, 1
      %s185 = smul.addr %s184, 2
      %s186 = smul.addr %s185, 8
      %s187 = scalar_lea.vmem %s4, %s186
      %p188 = scmp.lt.s32.totalorder %s15, 1
      %s189 = scalar_select %p188, %s15, 1
      %s190 = smul.addr %s189, 2
      %s191 = smul.addr %s190, 8
      %s192 = scalar_lea.vmem %s0, %s191
      %p193 = scmp.lt.s32.totalorder %s15, 1
      %s194 = scalar_select %p193, %s15, 1
      %s195 = smul.addr %s194, 2
      %s196 = smul.addr %s195, 8
      %s197 = scalar_lea.vmem %s4, %s196
      %v198 = vld [vmem:[%s192] sm:$0x3f]
      %v199 = vld [vmem:[%s192 + $0x8] sm:$0x3f]
      %v200 = vld [vmem:[%s1] sm:$0xff]
      %v201 = vld [vmem:[%s1 + $0x8] sm:$0xff]
      %s202 = scalar_lea.vmem %s1, 16
      %v203 = vld [vmem:[%s202] sm:$0xff]
      %v204 = vld [vmem:[%s202 + $0x8] sm:$0xff]
      %206 = vrot.lane.b32.xlu0 %v198, 127
      %v207 = vpop.permute.xlu0 %206
      %vm208 = vcmask 48128
      %v210 = vsel %vm208, %v203, 0
      %v213 = vsel %vm208, %v204, 0
      %vm215 = vcmask 1045504
      %v216 = vsel %vm215, %v207, 0
      %218 = vmatpush.msra.mxu0 0.0
      %219 = vmatpush.msra.mxu0 0.0
      %220 = vmatpush.msra.mxu0 0.0
      %221 = vmatpush.msra.mxu0 0.0
      %222 = vmatpush.msra.mxu0 0.0
      %223 = vmatpush.msra.mxu0 0.0
      %224 = vmatpush.msra.mxu0 0.0
      %225 = vmatpush.msra.mxu0 0.0
      %226 = vmatpush.msra.mxu0 0.0
      %227 = vmatpush.msra.mxu0 0.0
      %228 = vmatpush.msra.mxu0 0.0
      %229 = vmatpush.msra.mxu0 0.0
      %230 = vmatpush.msra.mxu0 0.0
      %231 = vmatpush.msra.mxu0 0.0
      %232 = vmatpush.msra.mxu0 0.0
      %233 = vmatpush.msra.mxu0 %v216
      %234 = vmatmul.f32.gmra.mxu0 %v210
      %v235 = vpop.f32.mrf.mxu0
      %v236 = vadd.f32 0.0, %v235
      %237 = vmatmul.f32.gmra.mxu0 %v213
      %v238 = vpop.f32.mrf.mxu0
      %v239 = vadd.f32 0.0, %v238
      %240 = vdwg.mxu0
      %v242 = vsel %vm208, %v200, 0
      %v245 = vsel %vm208, %v201, 0
      %v247 = vsel %vm215, %v198, 0
      %249 = vmatpush.msra.mxu0 0.0
      %250 = vmatpush.msra.mxu0 0.0
      %251 = vmatpush.msra.mxu0 0.0
      %252 = vmatpush.msra.mxu0 0.0
      %253 = vmatpush.msra.mxu0 0.0
      %254 = vmatpush.msra.mxu0 0.0
      %255 = vmatpush.msra.mxu0 0.0
      %256 = vmatpush.msra.mxu0 0.0
      %257 = vmatpush.msra.mxu0 0.0
      %258 = vmatpush.msra.mxu0 0.0
      %259 = vmatpush.msra.mxu0 0.0
      %260 = vmatpush.msra.mxu0 0.0
      %261 = vmatpush.msra.mxu0 0.0
      %262 = vmatpush.msra.mxu0 0.0
      %263 = vmatpush.msra.mxu0 0.0
      %264 = vmatpush.msra.mxu0 %v247
      %265 = vmatmul.f32.gmra.mxu0 %v242
      %v266 = vpop.f32.mrf.mxu0
      %v267 = vadd.f32 %v236, %v266
      %268 = vmatmul.f32.gmra.mxu0 %v245
      %v269 = vpop.f32.mrf.mxu0
      %v270 = vadd.f32 %v239, %v269
      %271 = vdwg.mxu0
      %s272 = scalar_lea.vmem %s1, 32
      %v273 = vld [vmem:[%s272] sm:$0xff]
      %v274 = vld [vmem:[%s272 + $0x8] sm:$0xff]
      %275 = vrot.lane.b32.xlu0 %v198, 126
      %v276 = vpop.permute.xlu0 %275
      %v278 = vsel %vm208, %v273, 0
      %v281 = vsel %vm208, %v274, 0
      %v283 = vsel %vm215, %v276, 0
      %285 = vmatpush.msra.mxu0 0.0
      %286 = vmatpush.msra.mxu0 0.0
      %287 = vmatpush.msra.mxu0 0.0
      %288 = vmatpush.msra.mxu0 0.0
      %289 = vmatpush.msra.mxu0 0.0
      %290 = vmatpush.msra.mxu0 0.0
      %291 = vmatpush.msra.mxu0 0.0
      %292 = vmatpush.msra.mxu0 0.0
      %293 = vmatpush.msra.mxu0 0.0
      %294 = vmatpush.msra.mxu0 0.0
      %295 = vmatpush.msra.mxu0 0.0
      %296 = vmatpush.msra.mxu0 0.0
      %297 = vmatpush.msra.mxu0 0.0
      %298 = vmatpush.msra.mxu0 0.0
      %299 = vmatpush.msra.mxu0 0.0
      %300 = vmatpush.msra.mxu0 %v283
      %301 = vmatmul.f32.gmra.mxu0 %v278
      %v302 = vpop.f32.mrf.mxu0
      %v303 = vadd.f32 0.0, %v302
      %304 = vmatmul.f32.gmra.mxu0 %v281
      %v305 = vpop.f32.mrf.mxu0
      %v306 = vadd.f32 0.0, %v305
      %307 = vdwg.mxu0
      %v308 = vadd.f32 %v267, %v303
      %v309 = vadd.f32 %v270, %v306
      %s310 = scalar_lea.vmem %s1, 48
      %v311 = vld [vmem:[%s310] sm:$0xff]
      %v312 = vld [vmem:[%s310 + $0x8] sm:$0xff]
      %313 = vrot.lane.b32.xlu0 %v198, 125
      %v314 = vpop.permute.xlu0 %313
      %v316 = vsel %vm208, %v311, 0
      %v319 = vsel %vm208, %v312, 0
      %v321 = vsel %vm215, %v314, 0
      %323 = vmatpush.msra.mxu0 0.0
      %324 = vmatpush.msra.mxu0 0.0
      %325 = vmatpush.msra.mxu0 0.0
      %326 = vmatpush.msra.mxu0 0.0
      %327 = vmatpush.msra.mxu0 0.0
      %328 = vmatpush.msra.mxu0 0.0
      %329 = vmatpush.msra.mxu0 0.0
      %330 = vmatpush.msra.mxu0 0.0
      %331 = vmatpush.msra.mxu0 0.0
      %332 = vmatpush.msra.mxu0 0.0
      %333 = vmatpush.msra.mxu0 0.0
      %334 = vmatpush.msra.mxu0 0.0
      %335 = vmatpush.msra.mxu0 0.0
      %336 = vmatpush.msra.mxu0 0.0
      %337 = vmatpush.msra.mxu0 0.0
      %338 = vmatpush.msra.mxu0 %v321
      %339 = vmatmul.f32.gmra.mxu0 %v316
      %v340 = vpop.f32.mrf.mxu0
      %v341 = vadd.f32 0.0, %v340
      %342 = vmatmul.f32.gmra.mxu0 %v319
      %v343 = vpop.f32.mrf.mxu0
      %v344 = vadd.f32 0.0, %v343
      %345 = vdwg.mxu0
      %v346 = vadd.f32 %v308, %v341
      %v347 = vadd.f32 %v309, %v344
      %s348 = scalar_lea.vmem %s1, 64
      %v349 = vld [vmem:[%s348] sm:$0xff]
      %v350 = vld [vmem:[%s348 + $0x8] sm:$0xff]
      %351 = vrot.lane.b32.xlu0 %v198, 124
      %v352 = vpop.permute.xlu0 %351
      %v354 = vsel %vm208, %v349, 0
      %v357 = vsel %vm208, %v350, 0
      %v359 = vsel %vm215, %v352, 0
      %361 = vmatpush.msra.mxu0 0.0
      %362 = vmatpush.msra.mxu0 0.0
      %363 = vmatpush.msra.mxu0 0.0
      %364 = vmatpush.msra.mxu0 0.0
      %365 = vmatpush.msra.mxu0 0.0
      %366 = vmatpush.msra.mxu0 0.0
      %367 = vmatpush.msra.mxu0 0.0
      %368 = vmatpush.msra.mxu0 0.0
      %369 = vmatpush.msra.mxu0 0.0
      %370 = vmatpush.msra.mxu0 0.0
      %371 = vmatpush.msra.mxu0 0.0
      %372 = vmatpush.msra.mxu0 0.0
      %373 = vmatpush.msra.mxu0 0.0
      %374 = vmatpush.msra.mxu0 0.0
      %375 = vmatpush.msra.mxu0 0.0
      %376 = vmatpush.msra.mxu0 %v359
      %377 = vmatmul.f32.gmra.mxu0 %v354
      %v378 = vpop.f32.mrf.mxu0
      %v379 = vadd.f32 0.0, %v378
      %380 = vmatmul.f32.gmra.mxu0 %v357
      %v381 = vpop.f32.mrf.mxu0
      %v382 = vadd.f32 0.0, %v381
      %383 = vdwg.mxu0
      %v384 = vadd.f32 %v346, %v379
      %v385 = vadd.f32 %v347, %v382
      %s386 = scalar_lea.vmem %s1, 80
      %v387 = vld [vmem:[%s386] sm:$0xff]
      %v388 = vld [vmem:[%s386 + $0x8] sm:$0xff]
      %389 = vrot.lane.b32.xlu0 %v198, 116
      %v390 = vpop.permute.xlu0 %389
      %v392 = vsel %vm208, %v387, 0
      %v395 = vsel %vm208, %v388, 0
      %v397 = vsel %vm215, %v390, 0
      %399 = vmatpush.msra.mxu0 0.0
      %400 = vmatpush.msra.mxu0 0.0
      %401 = vmatpush.msra.mxu0 0.0
      %402 = vmatpush.msra.mxu0 0.0
      %403 = vmatpush.msra.mxu0 0.0
      %404 = vmatpush.msra.mxu0 0.0
      %405 = vmatpush.msra.mxu0 0.0
      %406 = vmatpush.msra.mxu0 0.0
      %407 = vmatpush.msra.mxu0 0.0
      %408 = vmatpush.msra.mxu0 0.0
      %409 = vmatpush.msra.mxu0 0.0
      %410 = vmatpush.msra.mxu0 0.0
      %411 = vmatpush.msra.mxu0 0.0
      %412 = vmatpush.msra.mxu0 0.0
      %413 = vmatpush.msra.mxu0 0.0
      %414 = vmatpush.msra.mxu0 %v397
      %415 = vmatmul.f32.gmra.mxu0 %v392
      %v416 = vpop.f32.mrf.mxu0
      %v417 = vadd.f32 0.0, %v416
      %418 = vmatmul.f32.gmra.mxu0 %v395
      %v419 = vpop.f32.mrf.mxu0
      %v420 = vadd.f32 0.0, %v419
      %421 = vdwg.mxu0
      %v422 = vadd.f32 %v384, %v417
      %v423 = vadd.f32 %v385, %v420
      %s424 = scalar_lea.vmem %s1, 96
      %v425 = vld [vmem:[%s424] sm:$0xff]
      %v426 = vld [vmem:[%s424 + $0x8] sm:$0xff]
      %427 = vrot.lane.b32.xlu0 %v198, 115
      %v428 = vpop.permute.xlu0 %427
      %v430 = vsel %vm208, %v425, 0
      %v433 = vsel %vm208, %v426, 0
      %v435 = vsel %vm215, %v428, 0
      %437 = vmatpush.msra.mxu0 0.0
      %438 = vmatpush.msra.mxu0 0.0
      %439 = vmatpush.msra.mxu0 0.0
      %440 = vmatpush.msra.mxu0 0.0
      %441 = vmatpush.msra.mxu0 0.0
      %442 = vmatpush.msra.mxu0 0.0
      %443 = vmatpush.msra.mxu0 0.0
      %444 = vmatpush.msra.mxu0 0.0
      %445 = vmatpush.msra.mxu0 0.0
      %446 = vmatpush.msra.mxu0 0.0
      %447 = vmatpush.msra.mxu0 0.0
      %448 = vmatpush.msra.mxu0 0.0
      %449 = vmatpush.msra.mxu0 0.0
      %450 = vmatpush.msra.mxu0 0.0
      %451 = vmatpush.msra.mxu0 0.0
      %452 = vmatpush.msra.mxu0 %v435
      %453 = vmatmul.f32.gmra.mxu0 %v430
      %v454 = vpop.f32.mrf.mxu0
      %v455 = vadd.f32 0.0, %v454
      %456 = vmatmul.f32.gmra.mxu0 %v433
      %v457 = vpop.f32.mrf.mxu0
      %v458 = vadd.f32 0.0, %v457
      %459 = vdwg.mxu0
      %v460 = vadd.f32 %v422, %v455
      %v461 = vadd.f32 %v423, %v458
      %s462 = scalar_lea.vmem %s1, 112
      %v463 = vld [vmem:[%s462] sm:$0xff]
      %v464 = vld [vmem:[%s462 + $0x8] sm:$0xff]
      %465 = vrot.lane.b32.xlu0 %v198, 114
      %v466 = vpop.permute.xlu0 %465
      %v468 = vsel %vm208, %v463, 0
      %v471 = vsel %vm208, %v464, 0
      %v473 = vsel %vm215, %v466, 0
      %475 = vmatpush.msra.mxu0 0.0
      %476 = vmatpush.msra.mxu0 0.0
      %477 = vmatpush.msra.mxu0 0.0
      %478 = vmatpush.msra.mxu0 0.0
      %479 = vmatpush.msra.mxu0 0.0
      %480 = vmatpush.msra.mxu0 0.0
      %481 = vmatpush.msra.mxu0 0.0
      %482 = vmatpush.msra.mxu0 0.0
      %483 = vmatpush.msra.mxu0 0.0
      %484 = vmatpush.msra.mxu0 0.0
      %485 = vmatpush.msra.mxu0 0.0
      %486 = vmatpush.msra.mxu0 0.0
      %487 = vmatpush.msra.mxu0 0.0
      %488 = vmatpush.msra.mxu0 0.0
      %489 = vmatpush.msra.mxu0 0.0
      %490 = vmatpush.msra.mxu0 %v473
      %491 = vmatmul.f32.gmra.mxu0 %v468
      %v492 = vpop.f32.mrf.mxu0
      %v493 = vadd.f32 0.0, %v492
      %494 = vmatmul.f32.gmra.mxu0 %v471
      %v495 = vpop.f32.mrf.mxu0
      %v496 = vadd.f32 0.0, %v495
      %497 = vdwg.mxu0
      %v498 = vadd.f32 %v460, %v493
      %v499 = vadd.f32 %v461, %v496
      %s500 = scalar_lea.vmem %s1, 128
      %v501 = vld [vmem:[%s500] sm:$0xff]
      %v502 = vld [vmem:[%s500 + $0x8] sm:$0xff]
      %503 = vrot.lane.b32.xlu0 %v198, 113
      %v504 = vpop.permute.xlu0 %503
      %v506 = vsel %vm208, %v501, 0
      %v509 = vsel %vm208, %v502, 0
      %v511 = vsel %vm215, %v504, 0
      %513 = vmatpush.msra.mxu0 0.0
      %514 = vmatpush.msra.mxu0 0.0
      %515 = vmatpush.msra.mxu0 0.0
      %516 = vmatpush.msra.mxu0 0.0
      %517 = vmatpush.msra.mxu0 0.0
      %518 = vmatpush.msra.mxu0 0.0
      %519 = vmatpush.msra.mxu0 0.0
      %520 = vmatpush.msra.mxu0 0.0
      %521 = vmatpush.msra.mxu0 0.0
      %522 = vmatpush.msra.mxu0 0.0
      %523 = vmatpush.msra.mxu0 0.0
      %524 = vmatpush.msra.mxu0 0.0
      %525 = vmatpush.msra.mxu0 0.0
      %526 = vmatpush.msra.mxu0 0.0
      %527 = vmatpush.msra.mxu0 0.0
      %528 = vmatpush.msra.mxu0 %v511
      %529 = vmatmul.f32.gmra.mxu0 %v506
      %v530 = vpop.f32.mrf.mxu0
      %v531 = vadd.f32 0.0, %v530
      %532 = vmatmul.f32.gmra.mxu0 %v509
      %v533 = vpop.f32.mrf.mxu0
      %v534 = vadd.f32 0.0, %v533
      %535 = vdwg.mxu0
      %v536 = vadd.f32 %v498, %v531
      %v537 = vadd.f32 %v499, %v534
      %s538 = scalar_lea.vmem %s1, 144
      %v539 = vld [vmem:[%s538] sm:$0xff]
      %v540 = vld [vmem:[%s538 + $0x8] sm:$0xff]
      %541 = vrot.lane.b32.xlu0 %v198, 112
      %v542 = vpop.permute.xlu0 %541
      %v544 = vsel %vm208, %v539, 0
      %v547 = vsel %vm208, %v540, 0
      %v549 = vsel %vm215, %v542, 0
      %551 = vmatpush.msra.mxu0 0.0
      %552 = vmatpush.msra.mxu0 0.0
      %553 = vmatpush.msra.mxu0 0.0
      %554 = vmatpush.msra.mxu0 0.0
      %555 = vmatpush.msra.mxu0 0.0
      %556 = vmatpush.msra.mxu0 0.0
      %557 = vmatpush.msra.mxu0 0.0
      %558 = vmatpush.msra.mxu0 0.0
      %559 = vmatpush.msra.mxu0 0.0
      %560 = vmatpush.msra.mxu0 0.0
      %561 = vmatpush.msra.mxu0 0.0
      %562 = vmatpush.msra.mxu0 0.0
      %563 = vmatpush.msra.mxu0 0.0
      %564 = vmatpush.msra.mxu0 0.0
      %565 = vmatpush.msra.mxu0 0.0
      %566 = vmatpush.msra.mxu0 %v549
      %567 = vmatmul.f32.gmra.mxu0 %v544
      %v568 = vpop.f32.mrf.mxu0
      %v569 = vadd.f32 0.0, %v568
      %570 = vmatmul.f32.gmra.mxu0 %v547
      %v571 = vpop.f32.mrf.mxu0
      %v572 = vadd.f32 0.0, %v571
      %573 = vdwg.mxu0
      %v574 = vadd.f32 %v536, %v569
      %v575 = vadd.f32 %v537, %v572
      %s576 = scalar_lea.vmem %s1, 160
      %v577 = vld [vmem:[%s576] sm:$0xff]
      %v578 = vld [vmem:[%s576 + $0x8] sm:$0xff]
      %579 = vrot.lane.b32.xlu0 %v198, 104
      %v580 = vpop.permute.xlu0 %579
      %v582 = vsel %vm208, %v577, 0
      %v585 = vsel %vm208, %v578, 0
      %v587 = vsel %vm215, %v580, 0
      %589 = vmatpush.msra.mxu0 0.0
      %590 = vmatpush.msra.mxu0 0.0
      %591 = vmatpush.msra.mxu0 0.0
      %592 = vmatpush.msra.mxu0 0.0
      %593 = vmatpush.msra.mxu0 0.0
      %594 = vmatpush.msra.mxu0 0.0
      %595 = vmatpush.msra.mxu0 0.0
      %596 = vmatpush.msra.mxu0 0.0
      %597 = vmatpush.msra.mxu0 0.0
      %598 = vmatpush.msra.mxu0 0.0
      %599 = vmatpush.msra.mxu0 0.0
      %600 = vmatpush.msra.mxu0 0.0
      %601 = vmatpush.msra.mxu0 0.0
      %602 = vmatpush.msra.mxu0 0.0
      %603 = vmatpush.msra.mxu0 0.0
      %604 = vmatpush.msra.mxu0 %v587
      %605 = vmatmul.f32.gmra.mxu0 %v582
      %v606 = vpop.f32.mrf.mxu0
      %v607 = vadd.f32 0.0, %v606
      %608 = vmatmul.f32.gmra.mxu0 %v585
      %v609 = vpop.f32.mrf.mxu0
      %v610 = vadd.f32 0.0, %v609
      %611 = vdwg.mxu0
      %v612 = vadd.f32 %v574, %v607
      %v613 = vadd.f32 %v575, %v610
      %s614 = scalar_lea.vmem %s1, 176
      %v615 = vld [vmem:[%s614] sm:$0xff]
      %v616 = vld [vmem:[%s614 + $0x8] sm:$0xff]
      %617 = vrot.lane.b32.xlu0 %v198, 103
      %v618 = vpop.permute.xlu0 %617
      %v620 = vsel %vm208, %v615, 0
      %v623 = vsel %vm208, %v616, 0
      %v625 = vsel %vm215, %v618, 0
      %627 = vmatpush.msra.mxu0 0.0
      %628 = vmatpush.msra.mxu0 0.0
      %629 = vmatpush.msra.mxu0 0.0
      %630 = vmatpush.msra.mxu0 0.0
      %631 = vmatpush.msra.mxu0 0.0
      %632 = vmatpush.msra.mxu0 0.0
      %633 = vmatpush.msra.mxu0 0.0
      %634 = vmatpush.msra.mxu0 0.0
      %635 = vmatpush.msra.mxu0 0.0
      %636 = vmatpush.msra.mxu0 0.0
      %637 = vmatpush.msra.mxu0 0.0
      %638 = vmatpush.msra.mxu0 0.0
      %639 = vmatpush.msra.mxu0 0.0
      %640 = vmatpush.msra.mxu0 0.0
      %641 = vmatpush.msra.mxu0 0.0
      %642 = vmatpush.msra.mxu0 %v625
      %643 = vmatmul.f32.gmra.mxu0 %v620
      %v644 = vpop.f32.mrf.mxu0
      %v645 = vadd.f32 0.0, %v644
      %646 = vmatmul.f32.gmra.mxu0 %v623
      %v647 = vpop.f32.mrf.mxu0
      %v648 = vadd.f32 0.0, %v647
      %649 = vdwg.mxu0
      %v650 = vadd.f32 %v612, %v645
      %v651 = vadd.f32 %v613, %v648
      %s652 = scalar_lea.vmem %s1, 192
      %v653 = vld [vmem:[%s652] sm:$0xff]
      %v654 = vld [vmem:[%s652 + $0x8] sm:$0xff]
      %655 = vrot.lane.b32.xlu0 %v198, 102
      %v656 = vpop.permute.xlu0 %655
      %v658 = vsel %vm208, %v653, 0
      %v661 = vsel %vm208, %v654, 0
      %v663 = vsel %vm215, %v656, 0
      %665 = vmatpush.msra.mxu0 0.0
      %666 = vmatpush.msra.mxu0 0.0
      %667 = vmatpush.msra.mxu0 0.0
      %668 = vmatpush.msra.mxu0 0.0
      %669 = vmatpush.msra.mxu0 0.0
      %670 = vmatpush.msra.mxu0 0.0
      %671 = vmatpush.msra.mxu0 0.0
      %672 = vmatpush.msra.mxu0 0.0
      %673 = vmatpush.msra.mxu0 0.0
      %674 = vmatpush.msra.mxu0 0.0
      %675 = vmatpush.msra.mxu0 0.0
      %676 = vmatpush.msra.mxu0 0.0
      %677 = vmatpush.msra.mxu0 0.0
      %678 = vmatpush.msra.mxu0 0.0
      %679 = vmatpush.msra.mxu0 0.0
      %680 = vmatpush.msra.mxu0 %v663
      %681 = vmatmul.f32.gmra.mxu0 %v658
      %v682 = vpop.f32.mrf.mxu0
      %v683 = vadd.f32 0.0, %v682
      %684 = vmatmul.f32.gmra.mxu0 %v661
      %v685 = vpop.f32.mrf.mxu0
      %v686 = vadd.f32 0.0, %v685
      %687 = vdwg.mxu0
      %v688 = vadd.f32 %v650, %v683
      %v689 = vadd.f32 %v651, %v686
      %s690 = scalar_lea.vmem %s1, 208
      %v691 = vld [vmem:[%s690] sm:$0xff]
      %v692 = vld [vmem:[%s690 + $0x8] sm:$0xff]
      %693 = vrot.lane.b32.xlu0 %v198, 101
      %v694 = vpop.permute.xlu0 %693
      %v696 = vsel %vm208, %v691, 0
      %v699 = vsel %vm208, %v692, 0
      %v701 = vsel %vm215, %v694, 0
      %703 = vmatpush.msra.mxu0 0.0
      %704 = vmatpush.msra.mxu0 0.0
      %705 = vmatpush.msra.mxu0 0.0
      %706 = vmatpush.msra.mxu0 0.0
      %707 = vmatpush.msra.mxu0 0.0
      %708 = vmatpush.msra.mxu0 0.0
      %709 = vmatpush.msra.mxu0 0.0
      %710 = vmatpush.msra.mxu0 0.0
      %711 = vmatpush.msra.mxu0 0.0
      %712 = vmatpush.msra.mxu0 0.0
      %713 = vmatpush.msra.mxu0 0.0
      %714 = vmatpush.msra.mxu0 0.0
      %715 = vmatpush.msra.mxu0 0.0
      %716 = vmatpush.msra.mxu0 0.0
      %717 = vmatpush.msra.mxu0 0.0
      %718 = vmatpush.msra.mxu0 %v701
      %719 = vmatmul.f32.gmra.mxu0 %v696
      %v720 = vpop.f32.mrf.mxu0
      %v721 = vadd.f32 0.0, %v720
      %722 = vmatmul.f32.gmra.mxu0 %v699
      %v723 = vpop.f32.mrf.mxu0
      %v724 = vadd.f32 0.0, %v723
      %725 = vdwg.mxu0
      %v726 = vadd.f32 %v688, %v721
      %v727 = vadd.f32 %v689, %v724
      %s728 = scalar_lea.vmem %s1, 224
      %v729 = vld [vmem:[%s728] sm:$0xff]
      %v730 = vld [vmem:[%s728 + $0x8] sm:$0xff]
      %731 = vrot.lane.b32.xlu0 %v198, 100
      %v732 = vpop.permute.xlu0 %731
      %v734 = vsel %vm208, %v729, 0
      %v737 = vsel %vm208, %v730, 0
      %v739 = vsel %vm215, %v732, 0
      %741 = vmatpush.msra.mxu0 0.0
      %742 = vmatpush.msra.mxu0 0.0
      %743 = vmatpush.msra.mxu0 0.0
      %744 = vmatpush.msra.mxu0 0.0
      %745 = vmatpush.msra.mxu0 0.0
      %746 = vmatpush.msra.mxu0 0.0
      %747 = vmatpush.msra.mxu0 0.0
      %748 = vmatpush.msra.mxu0 0.0
      %749 = vmatpush.msra.mxu0 0.0
      %750 = vmatpush.msra.mxu0 0.0
      %751 = vmatpush.msra.mxu0 0.0
      %752 = vmatpush.msra.mxu0 0.0
      %753 = vmatpush.msra.mxu0 0.0
      %754 = vmatpush.msra.mxu0 0.0
      %755 = vmatpush.msra.mxu0 0.0
      %756 = vmatpush.msra.mxu0 %v739
      %757 = vmatmul.f32.gmra.mxu0 %v734
      %v758 = vpop.f32.mrf.mxu0
      %v759 = vadd.f32 0.0, %v758
      %760 = vmatmul.f32.gmra.mxu0 %v737
      %v761 = vpop.f32.mrf.mxu0
      %v762 = vadd.f32 0.0, %v761
      %763 = vdwg.mxu0
      %v764 = vadd.f32 %v726, %v759
      %v765 = vadd.f32 %v727, %v762
      %s766 = scalar_lea.vmem %s1, 240
      %v767 = vld [vmem:[%s766] sm:$0xff]
      %v768 = vld [vmem:[%s766 + $0x8] sm:$0xff]
      %770 = vrot.lane.b32.xlu0 %v198, 92
      %v771 = vpop.permute.xlu0 %770
      %772 = vrot.lane.b32.xlu0 %v199, 92
      %v773 = vpop.permute.xlu0 %772
      %vm774 = vcmask 752640
      %v775 = vsel %vm774, %v771, %v773
      %v777 = vsel %vm208, %v767, 0
      %v780 = vsel %vm208, %v768, 0
      %v782 = vsel %vm215, %v775, 0
      %784 = vmatpush.msra.mxu0 0.0
      %785 = vmatpush.msra.mxu0 0.0
      %786 = vmatpush.msra.mxu0 0.0
      %787 = vmatpush.msra.mxu0 0.0
      %788 = vmatpush.msra.mxu0 0.0
      %789 = vmatpush.msra.mxu0 0.0
      %790 = vmatpush.msra.mxu0 0.0
      %791 = vmatpush.msra.mxu0 0.0
      %792 = vmatpush.msra.mxu0 0.0
      %793 = vmatpush.msra.mxu0 0.0
      %794 = vmatpush.msra.mxu0 0.0
      %795 = vmatpush.msra.mxu0 0.0
      %796 = vmatpush.msra.mxu0 0.0
      %797 = vmatpush.msra.mxu0 0.0
      %798 = vmatpush.msra.mxu0 0.0
      %799 = vmatpush.msra.mxu0 %v782
      %800 = vmatmul.f32.gmra.mxu0 %v777
      %v801 = vpop.f32.mrf.mxu0
      %v802 = vadd.f32 0.0, %v801
      %803 = vmatmul.f32.gmra.mxu0 %v780
      %v804 = vpop.f32.mrf.mxu0
      %v805 = vadd.f32 0.0, %v804
      %806 = vdwg.mxu0
      %v807 = vadd.f32 %v764, %v802
      %v808 = vadd.f32 %v765, %v805
      %s809 = scalar_lea.vmem %s1, 256
      %v810 = vld [vmem:[%s809] sm:$0xff]
      %v811 = vld [vmem:[%s809 + $0x8] sm:$0xff]
      %812 = vrot.lane.b32.xlu0 %v198, 91
      %v813 = vpop.permute.xlu0 %812
      %814 = vrot.lane.b32.xlu0 %v199, 91
      %v815 = vpop.permute.xlu0 %814
      %vm816 = vcmask 744448
      %v817 = vsel %vm816, %v813, %v815
      %v819 = vsel %vm208, %v810, 0
      %v822 = vsel %vm208, %v811, 0
      %v824 = vsel %vm215, %v817, 0
      %826 = vmatpush.msra.mxu0 0.0
      %827 = vmatpush.msra.mxu0 0.0
      %828 = vmatpush.msra.mxu0 0.0
      %829 = vmatpush.msra.mxu0 0.0
      %830 = vmatpush.msra.mxu0 0.0
      %831 = vmatpush.msra.mxu0 0.0
      %832 = vmatpush.msra.mxu0 0.0
      %833 = vmatpush.msra.mxu0 0.0
      %834 = vmatpush.msra.mxu0 0.0
      %835 = vmatpush.msra.mxu0 0.0
      %836 = vmatpush.msra.mxu0 0.0
      %837 = vmatpush.msra.mxu0 0.0
      %838 = vmatpush.msra.mxu0 0.0
      %839 = vmatpush.msra.mxu0 0.0
      %840 = vmatpush.msra.mxu0 0.0
      %841 = vmatpush.msra.mxu0 %v824
      %842 = vmatmul.f32.gmra.mxu0 %v819
      %v843 = vpop.f32.mrf.mxu0
      %v844 = vadd.f32 0.0, %v843
      %845 = vmatmul.f32.gmra.mxu0 %v822
      %v846 = vpop.f32.mrf.mxu0
      %v847 = vadd.f32 0.0, %v846
      %848 = vdwg.mxu0
      %v849 = vadd.f32 %v807, %v844
      %v850 = vadd.f32 %v808, %v847
      %s851 = scalar_lea.vmem %s1, 272
      %v852 = vld [vmem:[%s851] sm:$0xff]
      %v853 = vld [vmem:[%s851 + $0x8] sm:$0xff]
      %854 = vrot.lane.b32.xlu0 %v198, 90
      %v855 = vpop.permute.xlu0 %854
      %856 = vrot.lane.b32.xlu0 %v199, 90
      %v857 = vpop.permute.xlu0 %856
      %vm858 = vcmask 736256
      %v859 = vsel %vm858, %v855, %v857
      %v861 = vsel %vm208, %v852, 0
      %v864 = vsel %vm208, %v853, 0
      %v866 = vsel %vm215, %v859, 0
      %868 = vmatpush.msra.mxu0 0.0
      %869 = vmatpush.msra.mxu0 0.0
      %870 = vmatpush.msra.mxu0 0.0
      %871 = vmatpush.msra.mxu0 0.0
      %872 = vmatpush.msra.mxu0 0.0
      %873 = vmatpush.msra.mxu0 0.0
      %874 = vmatpush.msra.mxu0 0.0
      %875 = vmatpush.msra.mxu0 0.0
      %876 = vmatpush.msra.mxu0 0.0
      %877 = vmatpush.msra.mxu0 0.0
      %878 = vmatpush.msra.mxu0 0.0
      %879 = vmatpush.msra.mxu0 0.0
      %880 = vmatpush.msra.mxu0 0.0
      %881 = vmatpush.msra.mxu0 0.0
      %882 = vmatpush.msra.mxu0 0.0
      %883 = vmatpush.msra.mxu0 %v866
      %884 = vmatmul.f32.gmra.mxu0 %v861
      %v885 = vpop.f32.mrf.mxu0
      %v886 = vadd.f32 0.0, %v885
      %887 = vmatmul.f32.gmra.mxu0 %v864
      %v888 = vpop.f32.mrf.mxu0
      %v889 = vadd.f32 0.0, %v888
      %890 = vdwg.mxu0
      %v891 = vadd.f32 %v849, %v886
      %v892 = vadd.f32 %v850, %v889
      %s893 = scalar_lea.vmem %s1, 288
      %v894 = vld [vmem:[%s893] sm:$0xff]
      %v895 = vld [vmem:[%s893 + $0x8] sm:$0xff]
      %896 = vrot.lane.b32.xlu0 %v198, 89
      %v897 = vpop.permute.xlu0 %896
      %898 = vrot.lane.b32.xlu0 %v199, 89
      %v899 = vpop.permute.xlu0 %898
      %vm900 = vcmask 728064
      %v901 = vsel %vm900, %v897, %v899
      %v903 = vsel %vm208, %v894, 0
      %v906 = vsel %vm208, %v895, 0
      %v908 = vsel %vm215, %v901, 0
      %910 = vmatpush.msra.mxu0 0.0
      %911 = vmatpush.msra.mxu0 0.0
      %912 = vmatpush.msra.mxu0 0.0
      %913 = vmatpush.msra.mxu0 0.0
      %914 = vmatpush.msra.mxu0 0.0
      %915 = vmatpush.msra.mxu0 0.0
      %916 = vmatpush.msra.mxu0 0.0
      %917 = vmatpush.msra.mxu0 0.0
      %918 = vmatpush.msra.mxu0 0.0
      %919 = vmatpush.msra.mxu0 0.0
      %920 = vmatpush.msra.mxu0 0.0
      %921 = vmatpush.msra.mxu0 0.0
      %922 = vmatpush.msra.mxu0 0.0
      %923 = vmatpush.msra.mxu0 0.0
      %924 = vmatpush.msra.mxu0 0.0
      %925 = vmatpush.msra.mxu0 %v908
      %926 = vmatmul.f32.gmra.mxu0 %v903
      %v927 = vpop.f32.mrf.mxu0
      %v928 = vadd.f32 0.0, %v927
      %929 = vmatmul.f32.gmra.mxu0 %v906
      %v930 = vpop.f32.mrf.mxu0
      %v931 = vadd.f32 0.0, %v930
      %932 = vdwg.mxu0
      %v933 = vadd.f32 %v891, %v928
      %v934 = vadd.f32 %v892, %v931
      %s935 = scalar_lea.vmem %s1, 304
      %v936 = vld [vmem:[%s935] sm:$0xff]
      %v937 = vld [vmem:[%s935 + $0x8] sm:$0xff]
      %938 = vrot.lane.b32.xlu0 %v198, 88
      %v939 = vpop.permute.xlu0 %938
      %940 = vrot.lane.b32.xlu0 %v199, 88
      %v941 = vpop.permute.xlu0 %940
      %vm942 = vcmask 719872
      %v943 = vsel %vm942, %v939, %v941
      %v945 = vsel %vm208, %v936, 0
      %v948 = vsel %vm208, %v937, 0
      %v950 = vsel %vm215, %v943, 0
      %952 = vmatpush.msra.mxu0 0.0
      %953 = vmatpush.msra.mxu0 0.0
      %954 = vmatpush.msra.mxu0 0.0
      %955 = vmatpush.msra.mxu0 0.0
      %956 = vmatpush.msra.mxu0 0.0
      %957 = vmatpush.msra.mxu0 0.0
      %958 = vmatpush.msra.mxu0 0.0
      %959 = vmatpush.msra.mxu0 0.0
      %960 = vmatpush.msra.mxu0 0.0
      %961 = vmatpush.msra.mxu0 0.0
      %962 = vmatpush.msra.mxu0 0.0
      %963 = vmatpush.msra.mxu0 0.0
      %964 = vmatpush.msra.mxu0 0.0
      %965 = vmatpush.msra.mxu0 0.0
      %966 = vmatpush.msra.mxu0 0.0
      %967 = vmatpush.msra.mxu0 %v950
      %968 = vmatmul.f32.gmra.mxu0 %v945
      %v969 = vpop.f32.mrf.mxu0
      %v970 = vadd.f32 0.0, %v969
      %971 = vmatmul.f32.gmra.mxu0 %v948
      %v972 = vpop.f32.mrf.mxu0
      %v973 = vadd.f32 0.0, %v972
      %974 = vdwg.mxu0
      %v975 = vadd.f32 %v933, %v970
      %v976 = vadd.f32 %v934, %v973
      %s977 = scalar_lea.vmem %s1, 320
      %v978 = vld [vmem:[%s977] sm:$0xff]
      %v979 = vld [vmem:[%s977 + $0x8] sm:$0xff]
      %980 = vrot.lane.b32.xlu0 %v198, 80
      %v981 = vpop.permute.xlu0 %980
      %982 = vrot.lane.b32.xlu0 %v199, 80
      %v983 = vpop.permute.xlu0 %982
      %vm984 = vcmask 654336
      %v985 = vsel %vm984, %v981, %v983
      %v987 = vsel %vm208, %v978, 0
      %v990 = vsel %vm208, %v979, 0
      %v992 = vsel %vm215, %v985, 0
      %994 = vmatpush.msra.mxu0 0.0
      %995 = vmatpush.msra.mxu0 0.0
      %996 = vmatpush.msra.mxu0 0.0
      %997 = vmatpush.msra.mxu0 0.0
      %998 = vmatpush.msra.mxu0 0.0
      %999 = vmatpush.msra.mxu0 0.0
      %1000 = vmatpush.msra.mxu0 0.0
      %1001 = vmatpush.msra.mxu0 0.0
      %1002 = vmatpush.msra.mxu0 0.0
      %1003 = vmatpush.msra.mxu0 0.0
      %1004 = vmatpush.msra.mxu0 0.0
      %1005 = vmatpush.msra.mxu0 0.0
      %1006 = vmatpush.msra.mxu0 0.0
      %1007 = vmatpush.msra.mxu0 0.0
      %1008 = vmatpush.msra.mxu0 0.0
      %1009 = vmatpush.msra.mxu0 %v992
      %1010 = vmatmul.f32.gmra.mxu0 %v987
      %v1011 = vpop.f32.mrf.mxu0
      %v1012 = vadd.f32 0.0, %v1011
      %1013 = vmatmul.f32.gmra.mxu0 %v990
      %v1014 = vpop.f32.mrf.mxu0
      %v1015 = vadd.f32 0.0, %v1014
      %1016 = vdwg.mxu0
      %v1017 = vadd.f32 %v975, %v1012
      %v1018 = vadd.f32 %v976, %v1015
      %s1019 = scalar_lea.vmem %s1, 336
      %v1020 = vld [vmem:[%s1019] sm:$0xff]
      %v1021 = vld [vmem:[%s1019 + $0x8] sm:$0xff]
      %1022 = vrot.lane.b32.xlu0 %v198, 79
      %v1023 = vpop.permute.xlu0 %1022
      %1024 = vrot.lane.b32.xlu0 %v199, 79
      %v1025 = vpop.permute.xlu0 %1024
      %vm1026 = vcmask 646144
      %v1027 = vsel %vm1026, %v1023, %v1025
      %v1029 = vsel %vm208, %v1020, 0
      %v1032 = vsel %vm208, %v1021, 0
      %v1034 = vsel %vm215, %v1027, 0
      %1036 = vmatpush.msra.mxu0 0.0
      %1037 = vmatpush.msra.mxu0 0.0
      %1038 = vmatpush.msra.mxu0 0.0
      %1039 = vmatpush.msra.mxu0 0.0
      %1040 = vmatpush.msra.mxu0 0.0
      %1041 = vmatpush.msra.mxu0 0.0
      %1042 = vmatpush.msra.mxu0 0.0
      %1043 = vmatpush.msra.mxu0 0.0
      %1044 = vmatpush.msra.mxu0 0.0
      %1045 = vmatpush.msra.mxu0 0.0
      %1046 = vmatpush.msra.mxu0 0.0
      %1047 = vmatpush.msra.mxu0 0.0
      %1048 = vmatpush.msra.mxu0 0.0
      %1049 = vmatpush.msra.mxu0 0.0
      %1050 = vmatpush.msra.mxu0 0.0
      %1051 = vmatpush.msra.mxu0 %v1034
      %1052 = vmatmul.f32.gmra.mxu0 %v1029
      %v1053 = vpop.f32.mrf.mxu0
      %v1054 = vadd.f32 0.0, %v1053
      %1055 = vmatmul.f32.gmra.mxu0 %v1032
      %v1056 = vpop.f32.mrf.mxu0
      %v1057 = vadd.f32 0.0, %v1056
      %1058 = vdwg.mxu0
      %v1059 = vadd.f32 %v1017, %v1054
      %v1060 = vadd.f32 %v1018, %v1057
      %s1061 = scalar_lea.vmem %s1, 352
      %v1062 = vld [vmem:[%s1061] sm:$0xff]
      %v1063 = vld [vmem:[%s1061 + $0x8] sm:$0xff]
      %1064 = vrot.lane.b32.xlu0 %v198, 78
      %v1065 = vpop.permute.xlu0 %1064
      %1066 = vrot.lane.b32.xlu0 %v199, 78
      %v1067 = vpop.permute.xlu0 %1066
      %vm1068 = vcmask 637952
      %v1069 = vsel %vm1068, %v1065, %v1067
      %v1071 = vsel %vm208, %v1062, 0
      %v1074 = vsel %vm208, %v1063, 0
      %v1076 = vsel %vm215, %v1069, 0
      %1078 = vmatpush.msra.mxu0 0.0
      %1079 = vmatpush.msra.mxu0 0.0
      %1080 = vmatpush.msra.mxu0 0.0
      %1081 = vmatpush.msra.mxu0 0.0
      %1082 = vmatpush.msra.mxu0 0.0
      %1083 = vmatpush.msra.mxu0 0.0
      %1084 = vmatpush.msra.mxu0 0.0
      %1085 = vmatpush.msra.mxu0 0.0
      %1086 = vmatpush.msra.mxu0 0.0
      %1087 = vmatpush.msra.mxu0 0.0
      %1088 = vmatpush.msra.mxu0 0.0
      %1089 = vmatpush.msra.mxu0 0.0
      %1090 = vmatpush.msra.mxu0 0.0
      %1091 = vmatpush.msra.mxu0 0.0
      %1092 = vmatpush.msra.mxu0 0.0
      %1093 = vmatpush.msra.mxu0 %v1076
      %1094 = vmatmul.f32.gmra.mxu0 %v1071
      %v1095 = vpop.f32.mrf.mxu0
      %v1096 = vadd.f32 0.0, %v1095
      %1097 = vmatmul.f32.gmra.mxu0 %v1074
      %v1098 = vpop.f32.mrf.mxu0
      %v1099 = vadd.f32 0.0, %v1098
      %1100 = vdwg.mxu0
      %v1101 = vadd.f32 %v1059, %v1096
      %v1102 = vadd.f32 %v1060, %v1099
      %s1103 = scalar_lea.vmem %s1, 368
      %v1104 = vld [vmem:[%s1103] sm:$0xff]
      %v1105 = vld [vmem:[%s1103 + $0x8] sm:$0xff]
      %1106 = vrot.lane.b32.xlu0 %v198, 77
      %v1107 = vpop.permute.xlu0 %1106
      %1108 = vrot.lane.b32.xlu0 %v199, 77
      %v1109 = vpop.permute.xlu0 %1108
      %vm1110 = vcmask 629760
      %v1111 = vsel %vm1110, %v1107, %v1109
      %v1113 = vsel %vm208, %v1104, 0
      %v1116 = vsel %vm208, %v1105, 0
      %v1118 = vsel %vm215, %v1111, 0
      %1120 = vmatpush.msra.mxu0 0.0
      %1121 = vmatpush.msra.mxu0 0.0
      %1122 = vmatpush.msra.mxu0 0.0
      %1123 = vmatpush.msra.mxu0 0.0
      %1124 = vmatpush.msra.mxu0 0.0
      %1125 = vmatpush.msra.mxu0 0.0
      %1126 = vmatpush.msra.mxu0 0.0
      %1127 = vmatpush.msra.mxu0 0.0
      %1128 = vmatpush.msra.mxu0 0.0
      %1129 = vmatpush.msra.mxu0 0.0
      %1130 = vmatpush.msra.mxu0 0.0
      %1131 = vmatpush.msra.mxu0 0.0
      %1132 = vmatpush.msra.mxu0 0.0
      %1133 = vmatpush.msra.mxu0 0.0
      %1134 = vmatpush.msra.mxu0 0.0
      %1135 = vmatpush.msra.mxu0 %v1118
      %1136 = vmatmul.f32.gmra.mxu0 %v1113
      %v1137 = vpop.f32.mrf.mxu0
      %v1138 = vadd.f32 0.0, %v1137
      %1139 = vmatmul.f32.gmra.mxu0 %v1116
      %v1140 = vpop.f32.mrf.mxu0
      %v1141 = vadd.f32 0.0, %v1140
      %1142 = vdwg.mxu0
      %v1143 = vadd.f32 %v1101, %v1138
      %v1144 = vadd.f32 %v1102, %v1141
      %s1145 = scalar_lea.vmem %s1, 384
      %v1146 = vld [vmem:[%s1145] sm:$0xff]
      %v1147 = vld [vmem:[%s1145 + $0x8] sm:$0xff]
      %1148 = vrot.lane.b32.xlu0 %v198, 76
      %v1149 = vpop.permute.xlu0 %1148
      %1150 = vrot.lane.b32.xlu0 %v199, 76
      %v1151 = vpop.permute.xlu0 %1150
      %vm1152 = vcmask 621568
      %v1153 = vsel %vm1152, %v1149, %v1151
      %v1155 = vsel %vm208, %v1146, 0
      %v1158 = vsel %vm208, %v1147, 0
      %v1160 = vsel %vm215, %v1153, 0
      %1162 = vmatpush.msra.mxu0 0.0
      %1163 = vmatpush.msra.mxu0 0.0
      %1164 = vmatpush.msra.mxu0 0.0
      %1165 = vmatpush.msra.mxu0 0.0
      %1166 = vmatpush.msra.mxu0 0.0
      %1167 = vmatpush.msra.mxu0 0.0
      %1168 = vmatpush.msra.mxu0 0.0
      %1169 = vmatpush.msra.mxu0 0.0
      %1170 = vmatpush.msra.mxu0 0.0
      %1171 = vmatpush.msra.mxu0 0.0
      %1172 = vmatpush.msra.mxu0 0.0
      %1173 = vmatpush.msra.mxu0 0.0
      %1174 = vmatpush.msra.mxu0 0.0
      %1175 = vmatpush.msra.mxu0 0.0
      %1176 = vmatpush.msra.mxu0 0.0
      %1177 = vmatpush.msra.mxu0 %v1160
      %1178 = vmatmul.f32.gmra.mxu0 %v1155
      %v1179 = vpop.f32.mrf.mxu0
      %v1180 = vadd.f32 0.0, %v1179
      %1181 = vmatmul.f32.gmra.mxu0 %v1158
      %v1182 = vpop.f32.mrf.mxu0
      %v1183 = vadd.f32 0.0, %v1182
      %1184 = vdwg.mxu0
      %v1185 = vadd.f32 %v1143, %v1180
      %v1186 = vadd.f32 %v1144, %v1183
      %v1187 = vld [vmem:[%s2] sm:$0xff]
      %v1188 = vld [vmem:[%s2 + $0x8] sm:$0xff]
      %1190 = vset.pattern.permute.xlu0 0
      %1191 = vperm.xlu0 %1190, %v1187
      %v1192 = vpop.permute.xlu0 %1191
      %1195 = vset.pattern.permute.xlu0 0
      %1196 = vperm.xlu0 %1195, %v1188
      %v1197 = vpop.permute.xlu0 %1196
      %v1199 = vadd.f32 %v1185, %v1192
      %v1200 = vadd.f32 %v1186, %v1197
      %v1201 = vld [vmem:[%s3] sm:$0xff]
      %v1202 = vld [vmem:[%s3 + $0x8] sm:$0xff]
      %v1203 = vld [vmem:[%s3 + $0x10] sm:$0xff]
      %v1204 = vld [vmem:[%s3 + $0x18] sm:$0xff]
      %v1205 = vld [vmem:[%s3 + $0x20] sm:$0xff]
      %v1206 = vld [vmem:[%s3 + $0x28] sm:$0xff]
      %v1207 = vld [vmem:[%s3 + $0x30] sm:$0xff]
      %v1208 = vld [vmem:[%s3 + $0x38] sm:$0xff]
      %v1209 = vld [vmem:[%s3 + $0x40] sm:$0xff]
      %v1210 = vld [vmem:[%s3 + $0x48] sm:$0xff]
      %v1211 = vld [vmem:[%s3 + $0x50] sm:$0xff]
      %v1212 = vld [vmem:[%s3 + $0x58] sm:$0xff]
      %vm1213 = vcmask 785408
      %v1215 = vsel %vm1213, %v1199, 0
      %v1218 = vsel %vm1213, %v1200, 0
      %1220 = vmatpush.msra.mxu0 0.0
      %1221 = vmatpush.msra.mxu0 0.0
      %1222 = vmatpush.msra.mxu0 0.0
      %1223 = vmatpush.msra.mxu0 0.0
      %1224 = vmatpush.msra.mxu0 %v1212
      %1225 = vmatpush.msra.mxu0 %v1211
      %1226 = vmatpush.msra.mxu0 %v1210
      %1227 = vmatpush.msra.mxu0 %v1209
      %1228 = vmatpush.msra.mxu0 %v1208
      %1229 = vmatpush.msra.mxu0 %v1207
      %1230 = vmatpush.msra.mxu0 %v1206
      %1231 = vmatpush.msra.mxu0 %v1205
      %1232 = vmatpush.msra.mxu0 %v1204
      %1233 = vmatpush.msra.mxu0 %v1203
      %1234 = vmatpush.msra.mxu0 %v1202
      %1235 = vmatpush.msra.mxu0 %v1201
      %1236 = vmatmul.f32.gmra.mxu0 %v1215
      %v1237 = vpop.f32.mrf.mxu0
      %v1238 = vadd.f32 0.0, %v1237
      %1239 = vmatmul.f32.gmra.mxu0 %v1218
      %v1240 = vpop.f32.mrf.mxu0
      %v1241 = vadd.f32 0.0, %v1240
      %1242 = vdwg.mxu0
      %s1243 = scalar_lea.vmem %s3, 96
      %v1244 = vld [vmem:[%s1243] sm:$0xff]
      %v1245 = vld [vmem:[%s1243 + $0x8] sm:$0xff]
      %v1246 = vld [vmem:[%s1243 + $0x10] sm:$0xff]
      %v1247 = vld [vmem:[%s1243 + $0x18] sm:$0xff]
      %v1248 = vld [vmem:[%s1243 + $0x20] sm:$0xff]
      %v1249 = vld [vmem:[%s1243 + $0x28] sm:$0xff]
      %v1250 = vld [vmem:[%s1243 + $0x30] sm:$0xff]
      %v1251 = vld [vmem:[%s1243 + $0x38] sm:$0xff]
      %v1252 = vld [vmem:[%s1243 + $0x40] sm:$0xff]
      %v1253 = vld [vmem:[%s1243 + $0x48] sm:$0xff]
      %v1254 = vld [vmem:[%s1243 + $0x50] sm:$0xff]
      %v1255 = vld [vmem:[%s1243 + $0x58] sm:$0xff]
      %1256 = vmatpush.msra.mxu0 0.0
      %1257 = vmatpush.msra.mxu0 0.0
      %1258 = vmatpush.msra.mxu0 0.0
      %1259 = vmatpush.msra.mxu0 0.0
      %1260 = vmatpush.msra.mxu0 %v1255
      %1261 = vmatpush.msra.mxu0 %v1254
      %1262 = vmatpush.msra.mxu0 %v1253
      %1263 = vmatpush.msra.mxu0 %v1252
      %1264 = vmatpush.msra.mxu0 %v1251
      %1265 = vmatpush.msra.mxu0 %v1250
      %1266 = vmatpush.msra.mxu0 %v1249
      %1267 = vmatpush.msra.mxu0 %v1248
      %1268 = vmatpush.msra.mxu0 %v1247
      %1269 = vmatpush.msra.mxu0 %v1246
      %1270 = vmatpush.msra.mxu0 %v1245
      %1271 = vmatpush.msra.mxu0 %v1244
      %1272 = vmatmul.f32.gmra.mxu0 %v1215
      %v1273 = vpop.f32.mrf.mxu0
      %v1274 = vadd.f32 0.0, %v1273
      %1275 = vmatmul.f32.gmra.mxu0 %v1218
      %v1276 = vpop.f32.mrf.mxu0
      %v1277 = vadd.f32 0.0, %v1276
      %1278 = vdwg.mxu0
      %v1279 = vmax.f32 %v1238, %v1274
      %v1280 = vmax.f32 %v1241, %v1277
      %s1281 = scalar_lea.vmem %s3, 192
      %v1282 = vld [vmem:[%s1281] sm:$0xff]
      %v1283 = vld [vmem:[%s1281 + $0x8] sm:$0xff]
      %v1284 = vld [vmem:[%s1281 + $0x10] sm:$0xff]
      %v1285 = vld [vmem:[%s1281 + $0x18] sm:$0xff]
      %v1286 = vld [vmem:[%s1281 + $0x20] sm:$0xff]
      %v1287 = vld [vmem:[%s1281 + $0x28] sm:$0xff]
      %v1288 = vld [vmem:[%s1281 + $0x30] sm:$0xff]
      %v1289 = vld [vmem:[%s1281 + $0x38] sm:$0xff]
      %v1290 = vld [vmem:[%s1281 + $0x40] sm:$0xff]
      %v1291 = vld [vmem:[%s1281 + $0x48] sm:$0xff]
      %v1292 = vld [vmem:[%s1281 + $0x50] sm:$0xff]
      %v1293 = vld [vmem:[%s1281 + $0x58] sm:$0xff]
      %1294 = vmatpush.msra.mxu0 0.0
      %1295 = vmatpush.msra.mxu0 0.0
      %1296 = vmatpush.msra.mxu0 0.0
      %1297 = vmatpush.msra.mxu0 0.0
      %1298 = vmatpush.msra.mxu0 %v1293
      %1299 = vmatpush.msra.mxu0 %v1292
      %1300 = vmatpush.msra.mxu0 %v1291
      %1301 = vmatpush.msra.mxu0 %v1290
      %1302 = vmatpush.msra.mxu0 %v1289
      %1303 = vmatpush.msra.mxu0 %v1288
      %1304 = vmatpush.msra.mxu0 %v1287
      %1305 = vmatpush.msra.mxu0 %v1286
      %1306 = vmatpush.msra.mxu0 %v1285
      %1307 = vmatpush.msra.mxu0 %v1284
      %1308 = vmatpush.msra.mxu0 %v1283
      %1309 = vmatpush.msra.mxu0 %v1282
      %1310 = vmatmul.f32.gmra.mxu0 %v1215
      %v1311 = vpop.f32.mrf.mxu0
      %v1312 = vadd.f32 0.0, %v1311
      %1313 = vmatmul.f32.gmra.mxu0 %v1218
      %v1314 = vpop.f32.mrf.mxu0
      %v1315 = vadd.f32 0.0, %v1314
      %1316 = vdwg.mxu0
      %v1317 = vmax.f32 %v1279, %v1312
      %v1318 = vmax.f32 %v1280, %v1315
      %s1319 = scalar_lea.vmem %s3, 288
      %v1320 = vld [vmem:[%s1319] sm:$0xff]
      %v1321 = vld [vmem:[%s1319 + $0x8] sm:$0xff]
      %v1322 = vld [vmem:[%s1319 + $0x10] sm:$0xff]
      %v1323 = vld [vmem:[%s1319 + $0x18] sm:$0xff]
      %v1324 = vld [vmem:[%s1319 + $0x20] sm:$0xff]
      %v1325 = vld [vmem:[%s1319 + $0x28] sm:$0xff]
      %v1326 = vld [vmem:[%s1319 + $0x30] sm:$0xff]
      %v1327 = vld [vmem:[%s1319 + $0x38] sm:$0xff]
      %v1328 = vld [vmem:[%s1319 + $0x40] sm:$0xff]
      %v1329 = vld [vmem:[%s1319 + $0x48] sm:$0xff]
      %v1330 = vld [vmem:[%s1319 + $0x50] sm:$0xff]
      %v1331 = vld [vmem:[%s1319 + $0x58] sm:$0xff]
      %1332 = vmatpush.msra.mxu0 0.0
      %1333 = vmatpush.msra.mxu0 0.0
      %1334 = vmatpush.msra.mxu0 0.0
      %1335 = vmatpush.msra.mxu0 0.0
      %1336 = vmatpush.msra.mxu0 %v1331
      %1337 = vmatpush.msra.mxu0 %v1330
      %1338 = vmatpush.msra.mxu0 %v1329
      %1339 = vmatpush.msra.mxu0 %v1328
      %1340 = vmatpush.msra.mxu0 %v1327
      %1341 = vmatpush.msra.mxu0 %v1326
      %1342 = vmatpush.msra.mxu0 %v1325
      %1343 = vmatpush.msra.mxu0 %v1324
      %1344 = vmatpush.msra.mxu0 %v1323
      %1345 = vmatpush.msra.mxu0 %v1322
      %1346 = vmatpush.msra.mxu0 %v1321
      %1347 = vmatpush.msra.mxu0 %v1320
      %1348 = vmatmul.f32.gmra.mxu0 %v1215
      %v1349 = vpop.f32.mrf.mxu0
      %v1350 = vadd.f32 0.0, %v1349
      %1351 = vmatmul.f32.gmra.mxu0 %v1218
      %v1352 = vpop.f32.mrf.mxu0
      %v1353 = vadd.f32 0.0, %v1352
      %1354 = vdwg.mxu0
      %v1355 = vmax.f32 %v1317, %v1350
      %v1356 = vmax.f32 %v1318, %v1353
      %v1357 = vmax.f32 %v1355, 0.0
      %v1358 = vmax.f32 %v1356, 0.0
      %vm1359 = vcmask 130048
      %1360 = vst.msk [vmem:[%s197] sm:$0xff] %vm1359, %v1357
      %1361 = vst.msk [vmem:[%s197 + $0x8] sm:$0xff] %vm1359, %v1358
      %p1362 = scmp.lt.s32.totalorder %s15, 1
      %s1363 = scalar_select %p1362, %s15, 1
      %s1364 = smul.addr %s1363, 2
      %s1365 = smul.addr %s1364, 8
      %s1366 = scalar_lea.vmem %s4, %s1365
      // Predicated region
      $region37: #{forward.4} parent=35 // pred_check
        %p1367 = pneg %p122
      $region38: #{forward.4} parent=35 // pred_check_branch
        %1369 = sbr.rel (%p1367) target = $region40
      $region39: #{forward.4} parent=35 // pred_region
        _
      $region40: #{forward.4} parent=35 // pred_fallthru
        _
    $region36: #{forward.4} parent=5 // pred_fallthru
      _
    %p1370 = scmp.le.s32.totalorder 2, %s10
    // Predicated region
    $region41: #{forward.4} parent=5 // pred_check
      %p1371 = pneg %p1370
    $region42: #{forward.4} parent=5 // pred_check_branch
      %1373 = sbr.rel (%p1371) target = $region44
    $region43: #{forward.4} parent=5 // pred_region
      %s1374 = ssub.s32 %s10, 2
      // Predicated region
      $region45: #{forward.4} parent=43 // pred_check
        %p1375 = pneg %p128
      $region46: #{forward.4} parent=43 // pred_check_branch
        %1377 = sbr.rel (%p1375) target = $region48
      $region47: #{forward.4} parent=43 // pred_region
        %p1378 = scmp.lt.s32.totalorder %s16, 1
        %s1379 = scalar_select %p1378, %s16, 1
        %s1380 = smul.addr %s1379, 2
        %s1381 = smul.addr %s1380, 8
        %s1382 = scalar_lea.vmem %s4, %s1381
      $region48: #{forward.4} parent=43 // pred_fallthru
        _
    $region44: #{forward.4} parent=5 // pred_fallthru
      _
  $region6: #{forward.4} parent=0 // loop_footer
    %s14 = sadd.s32 1, %s10
  $region7: #{forward.4} parent=0 // loop_footer_branch
    %9 = sbr.rel target = $region3
  $region8: #{forward.4} parent=0 // loop_exit
    _

// kernel: forward.5
$region0: #{forward.5}
  #allocation0 [shape = 'u32[]', space=smem, size = 0x4, offset = 0x4, fixed_abs, tag = 'smem constant byte address 0x4 - core index']
  #allocation1 [shape = 'u32[72,128]{1,0:T(1,128)}', space=vmem, size = 0x9000, scoped, tag = 'internal scratch']
  %s0 = inlined_call_operand.vmem [shape: f32[2,256], index: 0, kind: input, shape index: {}]
  %s1 = inlined_call_operand.vmem [shape: f32[256,120], index: 1, kind: input, shape index: {}]
  %s2 = inlined_call_operand.vmem [shape: f32[1,120], index: 2, kind: input, shape index: {}]
  %s3 = inlined_call_operand.vmem [shape: f32[120,84], index: 3, kind: input, shape index: {}]
  %s4 = inlined_call_operand.vmem [shape: f32[1,84], index: 4, kind: input, shape index: {}]
  %s5 = inlined_call_operand.vmem [shape: f32[84,10], index: 5, kind: input, shape index: {}]
  %s6 = inlined_call_operand.vmem [shape: f32[1,10], index: 6, kind: input, shape index: {}]
  %s7 = inlined_call_operand.hbm [shape: f32[2,10], index: 7, kind: output, shape index: {}]
  %s8 = sld [smem:[#allocation0]]
  $region38: #{forward.5} parent=0
    _
  %s10 = ssub.s32 1, %s8
  %s11 = scalar_select 0, %s10, %s8
  $region1: #{forward.5} parent=0
    #allocation2 [shape = 'u8[1024]{0}', space=vmem, size = 0x400, scoped, tag = 'output window, operand 0, single buffered']
    #allocation3 [shape = 's32[1]{0}', space=sflag, size = 0x4, scoped, tag = 'scoped memory for forward.5']
    %12 = vsyncpa [#allocation3], 0
    // Predicated region
    $region2: #{forward.5} parent=1 // pred_check
      _
    $region3: #{forward.5} parent=1 // pred_check_branch
      %14 = sbr.rel (0) target = $region5
    $region4: #{forward.5} parent=1 // pred_region
      _
    $region5: #{forward.5} parent=1 // pred_fallthru
      _
    // Predicated region
    $region6: #{forward.5} parent=1 // pred_check
      _
    $region7: #{forward.5} parent=1 // pred_check_branch
      %16 = sbr.rel (0) target = $region9
    $region8: #{forward.5} parent=1 // pred_region
      _
    $region9: #{forward.5} parent=1 // pred_fallthru
      _
    // Predicated region
    $region10: #{forward.5} parent=1 // pred_check
      _
    $region11: #{forward.5} parent=1 // pred_check_branch
      %18 = sbr.rel (0) target = $region13
    $region12: #{forward.5} parent=1 // pred_region
      _
    $region13: #{forward.5} parent=1 // pred_fallthru
      _
    // Predicated region
    $region14: #{forward.5} parent=1 // pred_check
      _
    $region15: #{forward.5} parent=1 // pred_check_branch
      %20 = sbr.rel (0) target = $region17
    $region16: #{forward.5} parent=1 // pred_region
      _
    $region17: #{forward.5} parent=1 // pred_fallthru
      _
    // Predicated region
    $region18: #{forward.5} parent=1 // pred_check
      _
    $region19: #{forward.5} parent=1 // pred_check_branch
      %22 = sbr.rel (0) target = $region21
    $region20: #{forward.5} parent=1 // pred_region
      _
    $region21: #{forward.5} parent=1 // pred_fallthru
      _
    // Predicated region
    $region22: #{forward.5} parent=1 // pred_check
      _
    $region23: #{forward.5} parent=1 // pred_check_branch
      %24 = sbr.rel (0) target = $region25
    $region24: #{forward.5} parent=1 // pred_region
      _
    $region25: #{forward.5} parent=1 // pred_fallthru
      _
    // Predicated region
    $region26: #{forward.5} parent=1 // pred_check
      _
    $region27: #{forward.5} parent=1 // pred_check_branch
      %26 = sbr.rel (0) target = $region29
    $region28: #{forward.5} parent=1 // pred_region
      _
    $region29: #{forward.5} parent=1 // pred_fallthru
      _
    %v27 = vld [vmem:[%s0] sm:$0xf]
    %v28 = vld [vmem:[%s1] sm:$0xff]
    %v29 = vld [vmem:[%s1 + $0x8] sm:$0xff]
    %v30 = vld [vmem:[%s1 + $0x10] sm:$0xff]
    %v31 = vld [vmem:[%s1 + $0x18] sm:$0xff]
    %v32 = vld [vmem:[%s1 + $0x20] sm:$0xff]
    %v33 = vld [vmem:[%s1 + $0x28] sm:$0xff]
    %v34 = vld [vmem:[%s1 + $0x30] sm:$0xff]
    %v35 = vld [vmem:[%s1 + $0x38] sm:$0xff]
    %v36 = vld [vmem:[%s1 + $0x40] sm:$0xff]
    %v37 = vld [vmem:[%s1 + $0x48] sm:$0xff]
    %v38 = vld [vmem:[%s1 + $0x50] sm:$0xff]
    %v39 = vld [vmem:[%s1 + $0x58] sm:$0xff]
    %v40 = vld [vmem:[%s1 + $0x60] sm:$0xff]
    %v41 = vld [vmem:[%s1 + $0x68] sm:$0xff]
    %v42 = vld [vmem:[%s1 + $0x70] sm:$0xff]
    %v43 = vld [vmem:[%s1 + $0x78] sm:$0xff]
    %v44 = vld [vmem:[%s1 + $0x80] sm:$0xff]
    %v45 = vld [vmem:[%s1 + $0x88] sm:$0xff]
    %v46 = vld [vmem:[%s1 + $0x90] sm:$0xff]
    %v47 = vld [vmem:[%s1 + $0x98] sm:$0xff]
    %v48 = vld [vmem:[%s1 + $0xa0] sm:$0xff]
    %v49 = vld [vmem:[%s1 + $0xa8] sm:$0xff]
    %v50 = vld [vmem:[%s1 + $0xb0] sm:$0xff]
    %v51 = vld [vmem:[%s1 + $0xb8] sm:$0xff]
    %v52 = vld [vmem:[%s1 + $0xc0] sm:$0xff]
    %v53 = vld [vmem:[%s1 + $0xc8] sm:$0xff]
    %v54 = vld [vmem:[%s1 + $0xd0] sm:$0xff]
    %v55 = vld [vmem:[%s1 + $0xd8] sm:$0xff]
    %v56 = vld [vmem:[%s1 + $0xe0] sm:$0xff]
    %v57 = vld [vmem:[%s1 + $0xe8] sm:$0xff]
    %v58 = vld [vmem:[%s1 + $0xf0] sm:$0xff]
    %v59 = vld [vmem:[%s1 + $0xf8] sm:$0xff]
    %v60 = vld [vmem:[%s2] sm:$0x1]
    %v62 = vperm.slane %v60, 0
    %65 = vst [vmem:[#allocation1] ss:$4 sm:$0xff] %v27
    %v66 = vld.sshfl [vmem:[#allocation1] sm:$0xff pattern:$0x73625140]
    %v67 = vld.sshfl [vmem:[#allocation1 + $0x8] sm:$0xff pattern:$0x73625140]
    %70 = vmatpush.msra.mxu0 %v43
    %71 = vmatpush.msra.mxu0 %v42
    %72 = vmatpush.msra.mxu0 %v41
    %73 = vmatpush.msra.mxu0 %v40
    %74 = vmatpush.msra.mxu0 %v39
    %75 = vmatpush.msra.mxu0 %v38
    %76 = vmatpush.msra.mxu0 %v37
    %77 = vmatpush.msra.mxu0 %v36
    %78 = vmatpush.msra.mxu0 %v35
    %79 = vmatpush.msra.mxu0 %v34
    %80 = vmatpush.msra.mxu0 %v33
    %81 = vmatpush.msra.mxu0 %v32
    %82 = vmatpush.msra.mxu0 %v31
    %83 = vmatpush.msra.mxu0 %v30
    %84 = vmatpush.msra.mxu0 %v29
    %85 = vmatpush.msra.mxu0 %v28
    %86 = vmatmul.f32.gmra.mxu0 %v66
    %v87 = vpop.f32.mrf.mxu0
    %v88 = vadd.f32 %v62, %v87
    %89 = vdwg.mxu0
    %90 = vmatpush.msra.mxu0 %v59
    %91 = vmatpush.msra.mxu0 %v58
    %92 = vmatpush.msra.mxu0 %v57
    %93 = vmatpush.msra.mxu0 %v56
    %94 = vmatpush.msra.mxu0 %v55
    %95 = vmatpush.msra.mxu0 %v54
    %96 = vmatpush.msra.mxu0 %v53
    %97 = vmatpush.msra.mxu0 %v52
    %98 = vmatpush.msra.mxu0 %v51
    %99 = vmatpush.msra.mxu0 %v50
    %100 = vmatpush.msra.mxu0 %v49
    %101 = vmatpush.msra.mxu0 %v48
    %102 = vmatpush.msra.mxu0 %v47
    %103 = vmatpush.msra.mxu0 %v46
    %104 = vmatpush.msra.mxu0 %v45
    %105 = vmatpush.msra.mxu0 %v44
    %106 = vmatmul.f32.gmra.mxu0 %v67
    %v107 = vpop.f32.mrf.mxu0
    %v108 = vadd.f32 %v88, %v107
    %109 = vdwg.mxu0
    %v110 = vmax.f32 %v108, 0.0
    %v111 = vld [vmem:[%s3] sm:$0xff]
    %v112 = vld [vmem:[%s3 + $0x8] sm:$0xff]
    %v113 = vld [vmem:[%s3 + $0x10] sm:$0xff]
    %v114 = vld [vmem:[%s3 + $0x18] sm:$0xff]
    %v115 = vld [vmem:[%s3 + $0x20] sm:$0xff]
    %v116 = vld [vmem:[%s3 + $0x28] sm:$0xff]
    %v117 = vld [vmem:[%s3 + $0x30] sm:$0xff]
    %v118 = vld [vmem:[%s3 + $0x38] sm:$0xff]
    %v119 = vld [vmem:[%s3 + $0x40] sm:$0xff]
    %v120 = vld [vmem:[%s3 + $0x48] sm:$0xff]
    %v121 = vld [vmem:[%s3 + $0x50] sm:$0xff]
    %v122 = vld [vmem:[%s3 + $0x58] sm:$0xff]
    %v123 = vld [vmem:[%s3 + $0x60] sm:$0xff]
    %v124 = vld [vmem:[%s3 + $0x68] sm:$0xff]
    %v125 = vld [vmem:[%s3 + $0x70] sm:$0xff]
    %v126 = vld [vmem:[%s4] sm:$0x1]
    %v128 = vperm.slane %v126, 0
    %vm130 = vcmask 982016
    %v132 = vsel %vm130, %v110, 0
    %134 = vmatpush.msra.mxu0 0.0
    %135 = vmatpush.msra.mxu0 %v125
    %136 = vmatpush.msra.mxu0 %v124
    %137 = vmatpush.msra.mxu0 %v123
    %138 = vmatpush.msra.mxu0 %v122
    %139 = vmatpush.msra.mxu0 %v121
    %140 = vmatpush.msra.mxu0 %v120
    %141 = vmatpush.msra.mxu0 %v119
    %142 = vmatpush.msra.mxu0 %v118
    %143 = vmatpush.msra.mxu0 %v117
    %144 = vmatpush.msra.mxu0 %v116
    %145 = vmatpush.msra.mxu0 %v115
    %146 = vmatpush.msra.mxu0 %v114
    %147 = vmatpush.msra.mxu0 %v113
    %148 = vmatpush.msra.mxu0 %v112
    %149 = vmatpush.msra.mxu0 %v111
    %150 = vmatmul.f32.gmra.mxu0 %v132
    %v151 = vpop.f32.mrf.mxu0
    %v152 = vadd.f32 %v128, %v151
    %153 = vdwg.mxu0
    %v154 = vmax.f32 %v152, 0.0
    %v155 = vld [vmem:[%s5] sm:$0xff]
    %v156 = vld [vmem:[%s5 + $0x8] sm:$0xff]
    %v157 = vld [vmem:[%s5 + $0x10] sm:$0xff]
    %v158 = vld [vmem:[%s5 + $0x18] sm:$0xff]
    %v159 = vld [vmem:[%s5 + $0x20] sm:$0xff]
    %v160 = vld [vmem:[%s5 + $0x28] sm:$0xff]
    %v161 = vld [vmem:[%s5 + $0x30] sm:$0xff]
    %v162 = vld [vmem:[%s5 + $0x38] sm:$0xff]
    %v163 = vld [vmem:[%s5 + $0x40] sm:$0xff]
    %v164 = vld [vmem:[%s5 + $0x48] sm:$0xff]
    %v165 = vld [vmem:[%s5 + $0x50] sm:$0xf]
    %v166 = vld [vmem:[%s6] sm:$0x1]
    %v168 = vperm.slane %v166, 0
    %vm170 = vcmask 687104
    %v172 = vsel %vm170, %v154, 0
    %vm174 = vcmask 1043456
    %v176 = vsel %vm174, %v165, 0
    %178 = vmatpush.msra.mxu0 0.0
    %179 = vmatpush.msra.mxu0 0.0
    %180 = vmatpush.msra.mxu0 0.0
    %181 = vmatpush.msra.mxu0 0.0
    %182 = vmatpush.msra.mxu0 0.0
    %183 = vmatpush.msra.mxu0 %v176
    %184 = vmatpush.msra.mxu0 %v164
    %185 = vmatpush.msra.mxu0 %v163
    %186 = vmatpush.msra.mxu0 %v162
    %187 = vmatpush.msra.mxu0 %v161
    %188 = vmatpush.msra.mxu0 %v160
    %189 = vmatpush.msra.mxu0 %v159
    %190 = vmatpush.msra.mxu0 %v158
    %191 = vmatpush.msra.mxu0 %v157
    %192 = vmatpush.msra.mxu0 %v156
    %193 = vmatpush.msra.mxu0 %v155
    %194 = vmatmul.f32.gmra.mxu0 %v172
    %v195 = vpop.f32.mrf.mxu0
    %v196 = vadd.f32 %v168, %v195
    %197 = vdwg.mxu0
    %v198 = vmax.f32 %v196, 0.0
    %vm199 = vcmask 74752
    %200 = vst.msk [vmem:[#allocation2] sm:$0x3] %vm199, %v198
    // Predicated region
    $region30: #{forward.5} parent=1 // pred_check
      _
    $region31: #{forward.5} parent=1 // pred_check_branch
      %202 = sbr.rel (0) target = $region33
    $region32: #{forward.5} parent=1 // pred_region
      %204 = vsyncadd [#allocation3], 0
      %s206 = sshll.u32 [#allocation2], 4
      %s207 = int_to_ptr.vmem [resolvable:$true] %s206
      %s208 = sshll.u32 %s7, 4
      %s209 = int_to_ptr.hbm [resolvable:$true] %s208
      %211 = dma.vmem_to_hbm [thread:$0]  %s207, 32, %s209, [#allocation3]
    $region33: #{forward.5} parent=1 // pred_fallthru
      _
    // Predicated region
    $region34: #{forward.5} parent=1 // pred_check
      _
    $region35: #{forward.5} parent=1 // pred_check_branch
      %213 = sbr.rel (0) target = $region37
    $region36: #{forward.5} parent=1 // pred_region
      %215 = dma.done [#allocation3], 32
    $region37: #{forward.5} parent=1 // pred_fallthru
      _
    %216 = vsyncpa [#allocation3], 1

// kernel: forward.3
$region0: #{forward.3}
  #allocation0 [shape = 'u32[]', space=smem, size = 0x4, offset = 0x4, fixed_abs, tag = 'smem constant byte address 0x4 - core index']
  #allocation1 [shape = 'u32[72,128]{1,0:T(1,128)}', space=vmem, size = 0x9000, scoped, tag = 'internal scratch']
  %s0 = inlined_call_operand.vmem [shape: f32[2,1,788], index: 0, kind: input, shape index: {}]
  %s1 = inlined_call_operand.vmem [shape: f32[25,6,1], index: 1, kind: input, shape index: {}]
  %s2 = inlined_call_operand.vmem [shape: f32[6,1], index: 2, kind: input, shape index: {}]
  %s3 = inlined_call_operand.vmem [shape: f32[4,672,148], index: 3, kind: input, shape index: {}]
  %s4 = inlined_call_operand.vmem [shape: f32[2,6,148], index: 4, kind: output, shape index: {}]
  %s5 = sld [smem:[#allocation0]]
  $region49: #{forward.3} parent=0
    _
  %s7 = ssub.s32 1, %s5
  %s8 = scalar_select 0, %s7, %s5
  loop: start=0, step=1, limit=4
  $region2: #{forward.3} parent=0 // loop_pre_header
    _
  $region3: #{forward.3} parent=0 // loop_header
    %s10 = sphi 0, %s14
    %p11 = scmp.ge.s32.totalorder %s10, 4
    %s20 = sphi 0, %s22
    %s23 = sphi 0, %s20
    %s24 = sphi 0, %s23
    %s40 = sphi 0, %s24
    %s44 = sphi 0, %s44
    %s46 = sphi 0, %s44
    %s47 = sphi 0, %s46
    %s61 = sphi 0, %s47
    %s65 = sphi 0, %s65
    %s67 = sphi 0, %s65
    %s68 = sphi 0, %s67
    %s82 = sphi 0, %s68
    %s86 = sphi 0, %s86
    %s88 = sphi 0, %s86
    %s89 = sphi 0, %s88
    %s103 = sphi 0, %s89
    %s109 = sphi 0, %s111
    %s112 = sphi 0, %s109
    %s113 = sphi 0, %s112
    %s129 = sphi 0, %s113
  $region4: #{forward.3} parent=0 // loop_header_branch
    %13 = sbr.rel (%p11) target = $region8
  $region5: #{forward.3} parent=0 // loop_body
    %s15 = ssub.s32 %s10, 1
    %s16 = ssub.s32 %s10, 2
    %s17 = sadd.s32 %s10, 1
    %s18 = ssub.s32 %s10, %s17
    %p19 = scmp.eq.s32.totalorder %s18, 0
    %s21 = sadd.s32 %s20, 1
    %s22 = scalar_select %p19, %s20, %s21
    %p25 = pneg %p19
    %p26 = scmp.eq.s32.totalorder %s10, 1
    %p27 = por %p25, %p26
    %p28 = scmp.ne.s32.totalorder %s20, %s23
    %p29 = scmp.eq.s32.totalorder %s10, 0
    %p30 = por %p28, %p29
    %p31 = scmp.ne.s32.totalorder %s20, %s23
    %p32 = scmp.eq.s32.totalorder %s15, 1
    %p33 = por %p31, %p32
    %p34 = scmp.ne.s32.totalorder %s23, %s24
    %p35 = scmp.eq.s32.totalorder %s15, 0
    %p36 = por %p34, %p35
    %p37 = scmp.ne.s32.totalorder %s23, %s24
    %p38 = scmp.eq.s32.totalorder %s16, 1
    %p39 = por %p37, %p38
    %p41 = scmp.ne.s32.totalorder %s24, %s40
    %p42 = scmp.eq.s32.totalorder %s16, 0
    %p43 = por %p41, %p42
    %s45 = sadd.s32 %s44, 1
    %p48 = scmp.eq.s32.totalorder %s10, 1
    %p49 = scmp.ne.s32.totalorder %s44, %s46
    %p50 = scmp.eq.s32.totalorder %s10, 0
    %p51 = por %p49, %p50
    %p52 = scmp.ne.s32.totalorder %s44, %s46
    %p53 = scmp.eq.s32.totalorder %s15, 1
    %p54 = por %p52, %p53
    %p55 = scmp.ne.s32.totalorder %s46, %s47
    %p56 = scmp.eq.s32.totalorder %s15, 0
    %p57 = por %p55, %p56
    %p58 = scmp.ne.s32.totalorder %s46, %s47
    %p59 = scmp.eq.s32.totalorder %s16, 1
    %p60 = por %p58, %p59
    %p62 = scmp.ne.s32.totalorder %s47, %s61
    %p63 = scmp.eq.s32.totalorder %s16, 0
    %p64 = por %p62, %p63
    %s66 = sadd.s32 %s65, 1
    %p69 = scmp.eq.s32.totalorder %s10, 1
    %p70 = scmp.ne.s32.totalorder %s65, %s67
    %p71 = scmp.eq.s32.totalorder %s10, 0
    %p72 = por %p70, %p71
    %p73 = scmp.ne.s32.totalorder %s65, %s67
    %p74 = scmp.eq.s32.totalorder %s15, 1
    %p75 = por %p73, %p74
    %p76 = scmp.ne.s32.totalorder %s67, %s68
    %p77 = scmp.eq.s32.totalorder %s15, 0
    %p78 = por %p76, %p77
    %p79 = scmp.ne.s32.totalorder %s67, %s68
    %p80 = scmp.eq.s32.totalorder %s16, 1
    %p81 = por %p79, %p80
    %p83 = scmp.ne.s32.totalorder %s68, %s82
    %p84 = scmp.eq.s32.totalorder %s16, 0
    %p85 = por %p83, %p84
    %s87 = sadd.s32 %s86, 1
    %p90 = scmp.eq.s32.totalorder %s10, 1
    %p91 = scmp.ne.s32.totalorder %s86, %s88
    %p92 = scmp.eq.s32.totalorder %s10, 0
    %p93 = por %p91, %p92
    %p94 = scmp.ne.s32.totalorder %s86, %s88
    %p95 = scmp.eq.s32.totalorder %s15, 1
    %p96 = por %p94, %p95
    %p97 = scmp.ne.s32.totalorder %s88, %s89
    %p98 = scmp.eq.s32.totalorder %s15, 0
    %p99 = por %p97, %p98
    %p100 = scmp.ne.s32.totalorder %s88, %s89
    %p101 = scmp.eq.s32.totalorder %s16, 1
    %p102 = por %p100, %p101
    %p104 = scmp.ne.s32.totalorder %s89, %s103
    %p105 = scmp.eq.s32.totalorder %s16, 0
    %p106 = por %p104, %p105
    %s107 = ssub.s32 %s10, %s17
    %p108 = scmp.eq.s32.totalorder %s107, 0
    %s110 = sadd.s32 %s109, 1
    %s111 = scalar_select %p108, %s109, %s110
    %p114 = pneg %p108
    %p115 = scmp.eq.s32.totalorder %s10, 1
    %p116 = por %p114, %p115
    %p117 = scmp.ne.s32.totalorder %s109, %s112
    %p118 = scmp.eq.s32.totalorder %s10, 0
    %p119 = por %p117, %p118
    %p120 = scmp.ne.s32.totalorder %s109, %s112
    %p121 = scmp.eq.s32.totalorder %s15, 1
    %p122 = por %p120, %p121
    %p123 = scmp.ne.s32.totalorder %s112, %s113
    %p124 = scmp.eq.s32.totalorder %s15, 0
    %p125 = por %p123, %p124
    %p126 = scmp.ne.s32.totalorder %s112, %s113
    %p127 = scmp.eq.s32.totalorder %s16, 1
    %p128 = por %p126, %p127
    %p130 = scmp.ne.s32.totalorder %s113, %s129
    %p131 = scmp.eq.s32.totalorder %s16, 0
    %p132 = por %p130, %p131
    %p133 = scmp.le.s32.totalorder 1, %s10
    %p134 = scmp.lt.s32.totalorder %s10, 3
    %p135 = pnand %p133, %p134
    %p136 = pneg %p135
    // Predicated region
    $region9: #{forward.3} parent=5 // pred_check
      _
    $region10: #{forward.3} parent=5 // pred_check_branch
      %138 = sbr.rel (%p135) target = $region12
    $region11: #{forward.3} parent=5 // pred_region
      %s139 = ssub.s32 %s10, 1
      // Predicated region
      $region13: #{forward.3} parent=11 // pred_check
        %p140 = pneg %p57
      $region14: #{forward.3} parent=11 // pred_check_branch
        %142 = sbr.rel (%p140) target = $region16
      $region15: #{forward.3} parent=11 // pred_region
        _
      $region16: #{forward.3} parent=11 // pred_fallthru
        _
      // Predicated region
      $region17: #{forward.3} parent=11 // pred_check
        %p143 = pneg %p78
      $region18: #{forward.3} parent=11 // pred_check_branch
        %145 = sbr.rel (%p143) target = $region20
      $region19: #{forward.3} parent=11 // pred_region
        _
      $region20: #{forward.3} parent=11 // pred_fallthru
        _
      // Predicated region
      $region21: #{forward.3} parent=11 // pred_check
        %p146 = pneg %p99
      $region22: #{forward.3} parent=11 // pred_check_branch
        %148 = sbr.rel (%p146) target = $region24
      $region23: #{forward.3} parent=11 // pred_region
        _
      $region24: #{forward.3} parent=11 // pred_fallthru
        _
    $region12: #{forward.3} parent=5 // pred_fallthru
      _
    %p149 = scmp.lt.s32.totalorder %s10, 2
    // Predicated region
    $region25: #{forward.3} parent=5 // pred_check
      %p150 = pneg %p149
    $region26: #{forward.3} parent=5 // pred_check_branch
      %152 = sbr.rel (%p150) target = $region28
    $region27: #{forward.3} parent=5 // pred_region
      // Predicated region
      $region29: #{forward.3} parent=27 // pred_check
        %p153 = pneg %p30
      $region30: #{forward.3} parent=27 // pred_check_branch
        %155 = sbr.rel (%p153) target = $region32
      $region31: #{forward.3} parent=27 // pred_region
        %p156 = scmp.lt.s32.totalorder %s10, 1
        %s157 = scalar_select %p156, %s10, 1
        %s158 = smul.addr %s157, 7
        %s159 = scalar_lea.vmem %s0, %s158
      $region32: #{forward.3} parent=27 // pred_fallthru
        _
    $region28: #{forward.3} parent=5 // pred_fallthru
      _
    %p160 = scmp.le.s32.totalorder 1, %s10
    %p161 = scmp.lt.s32.totalorder %s10, 3
    %p162 = pnand %p160, %p161
    %p163 = pneg %p162
    // Predicated region
    $region33: #{forward.3} parent=5 // pred_check
      _
    $region34: #{forward.3} parent=5 // pred_check_branch
      %165 = sbr.rel (%p162) target = $region36
    $region35: #{forward.3} parent=5 // pred_region
      %s166 = ssub.s32 %s10, 1
      %p167 = scmp.lt.s32.totalorder %s15, 1
      %s168 = scalar_select %p167, %s15, 1
      %s169 = smul.addr %s168, 7
      %s170 = scalar_lea.vmem %s0, %s169
      %p171 = pneg %p36
      %p172 = pneg %p33
      %p173 = pneg %p57
      %p174 = pneg %p54
      %p175 = pneg %p78
      %p176 = pneg %p75
      %p177 = pneg %p99
      %p178 = pneg %p96
      %p179 = pneg %p125
      %p180 = pneg %p122
      %p181 = scmp.lt.s32.totalorder %s15, 1
      %s182 = scalar_select %p181, %s15, 1
      %s183 = smul.addr %s182, 2
      %s184 = smul.addr %s183, 8
      %s185 = scalar_lea.vmem %s4, %s184
      %p186 = scmp.lt.s32.totalorder %s15, 1
      %s187 = scalar_select %p186, %s15, 1
      %s188 = smul.addr %s187, 7
      %s189 = scalar_lea.vmem %s0, %s188
      %p190 = scmp.lt.s32.totalorder %s15, 1
      %s191 = scalar_select %p190, %s15, 1
      %s192 = smul.addr %s191, 2
      %s193 = smul.addr %s192, 8
      %s194 = scalar_lea.vmem %s4, %s193
      %v195 = vld [vmem:[%s189] sm:$0x7f]
      %v196 = vld [vmem:[%s1] sm:$0x3f]
      %198 = vset.pattern.permute.xlu0 0
      %199 = vperm.xlu0 %198, %v196
      %v200 = vpop.permute.xlu0 %199
      %v203 = vperm.slane %v195, 0
      %v204 = vperm.slane %v195, 1
      %v205 = vperm.slane %v195, 2
      %v206 = vperm.slane %v195, 3
      %v207 = vperm.slane %v195, 4
      %v208 = vperm.slane %v195, 5
      %v215 = vmul.f32 %v200, %v203
      %v216 = vmul.f32 %v200, %v204
      %v217 = vmul.f32 %v200, %v205
      %v218 = vmul.f32 %v200, %v206
      %v219 = vmul.f32 %v200, %v207
      %v220 = vmul.f32 %v200, %v208
      %s221 = scalar_lea.vmem %s1, 8
      %v222 = vld [vmem:[%s221] sm:$0x3f]
      %224 = vset.pattern.permute.xlu0 0
      %225 = vperm.xlu0 %224, %v222
      %v226 = vpop.permute.xlu0 %225
      %v228 = vmul.f32 %v226, %v203
      %v229 = vmul.f32 %v226, %v204
      %v230 = vmul.f32 %v226, %v205
      %v231 = vmul.f32 %v226, %v206
      %v232 = vmul.f32 %v226, %v207
      %v233 = vmul.f32 %v226, %v208
      %240 = vrot.lane.b32.xlu0 %v228, 127
      %v241 = vpop.permute.xlu0 %240
      %242 = vrot.lane.b32.xlu0 %v229, 127
      %v243 = vpop.permute.xlu0 %242
      %244 = vrot.lane.b32.xlu0 %v230, 127
      %v245 = vpop.permute.xlu0 %244
      %246 = vrot.lane.b32.xlu0 %v231, 127
      %v247 = vpop.permute.xlu0 %246
      %248 = vrot.lane.b32.xlu0 %v232, 127
      %v249 = vpop.permute.xlu0 %248
      %250 = vrot.lane.b32.xlu0 %v233, 127
      %v251 = vpop.permute.xlu0 %250
      %vm252 = vcmask 1039360
      %v253 = vsel %vm252, %v241, %v243
      %v254 = vsel %vm252, %v243, %v245
      %v255 = vsel %vm252, %v245, %v247
      %v256 = vsel %vm252, %v247, %v249
      %v257 = vsel %vm252, %v249, %v251
      %v264 = vadd.f32 %v215, %v253
      %v265 = vadd.f32 %v216, %v254
      %v266 = vadd.f32 %v217, %v255
      %v267 = vadd.f32 %v218, %v256
      %v268 = vadd.f32 %v219, %v257
      %v269 = vadd.f32 %v220, %v251
      %s270 = scalar_lea.vmem %s1, 16
      %v271 = vld [vmem:[%s270] sm:$0x3f]
      %273 = vset.pattern.permute.xlu0 0
      %274 = vperm.xlu0 %273, %v271
      %v275 = vpop.permute.xlu0 %274
      %v277 = vmul.f32 %v275, %v203
      %v278 = vmul.f32 %v275, %v204
      %v279 = vmul.f32 %v275, %v205
      %v280 = vmul.f32 %v275, %v206
      %v281 = vmul.f32 %v275, %v207
      %v282 = vmul.f32 %v275, %v208
      %289 = vrot.lane.b32.xlu0 %v277, 126
      %v290 = vpop.permute.xlu0 %289
      %291 = vrot.lane.b32.xlu0 %v278, 126
      %v292 = vpop.permute.xlu0 %291
      %293 = vrot.lane.b32.xlu0 %v279, 126
      %v294 = vpop.permute.xlu0 %293
      %295 = vrot.lane.b32.xlu0 %v280, 126
      %v296 = vpop.permute.xlu0 %295
      %297 = vrot.lane.b32.xlu0 %v281, 126
      %v298 = vpop.permute.xlu0 %297
      %299 = vrot.lane.b32.xlu0 %v282, 126
      %v300 = vpop.permute.xlu0 %299
      %vm301 = vcmask 1031168
      %v302 = vsel %vm301, %v290, %v292
      %v303 = vsel %vm301, %v292, %v294
      %v304 = vsel %vm301, %v294, %v296
      %v305 = vsel %vm301, %v296, %v298
      %v306 = vsel %vm301, %v298, %v300
      %v313 = vadd.f32 %v264, %v302
      %v314 = vadd.f32 %v265, %v303
      %v315 = vadd.f32 %v266, %v304
      %v316 = vadd.f32 %v267, %v305
      %v317 = vadd.f32 %v268, %v306
      %v318 = vadd.f32 %v269, %v300
      %s319 = scalar_lea.vmem %s1, 24
      %v320 = vld [vmem:[%s319] sm:$0x3f]
      %322 = vset.pattern.permute.xlu0 0
      %323 = vperm.xlu0 %322, %v320
      %v324 = vpop.permute.xlu0 %323
      %v326 = vmul.f32 %v324, %v203
      %v327 = vmul.f32 %v324, %v204
      %v328 = vmul.f32 %v324, %v205
      %v329 = vmul.f32 %v324, %v206
      %v330 = vmul.f32 %v324, %v207
      %v331 = vmul.f32 %v324, %v208
      %338 = vrot.lane.b32.xlu0 %v326, 125
      %v339 = vpop.permute.xlu0 %338
      %340 = vrot.lane.b32.xlu0 %v327, 125
      %v341 = vpop.permute.xlu0 %340
      %342 = vrot.lane.b32.xlu0 %v328, 125
      %v343 = vpop.permute.xlu0 %342
      %344 = vrot.lane.b32.xlu0 %v329, 125
      %v345 = vpop.permute.xlu0 %344
      %346 = vrot.lane.b32.xlu0 %v330, 125
      %v347 = vpop.permute.xlu0 %346
      %348 = vrot.lane.b32.xlu0 %v331, 125
      %v349 = vpop.permute.xlu0 %348
      %vm350 = vcmask 1022976
      %v351 = vsel %vm350, %v339, %v341
      %v352 = vsel %vm350, %v341, %v343
      %v353 = vsel %vm350, %v343, %v345
      %v354 = vsel %vm350, %v345, %v347
      %v355 = vsel %vm350, %v347, %v349
      %v362 = vadd.f32 %v313, %v351
      %v363 = vadd.f32 %v314, %v352
      %v364 = vadd.f32 %v315, %v353
      %v365 = vadd.f32 %v316, %v354
      %v366 = vadd.f32 %v317, %v355
      %v367 = vadd.f32 %v318, %v349
      %s368 = scalar_lea.vmem %s1, 32
      %v369 = vld [vmem:[%s368] sm:$0x3f]
      %371 = vset.pattern.permute.xlu0 0
      %372 = vperm.xlu0 %371, %v369
      %v373 = vpop.permute.xlu0 %372
      %v375 = vmul.f32 %v373, %v203
      %v376 = vmul.f32 %v373, %v204
      %v377 = vmul.f32 %v373, %v205
      %v378 = vmul.f32 %v373, %v206
      %v379 = vmul.f32 %v373, %v207
      %v380 = vmul.f32 %v373, %v208
      %387 = vrot.lane.b32.xlu0 %v375, 124
      %v388 = vpop.permute.xlu0 %387
      %389 = vrot.lane.b32.xlu0 %v376, 124
      %v390 = vpop.permute.xlu0 %389
      %391 = vrot.lane.b32.xlu0 %v377, 124
      %v392 = vpop.permute.xlu0 %391
      %393 = vrot.lane.b32.xlu0 %v378, 124
      %v394 = vpop.permute.xlu0 %393
      %395 = vrot.lane.b32.xlu0 %v379, 124
      %v396 = vpop.permute.xlu0 %395
      %397 = vrot.lane.b32.xlu0 %v380, 124
      %v398 = vpop.permute.xlu0 %397
      %vm399 = vcmask 1014784
      %v400 = vsel %vm399, %v388, %v390
      %v401 = vsel %vm399, %v390, %v392
      %v402 = vsel %vm399, %v392, %v394
      %v403 = vsel %vm399, %v394, %v396
      %v404 = vsel %vm399, %v396, %v398
      %v411 = vadd.f32 %v362, %v400
      %v412 = vadd.f32 %v363, %v401
      %v413 = vadd.f32 %v364, %v402
      %v414 = vadd.f32 %v365, %v403
      %v415 = vadd.f32 %v366, %v404
      %v416 = vadd.f32 %v367, %v398
      %s417 = scalar_lea.vmem %s1, 40
      %v418 = vld [vmem:[%s417] sm:$0x3f]
      %420 = vset.pattern.permute.xlu0 0
      %421 = vperm.xlu0 %420, %v418
      %v422 = vpop.permute.xlu0 %421
      %v424 = vmul.f32 %v422, %v203
      %v425 = vmul.f32 %v422, %v204
      %v426 = vmul.f32 %v422, %v205
      %v427 = vmul.f32 %v422, %v206
      %v428 = vmul.f32 %v422, %v207
      %v429 = vmul.f32 %v422, %v208
      %436 = vrot.lane.b32.xlu0 %v424, 100
      %v437 = vpop.permute.xlu0 %436
      %438 = vrot.lane.b32.xlu0 %v425, 100
      %v439 = vpop.permute.xlu0 %438
      %440 = vrot.lane.b32.xlu0 %v426, 100
      %v441 = vpop.permute.xlu0 %440
      %442 = vrot.lane.b32.xlu0 %v427, 100
      %v443 = vpop.permute.xlu0 %442
      %444 = vrot.lane.b32.xlu0 %v428, 100
      %v445 = vpop.permute.xlu0 %444
      %446 = vrot.lane.b32.xlu0 %v429, 100
      %v447 = vpop.permute.xlu0 %446
      %vm448 = vcmask 818176
      %v449 = vsel %vm448, %v437, %v439
      %v450 = vsel %vm448, %v439, %v441
      %v451 = vsel %vm448, %v441, %v443
      %v452 = vsel %vm448, %v443, %v445
      %v453 = vsel %vm448, %v445, %v447
      %v460 = vadd.f32 %v411, %v449
      %v461 = vadd.f32 %v412, %v450
      %v462 = vadd.f32 %v413, %v451
      %v463 = vadd.f32 %v414, %v452
      %v464 = vadd.f32 %v415, %v453
      %v465 = vadd.f32 %v416, %v447
      %s466 = scalar_lea.vmem %s1, 48
      %v467 = vld [vmem:[%s466] sm:$0x3f]
      %469 = vset.pattern.permute.xlu0 0
      %470 = vperm.xlu0 %469, %v467
      %v471 = vpop.permute.xlu0 %470
      %v473 = vmul.f32 %v471, %v203
      %v474 = vmul.f32 %v471, %v204
      %v475 = vmul.f32 %v471, %v205
      %v476 = vmul.f32 %v471, %v206
      %v477 = vmul.f32 %v471, %v207
      %v478 = vmul.f32 %v471, %v208
      %485 = vrot.lane.b32.xlu0 %v473, 99
      %v486 = vpop.permute.xlu0 %485
      %487 = vrot.lane.b32.xlu0 %v474, 99
      %v488 = vpop.permute.xlu0 %487
      %489 = vrot.lane.b32.xlu0 %v475, 99
      %v490 = vpop.permute.xlu0 %489
      %491 = vrot.lane.b32.xlu0 %v476, 99
      %v492 = vpop.permute.xlu0 %491
      %493 = vrot.lane.b32.xlu0 %v477, 99
      %v494 = vpop.permute.xlu0 %493
      %495 = vrot.lane.b32.xlu0 %v478, 99
      %v496 = vpop.permute.xlu0 %495
      %vm497 = vcmask 809984
      %v498 = vsel %vm497, %v486, %v488
      %v499 = vsel %vm497, %v488, %v490
      %v500 = vsel %vm497, %v490, %v492
      %v501 = vsel %vm497, %v492, %v494
      %v502 = vsel %vm497, %v494, %v496
      %v509 = vadd.f32 %v460, %v498
      %v510 = vadd.f32 %v461, %v499
      %v511 = vadd.f32 %v462, %v500
      %v512 = vadd.f32 %v463, %v501
      %v513 = vadd.f32 %v464, %v502
      %v514 = vadd.f32 %v465, %v496
      %s515 = scalar_lea.vmem %s1, 56
      %v516 = vld [vmem:[%s515] sm:$0x3f]
      %518 = vset.pattern.permute.xlu0 0
      %519 = vperm.xlu0 %518, %v516
      %v520 = vpop.permute.xlu0 %519
      %v522 = vmul.f32 %v520, %v203
      %v523 = vmul.f32 %v520, %v204
      %v524 = vmul.f32 %v520, %v205
      %v525 = vmul.f32 %v520, %v206
      %v526 = vmul.f32 %v520, %v207
      %v527 = vmul.f32 %v520, %v208
      %534 = vrot.lane.b32.xlu0 %v522, 98
      %v535 = vpop.permute.xlu0 %534
      %536 = vrot.lane.b32.xlu0 %v523, 98
      %v537 = vpop.permute.xlu0 %536
      %538 = vrot.lane.b32.xlu0 %v524, 98
      %v539 = vpop.permute.xlu0 %538
      %540 = vrot.lane.b32.xlu0 %v525, 98
      %v541 = vpop.permute.xlu0 %540
      %542 = vrot.lane.b32.xlu0 %v526, 98
      %v543 = vpop.permute.xlu0 %542
      %544 = vrot.lane.b32.xlu0 %v527, 98
      %v545 = vpop.permute.xlu0 %544
      %vm546 = vcmask 801792
      %v547 = vsel %vm546, %v535, %v537
      %v548 = vsel %vm546, %v537, %v539
      %v549 = vsel %vm546, %v539, %v541
      %v550 = vsel %vm546, %v541, %v543
      %v551 = vsel %vm546, %v543, %v545
      %v558 = vadd.f32 %v509, %v547
      %v559 = vadd.f32 %v510, %v548
      %v560 = vadd.f32 %v511, %v549
      %v561 = vadd.f32 %v512, %v550
      %v562 = vadd.f32 %v513, %v551
      %v563 = vadd.f32 %v514, %v545
      %s564 = scalar_lea.vmem %s1, 64
      %v565 = vld [vmem:[%s564] sm:$0x3f]
      %567 = vset.pattern.permute.xlu0 0
      %568 = vperm.xlu0 %567, %v565
      %v569 = vpop.permute.xlu0 %568
      %v571 = vmul.f32 %v569, %v203
      %v572 = vmul.f32 %v569, %v204
      %v573 = vmul.f32 %v569, %v205
      %v574 = vmul.f32 %v569, %v206
      %v575 = vmul.f32 %v569, %v207
      %v576 = vmul.f32 %v569, %v208
      %583 = vrot.lane.b32.xlu0 %v571, 97
      %v584 = vpop.permute.xlu0 %583
      %585 = vrot.lane.b32.xlu0 %v572, 97
      %v586 = vpop.permute.xlu0 %585
      %587 = vrot.lane.b32.xlu0 %v573, 97
      %v588 = vpop.permute.xlu0 %587
      %589 = vrot.lane.b32.xlu0 %v574, 97
      %v590 = vpop.permute.xlu0 %589
      %591 = vrot.lane.b32.xlu0 %v575, 97
      %v592 = vpop.permute.xlu0 %591
      %593 = vrot.lane.b32.xlu0 %v576, 97
      %v594 = vpop.permute.xlu0 %593
      %vm595 = vcmask 793600
      %v596 = vsel %vm595, %v584, %v586
      %v597 = vsel %vm595, %v586, %v588
      %v598 = vsel %vm595, %v588, %v590
      %v599 = vsel %vm595, %v590, %v592
      %v600 = vsel %vm595, %v592, %v594
      %v607 = vadd.f32 %v558, %v596
      %v608 = vadd.f32 %v559, %v597
      %v609 = vadd.f32 %v560, %v598
      %v610 = vadd.f32 %v561, %v599
      %v611 = vadd.f32 %v562, %v600
      %v612 = vadd.f32 %v563, %v594
      %s613 = scalar_lea.vmem %s1, 72
      %v614 = vld [vmem:[%s613] sm:$0x3f]
      %616 = vset.pattern.permute.xlu0 0
      %617 = vperm.xlu0 %616, %v614
      %v618 = vpop.permute.xlu0 %617
      %v620 = vmul.f32 %v618, %v203
      %v621 = vmul.f32 %v618, %v204
      %v622 = vmul.f32 %v618, %v205
      %v623 = vmul.f32 %v618, %v206
      %v624 = vmul.f32 %v618, %v207
      %v625 = vmul.f32 %v618, %v208
      %632 = vrot.lane.b32.xlu0 %v620, 96
      %v633 = vpop.permute.xlu0 %632
      %634 = vrot.lane.b32.xlu0 %v621, 96
      %v635 = vpop.permute.xlu0 %634
      %636 = vrot.lane.b32.xlu0 %v622, 96
      %v637 = vpop.permute.xlu0 %636
      %638 = vrot.lane.b32.xlu0 %v623, 96
      %v639 = vpop.permute.xlu0 %638
      %640 = vrot.lane.b32.xlu0 %v624, 96
      %v641 = vpop.permute.xlu0 %640
      %642 = vrot.lane.b32.xlu0 %v625, 96
      %v643 = vpop.permute.xlu0 %642
      %vm644 = vcmask 785408
      %v645 = vsel %vm644, %v633, %v635
      %v646 = vsel %vm644, %v635, %v637
      %v647 = vsel %vm644, %v637, %v639
      %v648 = vsel %vm644, %v639, %v641
      %v649 = vsel %vm644, %v641, %v643
      %v656 = vadd.f32 %v607, %v645
      %v657 = vadd.f32 %v608, %v646
      %v658 = vadd.f32 %v609, %v647
      %v659 = vadd.f32 %v610, %v648
      %v660 = vadd.f32 %v611, %v649
      %v661 = vadd.f32 %v612, %v643
      %s662 = scalar_lea.vmem %s1, 80
      %v663 = vld [vmem:[%s662] sm:$0x3f]
      %665 = vset.pattern.permute.xlu0 0
      %666 = vperm.xlu0 %665, %v663
      %v667 = vpop.permute.xlu0 %666
      %v669 = vmul.f32 %v667, %v203
      %v670 = vmul.f32 %v667, %v204
      %v671 = vmul.f32 %v667, %v205
      %v672 = vmul.f32 %v667, %v206
      %v673 = vmul.f32 %v667, %v207
      %v674 = vmul.f32 %v667, %v208
      %681 = vrot.lane.b32.xlu0 %v669, 72
      %v682 = vpop.permute.xlu0 %681
      %683 = vrot.lane.b32.xlu0 %v670, 72
      %v684 = vpop.permute.xlu0 %683
      %685 = vrot.lane.b32.xlu0 %v671, 72
      %v686 = vpop.permute.xlu0 %685
      %687 = vrot.lane.b32.xlu0 %v672, 72
      %v688 = vpop.permute.xlu0 %687
      %689 = vrot.lane.b32.xlu0 %v673, 72
      %v690 = vpop.permute.xlu0 %689
      %691 = vrot.lane.b32.xlu0 %v674, 72
      %v692 = vpop.permute.xlu0 %691
      %vm693 = vcmask 588800
      %v694 = vsel %vm693, %v682, %v684
      %v695 = vsel %vm693, %v684, %v686
      %v696 = vsel %vm693, %v686, %v688
      %v697 = vsel %vm693, %v688, %v690
      %v698 = vsel %vm693, %v690, %v692
      %v705 = vadd.f32 %v656, %v694
      %v706 = vadd.f32 %v657, %v695
      %v707 = vadd.f32 %v658, %v696
      %v708 = vadd.f32 %v659, %v697
      %v709 = vadd.f32 %v660, %v698
      %v710 = vadd.f32 %v661, %v692
      %s711 = scalar_lea.vmem %s1, 88
      %v712 = vld [vmem:[%s711] sm:$0x3f]
      %714 = vset.pattern.permute.xlu0 0
      %715 = vperm.xlu0 %714, %v712
      %v716 = vpop.permute.xlu0 %715
      %v718 = vmul.f32 %v716, %v203
      %v719 = vmul.f32 %v716, %v204
      %v720 = vmul.f32 %v716, %v205
      %v721 = vmul.f32 %v716, %v206
      %v722 = vmul.f32 %v716, %v207
      %v723 = vmul.f32 %v716, %v208
      %730 = vrot.lane.b32.xlu0 %v718, 71
      %v731 = vpop.permute.xlu0 %730
      %732 = vrot.lane.b32.xlu0 %v719, 71
      %v733 = vpop.permute.xlu0 %732
      %734 = vrot.lane.b32.xlu0 %v720, 71
      %v735 = vpop.permute.xlu0 %734
      %736 = vrot.lane.b32.xlu0 %v721, 71
      %v737 = vpop.permute.xlu0 %736
      %738 = vrot.lane.b32.xlu0 %v722, 71
      %v739 = vpop.permute.xlu0 %738
      %740 = vrot.lane.b32.xlu0 %v723, 71
      %v741 = vpop.permute.xlu0 %740
      %vm742 = vcmask 580608
      %v743 = vsel %vm742, %v731, %v733
      %v744 = vsel %vm742, %v733, %v735
      %v745 = vsel %vm742, %v735, %v737
      %v746 = vsel %vm742, %v737, %v739
      %v747 = vsel %vm742, %v739, %v741
      %v754 = vadd.f32 %v705, %v743
      %v755 = vadd.f32 %v706, %v744
      %v756 = vadd.f32 %v707, %v745
      %v757 = vadd.f32 %v708, %v746
      %v758 = vadd.f32 %v709, %v747
      %v759 = vadd.f32 %v710, %v741
      %s760 = scalar_lea.vmem %s1, 96
      %v761 = vld [vmem:[%s760] sm:$0x3f]
      %763 = vset.pattern.permute.xlu0 0
      %764 = vperm.xlu0 %763, %v761
      %v765 = vpop.permute.xlu0 %764
      %v767 = vmul.f32 %v765, %v203
      %v768 = vmul.f32 %v765, %v204
      %v769 = vmul.f32 %v765, %v205
      %v770 = vmul.f32 %v765, %v206
      %v771 = vmul.f32 %v765, %v207
      %v772 = vmul.f32 %v765, %v208
      %779 = vrot.lane.b32.xlu0 %v767, 70
      %v780 = vpop.permute.xlu0 %779
      %781 = vrot.lane.b32.xlu0 %v768, 70
      %v782 = vpop.permute.xlu0 %781
      %783 = vrot.lane.b32.xlu0 %v769, 70
      %v784 = vpop.permute.xlu0 %783
      %785 = vrot.lane.b32.xlu0 %v770, 70
      %v786 = vpop.permute.xlu0 %785
      %787 = vrot.lane.b32.xlu0 %v771, 70
      %v788 = vpop.permute.xlu0 %787
      %789 = vrot.lane.b32.xlu0 %v772, 70
      %v790 = vpop.permute.xlu0 %789
      %vm791 = vcmask 572416
      %v792 = vsel %vm791, %v780, %v782
      %v793 = vsel %vm791, %v782, %v784
      %v794 = vsel %vm791, %v784, %v786
      %v795 = vsel %vm791, %v786, %v788
      %v796 = vsel %vm791, %v788, %v790
      %v803 = vadd.f32 %v754, %v792
      %v804 = vadd.f32 %v755, %v793
      %v805 = vadd.f32 %v756, %v794
      %v806 = vadd.f32 %v757, %v795
      %v807 = vadd.f32 %v758, %v796
      %v808 = vadd.f32 %v759, %v790
      %s809 = scalar_lea.vmem %s1, 104
      %v810 = vld [vmem:[%s809] sm:$0x3f]
      %812 = vset.pattern.permute.xlu0 0
      %813 = vperm.xlu0 %812, %v810
      %v814 = vpop.permute.xlu0 %813
      %v816 = vmul.f32 %v814, %v203
      %v817 = vmul.f32 %v814, %v204
      %v818 = vmul.f32 %v814, %v205
      %v819 = vmul.f32 %v814, %v206
      %v820 = vmul.f32 %v814, %v207
      %v821 = vmul.f32 %v814, %v208
      %828 = vrot.lane.b32.xlu0 %v816, 69
      %v829 = vpop.permute.xlu0 %828
      %830 = vrot.lane.b32.xlu0 %v817, 69
      %v831 = vpop.permute.xlu0 %830
      %832 = vrot.lane.b32.xlu0 %v818, 69
      %v833 = vpop.permute.xlu0 %832
      %834 = vrot.lane.b32.xlu0 %v819, 69
      %v835 = vpop.permute.xlu0 %834
      %836 = vrot.lane.b32.xlu0 %v820, 69
      %v837 = vpop.permute.xlu0 %836
      %838 = vrot.lane.b32.xlu0 %v821, 69
      %v839 = vpop.permute.xlu0 %838
      %vm840 = vcmask 564224
      %v841 = vsel %vm840, %v829, %v831
      %v842 = vsel %vm840, %v831, %v833
      %v843 = vsel %vm840, %v833, %v835
      %v844 = vsel %vm840, %v835, %v837
      %v845 = vsel %vm840, %v837, %v839
      %v852 = vadd.f32 %v803, %v841
      %v853 = vadd.f32 %v804, %v842
      %v854 = vadd.f32 %v805, %v843
      %v855 = vadd.f32 %v806, %v844
      %v856 = vadd.f32 %v807, %v845
      %v857 = vadd.f32 %v808, %v839
      %s858 = scalar_lea.vmem %s1, 112
      %v859 = vld [vmem:[%s858] sm:$0x3f]
      %861 = vset.pattern.permute.xlu0 0
      %862 = vperm.xlu0 %861, %v859
      %v863 = vpop.permute.xlu0 %862
      %v865 = vmul.f32 %v863, %v203
      %v866 = vmul.f32 %v863, %v204
      %v867 = vmul.f32 %v863, %v205
      %v868 = vmul.f32 %v863, %v206
      %v869 = vmul.f32 %v863, %v207
      %v870 = vmul.f32 %v863, %v208
      %877 = vrot.lane.b32.xlu0 %v865, 68
      %v878 = vpop.permute.xlu0 %877
      %879 = vrot.lane.b32.xlu0 %v866, 68
      %v880 = vpop.permute.xlu0 %879
      %881 = vrot.lane.b32.xlu0 %v867, 68
      %v882 = vpop.permute.xlu0 %881
      %883 = vrot.lane.b32.xlu0 %v868, 68
      %v884 = vpop.permute.xlu0 %883
      %885 = vrot.lane.b32.xlu0 %v869, 68
      %v886 = vpop.permute.xlu0 %885
      %887 = vrot.lane.b32.xlu0 %v870, 68
      %v888 = vpop.permute.xlu0 %887
      %vm889 = vcmask 556032
      %v890 = vsel %vm889, %v878, %v880
      %v891 = vsel %vm889, %v880, %v882
      %v892 = vsel %vm889, %v882, %v884
      %v893 = vsel %vm889, %v884, %v886
      %v894 = vsel %vm889, %v886, %v888
      %v901 = vadd.f32 %v852, %v890
      %v902 = vadd.f32 %v853, %v891
      %v903 = vadd.f32 %v854, %v892
      %v904 = vadd.f32 %v855, %v893
      %v905 = vadd.f32 %v856, %v894
      %v906 = vadd.f32 %v857, %v888
      %s907 = scalar_lea.vmem %s1, 120
      %v908 = vld [vmem:[%s907] sm:$0x3f]
      %910 = vset.pattern.permute.xlu0 0
      %911 = vperm.xlu0 %910, %v908
      %v912 = vpop.permute.xlu0 %911
      %v914 = vmul.f32 %v912, %v203
      %v915 = vmul.f32 %v912, %v204
      %v916 = vmul.f32 %v912, %v205
      %v917 = vmul.f32 %v912, %v206
      %v918 = vmul.f32 %v912, %v207
      %v919 = vmul.f32 %v912, %v208
      %926 = vrot.lane.b32.xlu0 %v914, 44
      %v927 = vpop.permute.xlu0 %926
      %928 = vrot.lane.b32.xlu0 %v915, 44
      %v929 = vpop.permute.xlu0 %928
      %930 = vrot.lane.b32.xlu0 %v916, 44
      %v931 = vpop.permute.xlu0 %930
      %932 = vrot.lane.b32.xlu0 %v917, 44
      %v933 = vpop.permute.xlu0 %932
      %934 = vrot.lane.b32.xlu0 %v918, 44
      %v935 = vpop.permute.xlu0 %934
      %936 = vrot.lane.b32.xlu0 %v919, 44
      %v937 = vpop.permute.xlu0 %936
      %vm938 = vcmask 359424
      %v939 = vsel %vm938, %v927, %v929
      %v940 = vsel %vm938, %v929, %v931
      %v941 = vsel %vm938, %v931, %v933
      %v942 = vsel %vm938, %v933, %v935
      %v943 = vsel %vm938, %v935, %v937
      %v950 = vadd.f32 %v901, %v939
      %v951 = vadd.f32 %v902, %v940
      %v952 = vadd.f32 %v903, %v941
      %v953 = vadd.f32 %v904, %v942
      %v954 = vadd.f32 %v905, %v943
      %v955 = vadd.f32 %v906, %v937
      %s956 = scalar_lea.vmem %s1, 128
      %v957 = vld [vmem:[%s956] sm:$0x3f]
      %959 = vset.pattern.permute.xlu0 0
      %960 = vperm.xlu0 %959, %v957
      %v961 = vpop.permute.xlu0 %960
      %v963 = vmul.f32 %v961, %v203
      %v964 = vmul.f32 %v961, %v204
      %v965 = vmul.f32 %v961, %v205
      %v966 = vmul.f32 %v961, %v206
      %v967 = vmul.f32 %v961, %v207
      %v968 = vmul.f32 %v961, %v208
      %975 = vrot.lane.b32.xlu0 %v963, 43
      %v976 = vpop.permute.xlu0 %975
      %977 = vrot.lane.b32.xlu0 %v964, 43
      %v978 = vpop.permute.xlu0 %977
      %979 = vrot.lane.b32.xlu0 %v965, 43
      %v980 = vpop.permute.xlu0 %979
      %981 = vrot.lane.b32.xlu0 %v966, 43
      %v982 = vpop.permute.xlu0 %981
      %983 = vrot.lane.b32.xlu0 %v967, 43
      %v984 = vpop.permute.xlu0 %983
      %985 = vrot.lane.b32.xlu0 %v968, 43
      %v986 = vpop.permute.xlu0 %985
      %vm987 = vcmask 351232
      %v988 = vsel %vm987, %v976, %v978
      %v989 = vsel %vm987, %v978, %v980
      %v990 = vsel %vm987, %v980, %v982
      %v991 = vsel %vm987, %v982, %v984
      %v992 = vsel %vm987, %v984, %v986
      %v999 = vadd.f32 %v950, %v988
      %v1000 = vadd.f32 %v951, %v989
      %v1001 = vadd.f32 %v952, %v990
      %v1002 = vadd.f32 %v953, %v991
      %v1003 = vadd.f32 %v954, %v992
      %v1004 = vadd.f32 %v955, %v986
      %s1005 = scalar_lea.vmem %s1, 136
      %v1006 = vld [vmem:[%s1005] sm:$0x3f]
      %1008 = vset.pattern.permute.xlu0 0
      %1009 = vperm.xlu0 %1008, %v1006
      %v1010 = vpop.permute.xlu0 %1009
      %v1012 = vmul.f32 %v1010, %v203
      %v1013 = vmul.f32 %v1010, %v204
      %v1014 = vmul.f32 %v1010, %v205
      %v1015 = vmul.f32 %v1010, %v206
      %v1016 = vmul.f32 %v1010, %v207
      %v1017 = vmul.f32 %v1010, %v208
      %1024 = vrot.lane.b32.xlu0 %v1012, 42
      %v1025 = vpop.permute.xlu0 %1024
      %1026 = vrot.lane.b32.xlu0 %v1013, 42
      %v1027 = vpop.permute.xlu0 %1026
      %1028 = vrot.lane.b32.xlu0 %v1014, 42
      %v1029 = vpop.permute.xlu0 %1028
      %1030 = vrot.lane.b32.xlu0 %v1015, 42
      %v1031 = vpop.permute.xlu0 %1030
      %1032 = vrot.lane.b32.xlu0 %v1016, 42
      %v1033 = vpop.permute.xlu0 %1032
      %1034 = vrot.lane.b32.xlu0 %v1017, 42
      %v1035 = vpop.permute.xlu0 %1034
      %vm1036 = vcmask 343040
      %v1037 = vsel %vm1036, %v1025, %v1027
      %v1038 = vsel %vm1036, %v1027, %v1029
      %v1039 = vsel %vm1036, %v1029, %v1031
      %v1040 = vsel %vm1036, %v1031, %v1033
      %v1041 = vsel %vm1036, %v1033, %v1035
      %v1048 = vadd.f32 %v999, %v1037
      %v1049 = vadd.f32 %v1000, %v1038
      %v1050 = vadd.f32 %v1001, %v1039
      %v1051 = vadd.f32 %v1002, %v1040
      %v1052 = vadd.f32 %v1003, %v1041
      %v1053 = vadd.f32 %v1004, %v1035
      %s1054 = scalar_lea.vmem %s1, 144
      %v1055 = vld [vmem:[%s1054] sm:$0x3f]
      %1057 = vset.pattern.permute.xlu0 0
      %1058 = vperm.xlu0 %1057, %v1055
      %v1059 = vpop.permute.xlu0 %1058
      %v1061 = vmul.f32 %v1059, %v203
      %v1062 = vmul.f32 %v1059, %v204
      %v1063 = vmul.f32 %v1059, %v205
      %v1064 = vmul.f32 %v1059, %v206
      %v1065 = vmul.f32 %v1059, %v207
      %v1066 = vmul.f32 %v1059, %v208
      %1073 = vrot.lane.b32.xlu0 %v1061, 41
      %v1074 = vpop.permute.xlu0 %1073
      %1075 = vrot.lane.b32.xlu0 %v1062, 41
      %v1076 = vpop.permute.xlu0 %1075
      %1077 = vrot.lane.b32.xlu0 %v1063, 41
      %v1078 = vpop.permute.xlu0 %1077
      %1079 = vrot.lane.b32.xlu0 %v1064, 41
      %v1080 = vpop.permute.xlu0 %1079
      %1081 = vrot.lane.b32.xlu0 %v1065, 41
      %v1082 = vpop.permute.xlu0 %1081
      %1083 = vrot.lane.b32.xlu0 %v1066, 41
      %v1084 = vpop.permute.xlu0 %1083
      %vm1085 = vcmask 334848
      %v1086 = vsel %vm1085, %v1074, %v1076
      %v1087 = vsel %vm1085, %v1076, %v1078
      %v1088 = vsel %vm1085, %v1078, %v1080
      %v1089 = vsel %vm1085, %v1080, %v1082
      %v1090 = vsel %vm1085, %v1082, %v1084
      %v1097 = vadd.f32 %v1048, %v1086
      %v1098 = vadd.f32 %v1049, %v1087
      %v1099 = vadd.f32 %v1050, %v1088
      %v1100 = vadd.f32 %v1051, %v1089
      %v1101 = vadd.f32 %v1052, %v1090
      %v1102 = vadd.f32 %v1053, %v1084
      %s1103 = scalar_lea.vmem %s1, 152
      %v1104 = vld [vmem:[%s1103] sm:$0x3f]
      %1106 = vset.pattern.permute.xlu0 0
      %1107 = vperm.xlu0 %1106, %v1104
      %v1108 = vpop.permute.xlu0 %1107
      %v1110 = vmul.f32 %v1108, %v203
      %v1111 = vmul.f32 %v1108, %v204
      %v1112 = vmul.f32 %v1108, %v205
      %v1113 = vmul.f32 %v1108, %v206
      %v1114 = vmul.f32 %v1108, %v207
      %v1115 = vmul.f32 %v1108, %v208
      %1122 = vrot.lane.b32.xlu0 %v1110, 40
      %v1123 = vpop.permute.xlu0 %1122
      %1124 = vrot.lane.b32.xlu0 %v1111, 40
      %v1125 = vpop.permute.xlu0 %1124
      %1126 = vrot.lane.b32.xlu0 %v1112, 40
      %v1127 = vpop.permute.xlu0 %1126
      %1128 = vrot.lane.b32.xlu0 %v1113, 40
      %v1129 = vpop.permute.xlu0 %1128
      %1130 = vrot.lane.b32.xlu0 %v1114, 40
      %v1131 = vpop.permute.xlu0 %1130
      %1132 = vrot.lane.b32.xlu0 %v1115, 40
      %v1133 = vpop.permute.xlu0 %1132
      %vm1134 = vcmask 326656
      %v1135 = vsel %vm1134, %v1123, %v1125
      %v1136 = vsel %vm1134, %v1125, %v1127
      %v1137 = vsel %vm1134, %v1127, %v1129
      %v1138 = vsel %vm1134, %v1129, %v1131
      %v1139 = vsel %vm1134, %v1131, %v1133
      %v1146 = vadd.f32 %v1097, %v1135
      %v1147 = vadd.f32 %v1098, %v1136
      %v1148 = vadd.f32 %v1099, %v1137
      %v1149 = vadd.f32 %v1100, %v1138
      %v1150 = vadd.f32 %v1101, %v1139
      %v1151 = vadd.f32 %v1102, %v1133
      %s1152 = scalar_lea.vmem %s1, 160
      %v1153 = vld [vmem:[%s1152] sm:$0x3f]
      %1155 = vset.pattern.permute.xlu0 0
      %1156 = vperm.xlu0 %1155, %v1153
      %v1157 = vpop.permute.xlu0 %1156
      %v1159 = vperm.slane %v195, 6
      %v1161 = vmul.f32 %v1157, %v203
      %v1162 = vmul.f32 %v1157, %v204
      %v1163 = vmul.f32 %v1157, %v205
      %v1164 = vmul.f32 %v1157, %v206
      %v1165 = vmul.f32 %v1157, %v207
      %v1166 = vmul.f32 %v1157, %v208
      %v1167 = vmul.f32 %v1157, %v1159
      %1175 = vrot.lane.b32.xlu0 %v1161, 16
      %v1176 = vpop.permute.xlu0 %1175
      %1177 = vrot.lane.b32.xlu0 %v1162, 16
      %v1178 = vpop.permute.xlu0 %1177
      %1179 = vrot.lane.b32.xlu0 %v1163, 16
      %v1180 = vpop.permute.xlu0 %1179
      %1181 = vrot.lane.b32.xlu0 %v1164, 16
      %v1182 = vpop.permute.xlu0 %1181
      %1183 = vrot.lane.b32.xlu0 %v1165, 16
      %v1184 = vpop.permute.xlu0 %1183
      %1185 = vrot.lane.b32.xlu0 %v1166, 16
      %v1186 = vpop.permute.xlu0 %1185
      %1187 = vrot.lane.b32.xlu0 %v1167, 16
      %v1188 = vpop.permute.xlu0 %1187
      %vm1189 = vcmask 130048
      %v1190 = vsel %vm1189, %v1176, %v1178
      %v1191 = vsel %vm1189, %v1178, %v1180
      %v1192 = vsel %vm1189, %v1180, %v1182
      %v1193 = vsel %vm1189, %v1182, %v1184
      %v1194 = vsel %vm1189, %v1184, %v1186
      %v1195 = vsel %vm1189, %v1186, %v1188
      %v1202 = vadd.f32 %v1146, %v1190
      %v1203 = vadd.f32 %v1147, %v1191
      %v1204 = vadd.f32 %v1148, %v1192
      %v1205 = vadd.f32 %v1149, %v1193
      %v1206 = vadd.f32 %v1150, %v1194
      %v1207 = vadd.f32 %v1151, %v1195
      %s1208 = scalar_lea.vmem %s1, 168
      %v1209 = vld [vmem:[%s1208] sm:$0x3f]
      %1211 = vset.pattern.permute.xlu0 0
      %1212 = vperm.xlu0 %1211, %v1209
      %v1213 = vpop.permute.xlu0 %1212
      %v1215 = vmul.f32 %v1213, %v203
      %v1216 = vmul.f32 %v1213, %v204
      %v1217 = vmul.f32 %v1213, %v205
      %v1218 = vmul.f32 %v1213, %v206
      %v1219 = vmul.f32 %v1213, %v207
      %v1220 = vmul.f32 %v1213, %v208
      %v1221 = vmul.f32 %v1213, %v1159
      %1229 = vrot.lane.b32.xlu0 %v1215, 15
      %v1230 = vpop.permute.xlu0 %1229
      %1231 = vrot.lane.b32.xlu0 %v1216, 15
      %v1232 = vpop.permute.xlu0 %1231
      %1233 = vrot.lane.b32.xlu0 %v1217, 15
      %v1234 = vpop.permute.xlu0 %1233
      %1235 = vrot.lane.b32.xlu0 %v1218, 15
      %v1236 = vpop.permute.xlu0 %1235
      %1237 = vrot.lane.b32.xlu0 %v1219, 15
      %v1238 = vpop.permute.xlu0 %1237
      %1239 = vrot.lane.b32.xlu0 %v1220, 15
      %v1240 = vpop.permute.xlu0 %1239
      %1241 = vrot.lane.b32.xlu0 %v1221, 15
      %v1242 = vpop.permute.xlu0 %1241
      %vm1243 = vcmask 121856
      %v1244 = vsel %vm1243, %v1230, %v1232
      %v1245 = vsel %vm1243, %v1232, %v1234
      %v1246 = vsel %vm1243, %v1234, %v1236
      %v1247 = vsel %vm1243, %v1236, %v1238
      %v1248 = vsel %vm1243, %v1238, %v1240
      %v1249 = vsel %vm1243, %v1240, %v1242
      %v1256 = vadd.f32 %v1202, %v1244
      %v1257 = vadd.f32 %v1203, %v1245
      %v1258 = vadd.f32 %v1204, %v1246
      %v1259 = vadd.f32 %v1205, %v1247
      %v1260 = vadd.f32 %v1206, %v1248
      %v1261 = vadd.f32 %v1207, %v1249
      %s1262 = scalar_lea.vmem %s1, 176
      %v1263 = vld [vmem:[%s1262] sm:$0x3f]
      %1265 = vset.pattern.permute.xlu0 0
      %1266 = vperm.xlu0 %1265, %v1263
      %v1267 = vpop.permute.xlu0 %1266
      %v1269 = vmul.f32 %v1267, %v203
      %v1270 = vmul.f32 %v1267, %v204
      %v1271 = vmul.f32 %v1267, %v205
      %v1272 = vmul.f32 %v1267, %v206
      %v1273 = vmul.f32 %v1267, %v207
      %v1274 = vmul.f32 %v1267, %v208
      %v1275 = vmul.f32 %v1267, %v1159
      %1283 = vrot.lane.b32.xlu0 %v1269, 14
      %v1284 = vpop.permute.xlu0 %1283
      %1285 = vrot.lane.b32.xlu0 %v1270, 14
      %v1286 = vpop.permute.xlu0 %1285
      %1287 = vrot.lane.b32.xlu0 %v1271, 14
      %v1288 = vpop.permute.xlu0 %1287
      %1289 = vrot.lane.b32.xlu0 %v1272, 14
      %v1290 = vpop.permute.xlu0 %1289
      %1291 = vrot.lane.b32.xlu0 %v1273, 14
      %v1292 = vpop.permute.xlu0 %1291
      %1293 = vrot.lane.b32.xlu0 %v1274, 14
      %v1294 = vpop.permute.xlu0 %1293
      %1295 = vrot.lane.b32.xlu0 %v1275, 14
      %v1296 = vpop.permute.xlu0 %1295
      %vm1297 = vcmask 113664
      %v1298 = vsel %vm1297, %v1284, %v1286
      %v1299 = vsel %vm1297, %v1286, %v1288
      %v1300 = vsel %vm1297, %v1288, %v1290
      %v1301 = vsel %vm1297, %v1290, %v1292
      %v1302 = vsel %vm1297, %v1292, %v1294
      %v1303 = vsel %vm1297, %v1294, %v1296
      %v1310 = vadd.f32 %v1256, %v1298
      %v1311 = vadd.f32 %v1257, %v1299
      %v1312 = vadd.f32 %v1258, %v1300
      %v1313 = vadd.f32 %v1259, %v1301
      %v1314 = vadd.f32 %v1260, %v1302
      %v1315 = vadd.f32 %v1261, %v1303
      %s1316 = scalar_lea.vmem %s1, 184
      %v1317 = vld [vmem:[%s1316] sm:$0x3f]
      %1319 = vset.pattern.permute.xlu0 0
      %1320 = vperm.xlu0 %1319, %v1317
      %v1321 = vpop.permute.xlu0 %1320
      %v1323 = vmul.f32 %v1321, %v203
      %v1324 = vmul.f32 %v1321, %v204
      %v1325 = vmul.f32 %v1321, %v205
      %v1326 = vmul.f32 %v1321, %v206
      %v1327 = vmul.f32 %v1321, %v207
      %v1328 = vmul.f32 %v1321, %v208
      %v1329 = vmul.f32 %v1321, %v1159
      %1337 = vrot.lane.b32.xlu0 %v1323, 13
      %v1338 = vpop.permute.xlu0 %1337
      %1339 = vrot.lane.b32.xlu0 %v1324, 13
      %v1340 = vpop.permute.xlu0 %1339
      %1341 = vrot.lane.b32.xlu0 %v1325, 13
      %v1342 = vpop.permute.xlu0 %1341
      %1343 = vrot.lane.b32.xlu0 %v1326, 13
      %v1344 = vpop.permute.xlu0 %1343
      %1345 = vrot.lane.b32.xlu0 %v1327, 13
      %v1346 = vpop.permute.xlu0 %1345
      %1347 = vrot.lane.b32.xlu0 %v1328, 13
      %v1348 = vpop.permute.xlu0 %1347
      %1349 = vrot.lane.b32.xlu0 %v1329, 13
      %v1350 = vpop.permute.xlu0 %1349
      %vm1351 = vcmask 105472
      %v1352 = vsel %vm1351, %v1338, %v1340
      %v1353 = vsel %vm1351, %v1340, %v1342
      %v1354 = vsel %vm1351, %v1342, %v1344
      %v1355 = vsel %vm1351, %v1344, %v1346
      %v1356 = vsel %vm1351, %v1346, %v1348
      %v1357 = vsel %vm1351, %v1348, %v1350
      %v1364 = vadd.f32 %v1310, %v1352
      %v1365 = vadd.f32 %v1311, %v1353
      %v1366 = vadd.f32 %v1312, %v1354
      %v1367 = vadd.f32 %v1313, %v1355
      %v1368 = vadd.f32 %v1314, %v1356
      %v1369 = vadd.f32 %v1315, %v1357
      %s1370 = scalar_lea.vmem %s1, 192
      %v1371 = vld [vmem:[%s1370] sm:$0x3f]
      %1373 = vset.pattern.permute.xlu0 0
      %1374 = vperm.xlu0 %1373, %v1371
      %v1375 = vpop.permute.xlu0 %1374
      %v1377 = vmul.f32 %v1375, %v203
      %v1378 = vmul.f32 %v1375, %v204
      %v1379 = vmul.f32 %v1375, %v205
      %v1380 = vmul.f32 %v1375, %v206
      %v1381 = vmul.f32 %v1375, %v207
      %v1382 = vmul.f32 %v1375, %v208
      %v1383 = vmul.f32 %v1375, %v1159
      %1391 = vrot.lane.b32.xlu0 %v1377, 12
      %v1392 = vpop.permute.xlu0 %1391
      %1393 = vrot.lane.b32.xlu0 %v1378, 12
      %v1394 = vpop.permute.xlu0 %1393
      %1395 = vrot.lane.b32.xlu0 %v1379, 12
      %v1396 = vpop.permute.xlu0 %1395
      %1397 = vrot.lane.b32.xlu0 %v1380, 12
      %v1398 = vpop.permute.xlu0 %1397
      %1399 = vrot.lane.b32.xlu0 %v1381, 12
      %v1400 = vpop.permute.xlu0 %1399
      %1401 = vrot.lane.b32.xlu0 %v1382, 12
      %v1402 = vpop.permute.xlu0 %1401
      %1403 = vrot.lane.b32.xlu0 %v1383, 12
      %v1404 = vpop.permute.xlu0 %1403
      %vm1405 = vcmask 97280
      %v1406 = vsel %vm1405, %v1392, %v1394
      %v1407 = vsel %vm1405, %v1394, %v1396
      %v1408 = vsel %vm1405, %v1396, %v1398
      %v1409 = vsel %vm1405, %v1398, %v1400
      %v1410 = vsel %vm1405, %v1400, %v1402
      %v1411 = vsel %vm1405, %v1402, %v1404
      %v1418 = vadd.f32 %v1364, %v1406
      %v1419 = vadd.f32 %v1365, %v1407
      %v1420 = vadd.f32 %v1366, %v1408
      %v1421 = vadd.f32 %v1367, %v1409
      %v1422 = vadd.f32 %v1368, %v1410
      %v1423 = vadd.f32 %v1369, %v1411
      %v1424 = vld [vmem:[%s2] sm:$0x3f]
      %1426 = vset.pattern.permute.xlu0 0
      %1427 = vperm.xlu0 %1426, %v1424
      %v1428 = vpop.permute.xlu0 %1427
      %v1430 = vadd.f32 %v1418, %v1428
      %v1431 = vadd.f32 %v1419, %v1428
      %v1432 = vadd.f32 %v1420, %v1428
      %v1433 = vadd.f32 %v1421, %v1428
      %v1434 = vadd.f32 %v1422, %v1428
      %v1435 = vadd.f32 %v1423, %v1428
      %v1436 = vld [vmem:[%s3] sm:$0xff]
      %v1437 = vld [vmem:[%s3 + $0x8] sm:$0xff]
      %v1438 = vld [vmem:[%s3 + $0x10] sm:$0xff]
      %v1439 = vld [vmem:[%s3 + $0x18] sm:$0xff]
      %v1440 = vld [vmem:[%s3 + $0x20] sm:$0xff]
      %v1441 = vld [vmem:[%s3 + $0x28] sm:$0xff]
      %v1442 = vld [vmem:[%s3 + $0x30] sm:$0xff]
      %v1443 = vld [vmem:[%s3 + $0x38] sm:$0xff]
      %v1444 = vld [vmem:[%s3 + $0x40] sm:$0xff]
      %v1445 = vld [vmem:[%s3 + $0x48] sm:$0xff]
      %v1446 = vld [vmem:[%s3 + $0x50] sm:$0xff]
      %v1447 = vld [vmem:[%s3 + $0x58] sm:$0xff]
      %v1448 = vld [vmem:[%s3 + $0x60] sm:$0xff]
      %v1449 = vld [vmem:[%s3 + $0x68] sm:$0xff]
      %v1450 = vld [vmem:[%s3 + $0x70] sm:$0xff]
      %v1451 = vld [vmem:[%s3 + $0x78] sm:$0xff]
      %v1452 = vld [vmem:[%s3 + $0x80] sm:$0xff]
      %v1453 = vld [vmem:[%s3 + $0x88] sm:$0xff]
      %v1454 = vld [vmem:[%s3 + $0x90] sm:$0xff]
      %v1455 = vld [vmem:[%s3 + $0x98] sm:$0xff]
      %v1456 = vld [vmem:[%s3 + $0xa0] sm:$0xff]
      %v1457 = vld [vmem:[%s3 + $0xa8] sm:$0xff]
      %v1458 = vld [vmem:[%s3 + $0xb0] sm:$0xff]
      %v1459 = vld [vmem:[%s3 + $0xb8] sm:$0xff]
      %v1460 = vld [vmem:[%s3 + $0xc0] sm:$0xff]
      %v1461 = vld [vmem:[%s3 + $0xc8] sm:$0xff]
      %v1462 = vld [vmem:[%s3 + $0xd0] sm:$0xff]
      %v1463 = vld [vmem:[%s3 + $0xd8] sm:$0xff]
      %v1464 = vld [vmem:[%s3 + $0xe0] sm:$0xff]
      %v1465 = vld [vmem:[%s3 + $0xe8] sm:$0xff]
      %v1466 = vld [vmem:[%s3 + $0xf0] sm:$0xff]
      %v1467 = vld [vmem:[%s3 + $0xf8] sm:$0xff]
      %v1468 = vld [vmem:[%s3 + $0x100] sm:$0xff]
      %v1469 = vld [vmem:[%s3 + $0x108] sm:$0xff]
      %v1470 = vld [vmem:[%s3 + $0x110] sm:$0xff]
      %v1471 = vld [vmem:[%s3 + $0x118] sm:$0xff]
      %v1472 = vld [vmem:[%s3 + $0x120] sm:$0xff]
      %v1473 = vld [vmem:[%s3 + $0x128] sm:$0xff]
      %v1474 = vld [vmem:[%s3 + $0x130] sm:$0xff]
      %v1475 = vld [vmem:[%s3 + $0x138] sm:$0xff]
      %v1476 = vld [vmem:[%s3 + $0x140] sm:$0xff]
      %v1477 = vld [vmem:[%s3 + $0x148] sm:$0xff]
      %v1478 = vld [vmem:[%s3 + $0x150] sm:$0xff]
      %v1479 = vld [vmem:[%s3 + $0x158] sm:$0xff]
      %v1480 = vld [vmem:[%s3 + $0x160] sm:$0xff]
      %v1481 = vld [vmem:[%s3 + $0x168] sm:$0xff]
      %v1482 = vld [vmem:[%s3 + $0x170] sm:$0xff]
      %v1483 = vld [vmem:[%s3 + $0x178] sm:$0xff]
      %v1484 = vld [vmem:[%s3 + $0x180] sm:$0xff]
      %v1485 = vld [vmem:[%s3 + $0x188] sm:$0xff]
      %v1486 = vld [vmem:[%s3 + $0x190] sm:$0xff]
      %v1487 = vld [vmem:[%s3 + $0x198] sm:$0xff]
      %v1488 = vld [vmem:[%s3 + $0x1a0] sm:$0xff]
      %v1489 = vld [vmem:[%s3 + $0x1a8] sm:$0xff]
      %v1490 = vld [vmem:[%s3 + $0x1b0] sm:$0xff]
      %v1491 = vld [vmem:[%s3 + $0x1b8] sm:$0xff]
      %v1492 = vld [vmem:[%s3 + $0x1c0] sm:$0xff]
      %v1493 = vld [vmem:[%s3 + $0x1c8] sm:$0xff]
      %v1494 = vld [vmem:[%s3 + $0x1d0] sm:$0xff]
      %v1495 = vld [vmem:[%s3 + $0x1d8] sm:$0xff]
      %v1496 = vld [vmem:[%s3 + $0x1e0] sm:$0xff]
      %v1497 = vld [vmem:[%s3 + $0x1e8] sm:$0xff]
      %v1498 = vld [vmem:[%s3 + $0x1f0] sm:$0xff]
      %v1499 = vld [vmem:[%s3 + $0x1f8] sm:$0xff]
      %v1500 = vld [vmem:[%s3 + $0x200] sm:$0xff]
      %v1501 = vld [vmem:[%s3 + $0x208] sm:$0xff]
      %v1502 = vld [vmem:[%s3 + $0x210] sm:$0xff]
      %v1503 = vld [vmem:[%s3 + $0x218] sm:$0xff]
      %v1504 = vld [vmem:[%s3 + $0x220] sm:$0xff]
      %v1505 = vld [vmem:[%s3 + $0x228] sm:$0xff]
      %v1506 = vld [vmem:[%s3 + $0x230] sm:$0xff]
      %v1507 = vld [vmem:[%s3 + $0x238] sm:$0xff]
      %v1508 = vld [vmem:[%s3 + $0x240] sm:$0xff]
      %v1509 = vld [vmem:[%s3 + $0x248] sm:$0xff]
      %v1510 = vld [vmem:[%s3 + $0x250] sm:$0xff]
      %v1511 = vld [vmem:[%s3 + $0x258] sm:$0xff]
      %v1512 = vld [vmem:[%s3 + $0x260] sm:$0xff]
      %v1513 = vld [vmem:[%s3 + $0x268] sm:$0xff]
      %v1514 = vld [vmem:[%s3 + $0x270] sm:$0xff]
      %v1515 = vld [vmem:[%s3 + $0x278] sm:$0xff]
      %v1516 = vld [vmem:[%s3 + $0x280] sm:$0xff]
      %v1517 = vld [vmem:[%s3 + $0x288] sm:$0xff]
      %v1518 = vld [vmem:[%s3 + $0x290] sm:$0xff]
      %v1519 = vld [vmem:[%s3 + $0x298] sm:$0xff]
      %v1520 = vld [vmem:[%s3 + $0x2a0] sm:$0xff]
      %v1521 = vld [vmem:[%s3 + $0x2a8] sm:$0xff]
      %v1522 = vld [vmem:[%s3 + $0x2b0] sm:$0xff]
      %v1523 = vld [vmem:[%s3 + $0x2b8] sm:$0xff]
      %v1524 = vld [vmem:[%s3 + $0x2c0] sm:$0xff]
      %v1525 = vld [vmem:[%s3 + $0x2c8] sm:$0xff]
      %v1526 = vld [vmem:[%s3 + $0x2d0] sm:$0xff]
      %v1527 = vld [vmem:[%s3 + $0x2d8] sm:$0xff]
      %v1528 = vld [vmem:[%s3 + $0x2e0] sm:$0xff]
      %v1529 = vld [vmem:[%s3 + $0x2e8] sm:$0xff]
      %v1530 = vld [vmem:[%s3 + $0x2f0] sm:$0xff]
      %v1531 = vld [vmem:[%s3 + $0x2f8] sm:$0xff]
      %v1532 = vld [vmem:[%s3 + $0x300] sm:$0xff]
      %v1533 = vld [vmem:[%s3 + $0x308] sm:$0xff]
      %v1534 = vld [vmem:[%s3 + $0x310] sm:$0xff]
      %v1535 = vld [vmem:[%s3 + $0x318] sm:$0xff]
      %v1536 = vld [vmem:[%s3 + $0x320] sm:$0xff]
      %v1537 = vld [vmem:[%s3 + $0x328] sm:$0xff]
      %v1538 = vld [vmem:[%s3 + $0x330] sm:$0xff]
      %v1539 = vld [vmem:[%s3 + $0x338] sm:$0xff]
      %v1540 = vld [vmem:[%s3 + $0x340] sm:$0xff]
      %v1541 = vld [vmem:[%s3 + $0x348] sm:$0xff]
      %v1542 = vld [vmem:[%s3 + $0x350] sm:$0xff]
      %v1543 = vld [vmem:[%s3 + $0x358] sm:$0xff]
      %v1544 = vld [vmem:[%s3 + $0x360] sm:$0xff]
      %v1545 = vld [vmem:[%s3 + $0x368] sm:$0xff]
      %v1546 = vld [vmem:[%s3 + $0x370] sm:$0xff]
      %v1547 = vld [vmem:[%s3 + $0x378] sm:$0xff]
      %v1548 = vld [vmem:[%s3 + $0x380] sm:$0xff]
      %v1549 = vld [vmem:[%s3 + $0x388] sm:$0xff]
      %v1550 = vld [vmem:[%s3 + $0x390] sm:$0xff]
      %v1551 = vld [vmem:[%s3 + $0x398] sm:$0xff]
      %v1552 = vld [vmem:[%s3 + $0x3a0] sm:$0xff]
      %v1553 = vld [vmem:[%s3 + $0x3a8] sm:$0xff]
      %v1554 = vld [vmem:[%s3 + $0x3b0] sm:$0xff]
      %v1555 = vld [vmem:[%s3 + $0x3b8] sm:$0xff]
      %v1556 = vld [vmem:[%s3 + $0x3c0] sm:$0xff]
      %v1557 = vld [vmem:[%s3 + $0x3c8] sm:$0xff]
      %v1558 = vld [vmem:[%s3 + $0x3d0] sm:$0xff]
      %v1559 = vld [vmem:[%s3 + $0x3d8] sm:$0xff]
      %v1560 = vld [vmem:[%s3 + $0x3e0] sm:$0xff]
      %v1561 = vld [vmem:[%s3 + $0x3e8] sm:$0xff]
      %v1562 = vld [vmem:[%s3 + $0x3f0] sm:$0xff]
      %v1563 = vld [vmem:[%s3 + $0x3f8] sm:$0xff]
      %v1564 = vld [vmem:[%s3 + $0x400] sm:$0xff]
      %v1565 = vld [vmem:[%s3 + $0x408] sm:$0xff]
      %v1566 = vld [vmem:[%s3 + $0x410] sm:$0xff]
      %v1567 = vld [vmem:[%s3 + $0x418] sm:$0xff]
      %v1568 = vld [vmem:[%s3 + $0x420] sm:$0xff]
      %v1569 = vld [vmem:[%s3 + $0x428] sm:$0xff]
      %v1570 = vld [vmem:[%s3 + $0x430] sm:$0xff]
      %v1571 = vld [vmem:[%s3 + $0x438] sm:$0xff]
      %v1572 = vld [vmem:[%s3 + $0x440] sm:$0xff]
      %v1573 = vld [vmem:[%s3 + $0x448] sm:$0xff]
      %v1574 = vld [vmem:[%s3 + $0x450] sm:$0xff]
      %v1575 = vld [vmem:[%s3 + $0x458] sm:$0xff]
      %v1576 = vld [vmem:[%s3 + $0x460] sm:$0xff]
      %v1577 = vld [vmem:[%s3 + $0x468] sm:$0xff]
      %v1578 = vld [vmem:[%s3 + $0x470] sm:$0xff]
      %v1579 = vld [vmem:[%s3 + $0x478] sm:$0xff]
      %v1580 = vld [vmem:[%s3 + $0x480] sm:$0xff]
      %v1581 = vld [vmem:[%s3 + $0x488] sm:$0xff]
      %v1582 = vld [vmem:[%s3 + $0x490] sm:$0xff]
      %v1583 = vld [vmem:[%s3 + $0x498] sm:$0xff]
      %v1584 = vld [vmem:[%s3 + $0x4a0] sm:$0xff]
      %v1585 = vld [vmem:[%s3 + $0x4a8] sm:$0xff]
      %v1586 = vld [vmem:[%s3 + $0x4b0] sm:$0xff]
      %v1587 = vld [vmem:[%s3 + $0x4b8] sm:$0xff]
      %v1588 = vld [vmem:[%s3 + $0x4c0] sm:$0xff]
      %v1589 = vld [vmem:[%s3 + $0x4c8] sm:$0xff]
      %v1590 = vld [vmem:[%s3 + $0x4d0] sm:$0xff]
      %v1591 = vld [vmem:[%s3 + $0x4d8] sm:$0xff]
      %v1592 = vld [vmem:[%s3 + $0x4e0] sm:$0xff]
      %v1593 = vld [vmem:[%s3 + $0x4e8] sm:$0xff]
      %v1594 = vld [vmem:[%s3 + $0x4f0] sm:$0xff]
      %v1595 = vld [vmem:[%s3 + $0x4f8] sm:$0xff]
      %v1596 = vld [vmem:[%s3 + $0x500] sm:$0xff]
      %v1597 = vld [vmem:[%s3 + $0x508] sm:$0xff]
      %v1598 = vld [vmem:[%s3 + $0x510] sm:$0xff]
      %v1599 = vld [vmem:[%s3 + $0x518] sm:$0xff]
      %v1600 = vld [vmem:[%s3 + $0x520] sm:$0xff]
      %v1601 = vld [vmem:[%s3 + $0x528] sm:$0xff]
      %v1602 = vld [vmem:[%s3 + $0x530] sm:$0xff]
      %v1603 = vld [vmem:[%s3 + $0x538] sm:$0xff]
      %vm1604 = vcmask 261120
      %v1606 = vsel %vm1604, %v1435, 0
      %1608 = vmatpush.msra.mxu0 %v1466
      %1609 = vmatpush.msra.mxu0 %v1464
      %1610 = vmatpush.msra.mxu0 %v1462
      %1611 = vmatpush.msra.mxu0 %v1460
      %1612 = vmatpush.msra.mxu0 %v1458
      %1613 = vmatpush.msra.mxu0 %v1456
      %1614 = vmatpush.msra.mxu0 %v1454
      %1615 = vmatpush.msra.mxu0 %v1452
      %1616 = vmatpush.msra.mxu0 %v1450
      %1617 = vmatpush.msra.mxu0 %v1448
      %1618 = vmatpush.msra.mxu0 %v1446
      %1619 = vmatpush.msra.mxu0 %v1444
      %1620 = vmatpush.msra.mxu0 %v1442
      %1621 = vmatpush.msra.mxu0 %v1440
      %1622 = vmatpush.msra.mxu0 %v1438
      %1623 = vmatpush.msra.mxu0 %v1436
      %1624 = vmatmul.f32.gmra.mxu0 %v1430
      %v1625 = vpop.f32.mrf.mxu0
      %v1626 = vadd.f32 0.0, %v1625
      %1627 = vdwg.mxu0
      %1628 = vmatpush.msra.mxu0 %v1498
      %1629 = vmatpush.msra.mxu0 %v1496
      %1630 = vmatpush.msra.mxu0 %v1494
      %1631 = vmatpush.msra.mxu0 %v1492
      %1632 = vmatpush.msra.mxu0 %v1490
      %1633 = vmatpush.msra.mxu0 %v1488
      %1634 = vmatpush.msra.mxu0 %v1486
      %1635 = vmatpush.msra.mxu0 %v1484
      %1636 = vmatpush.msra.mxu0 %v1482
      %1637 = vmatpush.msra.mxu0 %v1480
      %1638 = vmatpush.msra.mxu0 %v1478
      %1639 = vmatpush.msra.mxu0 %v1476
      %1640 = vmatpush.msra.mxu0 %v1474
      %1641 = vmatpush.msra.mxu0 %v1472
      %1642 = vmatpush.msra.mxu0 %v1470
      %1643 = vmatpush.msra.mxu0 %v1468
      %1644 = vmatmul.f32.gmra.mxu0 %v1431
      %v1645 = vpop.f32.mrf.mxu0
      %v1646 = vadd.f32 %v1626, %v1645
      %1647 = vdwg.mxu0
      %1648 = vmatpush.msra.mxu0 %v1530
      %1649 = vmatpush.msra.mxu0 %v1528
      %1650 = vmatpush.msra.mxu0 %v1526
      %1651 = vmatpush.msra.mxu0 %v1524
      %1652 = vmatpush.msra.mxu0 %v1522
      %1653 = vmatpush.msra.mxu0 %v1520
      %1654 = vmatpush.msra.mxu0 %v1518
      %1655 = vmatpush.msra.mxu0 %v1516
      %1656 = vmatpush.msra.mxu0 %v1514
      %1657 = vmatpush.msra.mxu0 %v1512
      %1658 = vmatpush.msra.mxu0 %v1510
      %1659 = vmatpush.msra.mxu0 %v1508
      %1660 = vmatpush.msra.mxu0 %v1506
      %1661 = vmatpush.msra.mxu0 %v1504
      %1662 = vmatpush.msra.mxu0 %v1502
      %1663 = vmatpush.msra.mxu0 %v1500
      %1664 = vmatmul.f32.gmra.mxu0 %v1432
      %v1665 = vpop.f32.mrf.mxu0
      %v1666 = vadd.f32 %v1646, %v1665
      %1667 = vdwg.mxu0
      %1668 = vmatpush.msra.mxu0 %v1562
      %1669 = vmatpush.msra.mxu0 %v1560
      %1670 = vmatpush.msra.mxu0 %v1558
      %1671 = vmatpush.msra.mxu0 %v1556
      %1672 = vmatpush.msra.mxu0 %v1554
      %1673 = vmatpush.msra.mxu0 %v1552
      %1674 = vmatpush.msra.mxu0 %v1550
      %1675 = vmatpush.msra.mxu0 %v1548
      %1676 = vmatpush.msra.mxu0 %v1546
      %1677 = vmatpush.msra.mxu0 %v1544
      %1678 = vmatpush.msra.mxu0 %v1542
      %1679 = vmatpush.msra.mxu0 %v1540
      %1680 = vmatpush.msra.mxu0 %v1538
      %1681 = vmatpush.msra.mxu0 %v1536
      %1682 = vmatpush.msra.mxu0 %v1534
      %1683 = vmatpush.msra.mxu0 %v1532
      %1684 = vmatmul.f32.gmra.mxu0 %v1433
      %v1685 = vpop.f32.mrf.mxu0
      %v1686 = vadd.f32 %v1666, %v1685
      %1687 = vdwg.mxu0
      %1688 = vmatpush.msra.mxu0 %v1594
      %1689 = vmatpush.msra.mxu0 %v1592
      %1690 = vmatpush.msra.mxu0 %v1590
      %1691 = vmatpush.msra.mxu0 %v1588
      %1692 = vmatpush.msra.mxu0 %v1586
      %1693 = vmatpush.msra.mxu0 %v1584
      %1694 = vmatpush.msra.mxu0 %v1582
      %1695 = vmatpush.msra.mxu0 %v1580
      %1696 = vmatpush.msra.mxu0 %v1578
      %1697 = vmatpush.msra.mxu0 %v1576
      %1698 = vmatpush.msra.mxu0 %v1574
      %1699 = vmatpush.msra.mxu0 %v1572
      %1700 = vmatpush.msra.mxu0 %v1570
      %1701 = vmatpush.msra.mxu0 %v1568
      %1702 = vmatpush.msra.mxu0 %v1566
      %1703 = vmatpush.msra.mxu0 %v1564
      %1704 = vmatmul.f32.gmra.mxu0 %v1434
      %v1705 = vpop.f32.mrf.mxu0
      %v1706 = vadd.f32 %v1686, %v1705
      %1707 = vdwg.mxu0
      %1708 = vmatpush.msra.mxu0 0.0
      %1709 = vmatpush.msra.mxu0 0.0
      %1710 = vmatpush.msra.mxu0 0.0
      %1711 = vmatpush.msra.mxu0 0.0
      %1712 = vmatpush.msra.mxu0 0.0
      %1713 = vmatpush.msra.mxu0 0.0
      %1714 = vmatpush.msra.mxu0 0.0
      %1715 = vmatpush.msra.mxu0 0.0
      %1716 = vmatpush.msra.mxu0 0.0
      %1717 = vmatpush.msra.mxu0 0.0
      %1718 = vmatpush.msra.mxu0 0.0
      %1719 = vmatpush.msra.mxu0 0.0
      %1720 = vmatpush.msra.mxu0 %v1602
      %1721 = vmatpush.msra.mxu0 %v1600
      %1722 = vmatpush.msra.mxu0 %v1598
      %1723 = vmatpush.msra.mxu0 %v1596
      %1724 = vmatmul.f32.gmra.mxu0 %v1606
      %v1725 = vpop.f32.mrf.mxu0
      %v1726 = vadd.f32 %v1706, %v1725
      %1727 = vdwg.mxu0
      %1728 = vmatpush.msra.mxu0 %v1467
      %1729 = vmatpush.msra.mxu0 %v1465
      %1730 = vmatpush.msra.mxu0 %v1463
      %1731 = vmatpush.msra.mxu0 %v1461
      %1732 = vmatpush.msra.mxu0 %v1459
      %1733 = vmatpush.msra.mxu0 %v1457
      %1734 = vmatpush.msra.mxu0 %v1455
      %1735 = vmatpush.msra.mxu0 %v1453
      %1736 = vmatpush.msra.mxu0 %v1451
      %1737 = vmatpush.msra.mxu0 %v1449
      %1738 = vmatpush.msra.mxu0 %v1447
      %1739 = vmatpush.msra.mxu0 %v1445
      %1740 = vmatpush.msra.mxu0 %v1443
      %1741 = vmatpush.msra.mxu0 %v1441
      %1742 = vmatpush.msra.mxu0 %v1439
      %1743 = vmatpush.msra.mxu0 %v1437
      %1744 = vmatmul.f32.gmra.mxu0 %v1430
      %v1745 = vpop.f32.mrf.mxu0
      %v1746 = vadd.f32 0.0, %v1745
      %1747 = vdwg.mxu0
      %1748 = vmatpush.msra.mxu0 %v1499
      %1749 = vmatpush.msra.mxu0 %v1497
      %1750 = vmatpush.msra.mxu0 %v1495
      %1751 = vmatpush.msra.mxu0 %v1493
      %1752 = vmatpush.msra.mxu0 %v1491
      %1753 = vmatpush.msra.mxu0 %v1489
      %1754 = vmatpush.msra.mxu0 %v1487
      %1755 = vmatpush.msra.mxu0 %v1485
      %1756 = vmatpush.msra.mxu0 %v1483
      %1757 = vmatpush.msra.mxu0 %v1481
      %1758 = vmatpush.msra.mxu0 %v1479
      %1759 = vmatpush.msra.mxu0 %v1477
      %1760 = vmatpush.msra.mxu0 %v1475
      %1761 = vmatpush.msra.mxu0 %v1473
      %1762 = vmatpush.msra.mxu0 %v1471
      %1763 = vmatpush.msra.mxu0 %v1469
      %1764 = vmatmul.f32.gmra.mxu0 %v1431
      %v1765 = vpop.f32.mrf.mxu0
      %v1766 = vadd.f32 %v1746, %v1765
      %1767 = vdwg.mxu0
      %1768 = vmatpush.msra.mxu0 %v1531
      %1769 = vmatpush.msra.mxu0 %v1529
      %1770 = vmatpush.msra.mxu0 %v1527
      %1771 = vmatpush.msra.mxu0 %v1525
      %1772 = vmatpush.msra.mxu0 %v1523
      %1773 = vmatpush.msra.mxu0 %v1521
      %1774 = vmatpush.msra.mxu0 %v1519
      %1775 = vmatpush.msra.mxu0 %v1517
      %1776 = vmatpush.msra.mxu0 %v1515
      %1777 = vmatpush.msra.mxu0 %v1513
      %1778 = vmatpush.msra.mxu0 %v1511
      %1779 = vmatpush.msra.mxu0 %v1509
      %1780 = vmatpush.msra.mxu0 %v1507
      %1781 = vmatpush.msra.mxu0 %v1505
      %1782 = vmatpush.msra.mxu0 %v1503
      %1783 = vmatpush.msra.mxu0 %v1501
      %1784 = vmatmul.f32.gmra.mxu0 %v1432
      %v1785 = vpop.f32.mrf.mxu0
      %v1786 = vadd.f32 %v1766, %v1785
      %1787 = vdwg.mxu0
      %1788 = vmatpush.msra.mxu0 %v1563
      %1789 = vmatpush.msra.mxu0 %v1561
      %1790 = vmatpush.msra.mxu0 %v1559
      %1791 = vmatpush.msra.mxu0 %v1557
      %1792 = vmatpush.msra.mxu0 %v1555
      %1793 = vmatpush.msra.mxu0 %v1553
      %1794 = vmatpush.msra.mxu0 %v1551
      %1795 = vmatpush.msra.mxu0 %v1549
      %1796 = vmatpush.msra.mxu0 %v1547
      %1797 = vmatpush.msra.mxu0 %v1545
      %1798 = vmatpush.msra.mxu0 %v1543
      %1799 = vmatpush.msra.mxu0 %v1541
      %1800 = vmatpush.msra.mxu0 %v1539
      %1801 = vmatpush.msra.mxu0 %v1537
      %1802 = vmatpush.msra.mxu0 %v1535
      %1803 = vmatpush.msra.mxu0 %v1533
      %1804 = vmatmul.f32.gmra.mxu0 %v1433
      %v1805 = vpop.f32.mrf.mxu0
      %v1806 = vadd.f32 %v1786, %v1805
      %1807 = vdwg.mxu0
      %1808 = vmatpush.msra.mxu0 %v1595
      %1809 = vmatpush.msra.mxu0 %v1593
      %1810 = vmatpush.msra.mxu0 %v1591
      %1811 = vmatpush.msra.mxu0 %v1589
      %1812 = vmatpush.msra.mxu0 %v1587
      %1813 = vmatpush.msra.mxu0 %v1585
      %1814 = vmatpush.msra.mxu0 %v1583
      %1815 = vmatpush.msra.mxu0 %v1581
      %1816 = vmatpush.msra.mxu0 %v1579
      %1817 = vmatpush.msra.mxu0 %v1577
      %1818 = vmatpush.msra.mxu0 %v1575
      %1819 = vmatpush.msra.mxu0 %v1573
      %1820 = vmatpush.msra.mxu0 %v1571
      %1821 = vmatpush.msra.mxu0 %v1569
      %1822 = vmatpush.msra.mxu0 %v1567
      %1823 = vmatpush.msra.mxu0 %v1565
      %1824 = vmatmul.f32.gmra.mxu0 %v1434
      %v1825 = vpop.f32.mrf.mxu0
      %v1826 = vadd.f32 %v1806, %v1825
      %1827 = vdwg.mxu0
      %1828 = vmatpush.msra.mxu0 0.0
      %1829 = vmatpush.msra.mxu0 0.0
      %1830 = vmatpush.msra.mxu0 0.0
      %1831 = vmatpush.msra.mxu0 0.0
      %1832 = vmatpush.msra.mxu0 0.0
      %1833 = vmatpush.msra.mxu0 0.0
      %1834 = vmatpush.msra.mxu0 0.0
      %1835 = vmatpush.msra.mxu0 0.0
      %1836 = vmatpush.msra.mxu0 0.0
      %1837 = vmatpush.msra.mxu0 0.0
      %1838 = vmatpush.msra.mxu0 0.0
      %1839 = vmatpush.msra.mxu0 0.0
      %1840 = vmatpush.msra.mxu0 %v1603
      %1841 = vmatpush.msra.mxu0 %v1601
      %1842 = vmatpush.msra.mxu0 %v1599
      %1843 = vmatpush.msra.mxu0 %v1597
      %1844 = vmatmul.f32.gmra.mxu0 %v1606
      %v1845 = vpop.f32.mrf.mxu0
      %v1846 = vadd.f32 %v1826, %v1845
      %1847 = vdwg.mxu0
      %s1848 = scalar_lea.vmem %s3, 1344
      %v1849 = vld [vmem:[%s1848] sm:$0xff]
      %v1850 = vld [vmem:[%s1848 + $0x8] sm:$0xff]
      %v1851 = vld [vmem:[%s1848 + $0x10] sm:$0xff]
      %v1852 = vld [vmem:[%s1848 + $0x18] sm:$0xff]
      %v1853 = vld [vmem:[%s1848 + $0x20] sm:$0xff]
      %v1854 = vld [vmem:[%s1848 + $0x28] sm:$0xff]
      %v1855 = vld [vmem:[%s1848 + $0x30] sm:$0xff]
      %v1856 = vld [vmem:[%s1848 + $0x38] sm:$0xff]
      %v1857 = vld [vmem:[%s1848 + $0x40] sm:$0xff]
      %v1858 = vld [vmem:[%s1848 + $0x48] sm:$0xff]
      %v1859 = vld [vmem:[%s1848 + $0x50] sm:$0xff]
      %v1860 = vld [vmem:[%s1848 + $0x58] sm:$0xff]
      %v1861 = vld [vmem:[%s1848 + $0x60] sm:$0xff]
      %v1862 = vld [vmem:[%s1848 + $0x68] sm:$0xff]
      %v1863 = vld [vmem:[%s1848 + $0x70] sm:$0xff]
      %v1864 = vld [vmem:[%s1848 + $0x78] sm:$0xff]
      %v1865 = vld [vmem:[%s1848 + $0x80] sm:$0xff]
      %v1866 = vld [vmem:[%s1848 + $0x88] sm:$0xff]
      %v1867 = vld [vmem:[%s1848 + $0x90] sm:$0xff]
      %v1868 = vld [vmem:[%s1848 + $0x98] sm:$0xff]
      %v1869 = vld [vmem:[%s1848 + $0xa0] sm:$0xff]
      %v1870 = vld [vmem:[%s1848 + $0xa8] sm:$0xff]
      %v1871 = vld [vmem:[%s1848 + $0xb0] sm:$0xff]
      %v1872 = vld [vmem:[%s1848 + $0xb8] sm:$0xff]
      %v1873 = vld [vmem:[%s1848 + $0xc0] sm:$0xff]
      %v1874 = vld [vmem:[%s1848 + $0xc8] sm:$0xff]
      %v1875 = vld [vmem:[%s1848 + $0xd0] sm:$0xff]
      %v1876 = vld [vmem:[%s1848 + $0xd8] sm:$0xff]
      %v1877 = vld [vmem:[%s1848 + $0xe0] sm:$0xff]
      %v1878 = vld [vmem:[%s1848 + $0xe8] sm:$0xff]
      %v1879 = vld [vmem:[%s1848 + $0xf0] sm:$0xff]
      %v1880 = vld [vmem:[%s1848 + $0xf8] sm:$0xff]
      %v1881 = vld [vmem:[%s1848 + $0x100] sm:$0xff]
      %v1882 = vld [vmem:[%s1848 + $0x108] sm:$0xff]
      %v1883 = vld [vmem:[%s1848 + $0x110] sm:$0xff]
      %v1884 = vld [vmem:[%s1848 + $0x118] sm:$0xff]
      %v1885 = vld [vmem:[%s1848 + $0x120] sm:$0xff]
      %v1886 = vld [vmem:[%s1848 + $0x128] sm:$0xff]
      %v1887 = vld [vmem:[%s1848 + $0x130] sm:$0xff]
      %v1888 = vld [vmem:[%s1848 + $0x138] sm:$0xff]
      %v1889 = vld [vmem:[%s1848 + $0x140] sm:$0xff]
      %v1890 = vld [vmem:[%s1848 + $0x148] sm:$0xff]
      %v1891 = vld [vmem:[%s1848 + $0x150] sm:$0xff]
      %v1892 = vld [vmem:[%s1848 + $0x158] sm:$0xff]
      %v1893 = vld [vmem:[%s1848 + $0x160] sm:$0xff]
      %v1894 = vld [vmem:[%s1848 + $0x168] sm:$0xff]
      %v1895 = vld [vmem:[%s1848 + $0x170] sm:$0xff]
      %v1896 = vld [vmem:[%s1848 + $0x178] sm:$0xff]
      %v1897 = vld [vmem:[%s1848 + $0x180] sm:$0xff]
      %v1898 = vld [vmem:[%s1848 + $0x188] sm:$0xff]
      %v1899 = vld [vmem:[%s1848 + $0x190] sm:$0xff]
      %v1900 = vld [vmem:[%s1848 + $0x198] sm:$0xff]
      %v1901 = vld [vmem:[%s1848 + $0x1a0] sm:$0xff]
      %v1902 = vld [vmem:[%s1848 + $0x1a8] sm:$0xff]
      %v1903 = vld [vmem:[%s1848 + $0x1b0] sm:$0xff]
      %v1904 = vld [vmem:[%s1848 + $0x1b8] sm:$0xff]
      %v1905 = vld [vmem:[%s1848 + $0x1c0] sm:$0xff]
      %v1906 = vld [vmem:[%s1848 + $0x1c8] sm:$0xff]
      %v1907 = vld [vmem:[%s1848 + $0x1d0] sm:$0xff]
      %v1908 = vld [vmem:[%s1848 + $0x1d8] sm:$0xff]
      %v1909 = vld [vmem:[%s1848 + $0x1e0] sm:$0xff]
      %v1910 = vld [vmem:[%s1848 + $0x1e8] sm:$0xff]
      %v1911 = vld [vmem:[%s1848 + $0x1f0] sm:$0xff]
      %v1912 = vld [vmem:[%s1848 + $0x1f8] sm:$0xff]
      %v1913 = vld [vmem:[%s1848 + $0x200] sm:$0xff]
      %v1914 = vld [vmem:[%s1848 + $0x208] sm:$0xff]
      %v1915 = vld [vmem:[%s1848 + $0x210] sm:$0xff]
      %v1916 = vld [vmem:[%s1848 + $0x218] sm:$0xff]
      %v1917 = vld [vmem:[%s1848 + $0x220] sm:$0xff]
      %v1918 = vld [vmem:[%s1848 + $0x228] sm:$0xff]
      %v1919 = vld [vmem:[%s1848 + $0x230] sm:$0xff]
      %v1920 = vld [vmem:[%s1848 + $0x238] sm:$0xff]
      %v1921 = vld [vmem:[%s1848 + $0x240] sm:$0xff]
      %v1922 = vld [vmem:[%s1848 + $0x248] sm:$0xff]
      %v1923 = vld [vmem:[%s1848 + $0x250] sm:$0xff]
      %v1924 = vld [vmem:[%s1848 + $0x258] sm:$0xff]
      %v1925 = vld [vmem:[%s1848 + $0x260] sm:$0xff]
      %v1926 = vld [vmem:[%s1848 + $0x268] sm:$0xff]
      %v1927 = vld [vmem:[%s1848 + $0x270] sm:$0xff]
      %v1928 = vld [vmem:[%s1848 + $0x278] sm:$0xff]
      %v1929 = vld [vmem:[%s1848 + $0x280] sm:$0xff]
      %v1930 = vld [vmem:[%s1848 + $0x288] sm:$0xff]
      %v1931 = vld [vmem:[%s1848 + $0x290] sm:$0xff]
      %v1932 = vld [vmem:[%s1848 + $0x298] sm:$0xff]
      %v1933 = vld [vmem:[%s1848 + $0x2a0] sm:$0xff]
      %v1934 = vld [vmem:[%s1848 + $0x2a8] sm:$0xff]
      %v1935 = vld [vmem:[%s1848 + $0x2b0] sm:$0xff]
      %v1936 = vld [vmem:[%s1848 + $0x2b8] sm:$0xff]
      %v1937 = vld [vmem:[%s1848 + $0x2c0] sm:$0xff]
      %v1938 = vld [vmem:[%s1848 + $0x2c8] sm:$0xff]
      %v1939 = vld [vmem:[%s1848 + $0x2d0] sm:$0xff]
      %v1940 = vld [vmem:[%s1848 + $0x2d8] sm:$0xff]
      %v1941 = vld [vmem:[%s1848 + $0x2e0] sm:$0xff]
      %v1942 = vld [vmem:[%s1848 + $0x2e8] sm:$0xff]
      %v1943 = vld [vmem:[%s1848 + $0x2f0] sm:$0xff]
      %v1944 = vld [vmem:[%s1848 + $0x2f8] sm:$0xff]
      %v1945 = vld [vmem:[%s1848 + $0x300] sm:$0xff]
      %v1946 = vld [vmem:[%s1848 + $0x308] sm:$0xff]
      %v1947 = vld [vmem:[%s1848 + $0x310] sm:$0xff]
      %v1948 = vld [vmem:[%s1848 + $0x318] sm:$0xff]
      %v1949 = vld [vmem:[%s1848 + $0x320] sm:$0xff]
      %v1950 = vld [vmem:[%s1848 + $0x328] sm:$0xff]
      %v1951 = vld [vmem:[%s1848 + $0x330] sm:$0xff]
      %v1952 = vld [vmem:[%s1848 + $0x338] sm:$0xff]
      %v1953 = vld [vmem:[%s1848 + $0x340] sm:$0xff]
      %v1954 = vld [vmem:[%s1848 + $0x348] sm:$0xff]
      %v1955 = vld [vmem:[%s1848 + $0x350] sm:$0xff]
      %v1956 = vld [vmem:[%s1848 + $0x358] sm:$0xff]
      %v1957 = vld [vmem:[%s1848 + $0x360] sm:$0xff]
      %v1958 = vld [vmem:[%s1848 + $0x368] sm:$0xff]
      %v1959 = vld [vmem:[%s1848 + $0x370] sm:$0xff]
      %v1960 = vld [vmem:[%s1848 + $0x378] sm:$0xff]
      %v1961 = vld [vmem:[%s1848 + $0x380] sm:$0xff]
      %v1962 = vld [vmem:[%s1848 + $0x388] sm:$0xff]
      %v1963 = vld [vmem:[%s1848 + $0x390] sm:$0xff]
      %v1964 = vld [vmem:[%s1848 + $0x398] sm:$0xff]
      %v1965 = vld [vmem:[%s1848 + $0x3a0] sm:$0xff]
      %v1966 = vld [vmem:[%s1848 + $0x3a8] sm:$0xff]
      %v1967 = vld [vmem:[%s1848 + $0x3b0] sm:$0xff]
      %v1968 = vld [vmem:[%s1848 + $0x3b8] sm:$0xff]
      %v1969 = vld [vmem:[%s1848 + $0x3c0] sm:$0xff]
      %v1970 = vld [vmem:[%s1848 + $0x3c8] sm:$0xff]
      %v1971 = vld [vmem:[%s1848 + $0x3d0] sm:$0xff]
      %v1972 = vld [vmem:[%s1848 + $0x3d8] sm:$0xff]
      %v1973 = vld [vmem:[%s1848 + $0x3e0] sm:$0xff]
      %v1974 = vld [vmem:[%s1848 + $0x3e8] sm:$0xff]
      %v1975 = vld [vmem:[%s1848 + $0x3f0] sm:$0xff]
      %v1976 = vld [vmem:[%s1848 + $0x3f8] sm:$0xff]
      %v1977 = vld [vmem:[%s1848 + $0x400] sm:$0xff]
      %v1978 = vld [vmem:[%s1848 + $0x408] sm:$0xff]
      %v1979 = vld [vmem:[%s1848 + $0x410] sm:$0xff]
      %v1980 = vld [vmem:[%s1848 + $0x418] sm:$0xff]
      %v1981 = vld [vmem:[%s1848 + $0x420] sm:$0xff]
      %v1982 = vld [vmem:[%s1848 + $0x428] sm:$0xff]
      %v1983 = vld [vmem:[%s1848 + $0x430] sm:$0xff]
      %v1984 = vld [vmem:[%s1848 + $0x438] sm:$0xff]
      %v1985 = vld [vmem:[%s1848 + $0x440] sm:$0xff]
      %v1986 = vld [vmem:[%s1848 + $0x448] sm:$0xff]
      %v1987 = vld [vmem:[%s1848 + $0x450] sm:$0xff]
      %v1988 = vld [vmem:[%s1848 + $0x458] sm:$0xff]
      %v1989 = vld [vmem:[%s1848 + $0x460] sm:$0xff]
      %v1990 = vld [vmem:[%s1848 + $0x468] sm:$0xff]
      %v1991 = vld [vmem:[%s1848 + $0x470] sm:$0xff]
      %v1992 = vld [vmem:[%s1848 + $0x478] sm:$0xff]
      %v1993 = vld [vmem:[%s1848 + $0x480] sm:$0xff]
      %v1994 = vld [vmem:[%s1848 + $0x488] sm:$0xff]
      %v1995 = vld [vmem:[%s1848 + $0x490] sm:$0xff]
      %v1996 = vld [vmem:[%s1848 + $0x498] sm:$0xff]
      %v1997 = vld [vmem:[%s1848 + $0x4a0] sm:$0xff]
      %v1998 = vld [vmem:[%s1848 + $0x4a8] sm:$0xff]
      %v1999 = vld [vmem:[%s1848 + $0x4b0] sm:$0xff]
      %v2000 = vld [vmem:[%s1848 + $0x4b8] sm:$0xff]
      %v2001 = vld [vmem:[%s1848 + $0x4c0] sm:$0xff]
      %v2002 = vld [vmem:[%s1848 + $0x4c8] sm:$0xff]
      %v2003 = vld [vmem:[%s1848 + $0x4d0] sm:$0xff]
      %v2004 = vld [vmem:[%s1848 + $0x4d8] sm:$0xff]
      %v2005 = vld [vmem:[%s1848 + $0x4e0] sm:$0xff]
      %v2006 = vld [vmem:[%s1848 + $0x4e8] sm:$0xff]
      %v2007 = vld [vmem:[%s1848 + $0x4f0] sm:$0xff]
      %v2008 = vld [vmem:[%s1848 + $0x4f8] sm:$0xff]
      %v2009 = vld [vmem:[%s1848 + $0x500] sm:$0xff]
      %v2010 = vld [vmem:[%s1848 + $0x508] sm:$0xff]
      %v2011 = vld [vmem:[%s1848 + $0x510] sm:$0xff]
      %v2012 = vld [vmem:[%s1848 + $0x518] sm:$0xff]
      %v2013 = vld [vmem:[%s1848 + $0x520] sm:$0xff]
      %v2014 = vld [vmem:[%s1848 + $0x528] sm:$0xff]
      %v2015 = vld [vmem:[%s1848 + $0x530] sm:$0xff]
      %v2016 = vld [vmem:[%s1848 + $0x538] sm:$0xff]
      %2017 = vmatpush.msra.mxu0 %v1879
      %2018 = vmatpush.msra.mxu0 %v1877
      %2019 = vmatpush.msra.mxu0 %v1875
      %2020 = vmatpush.msra.mxu0 %v1873
      %2021 = vmatpush.msra.mxu0 %v1871
      %2022 = vmatpush.msra.mxu0 %v1869
      %2023 = vmatpush.msra.mxu0 %v1867
      %2024 = vmatpush.msra.mxu0 %v1865
      %2025 = vmatpush.msra.mxu0 %v1863
      %2026 = vmatpush.msra.mxu0 %v1861
      %2027 = vmatpush.msra.mxu0 %v1859
      %2028 = vmatpush.msra.mxu0 %v1857
      %2029 = vmatpush.msra.mxu0 %v1855
      %2030 = vmatpush.msra.mxu0 %v1853
      %2031 = vmatpush.msra.mxu0 %v1851
      %2032 = vmatpush.msra.mxu0 %v1849
      %2033 = vmatmul.f32.gmra.mxu0 %v1430
      %v2034 = vpop.f32.mrf.mxu0
      %v2035 = vadd.f32 0.0, %v2034
      %2036 = vdwg.mxu0
      %2037 = vmatpush.msra.mxu0 %v1911
      %2038 = vmatpush.msra.mxu0 %v1909
      %2039 = vmatpush.msra.mxu0 %v1907
      %2040 = vmatpush.msra.mxu0 %v1905
      %2041 = vmatpush.msra.mxu0 %v1903
      %2042 = vmatpush.msra.mxu0 %v1901
      %2043 = vmatpush.msra.mxu0 %v1899
      %2044 = vmatpush.msra.mxu0 %v1897
      %2045 = vmatpush.msra.mxu0 %v1895
      %2046 = vmatpush.msra.mxu0 %v1893
      %2047 = vmatpush.msra.mxu0 %v1891
      %2048 = vmatpush.msra.mxu0 %v1889
      %2049 = vmatpush.msra.mxu0 %v1887
      %2050 = vmatpush.msra.mxu0 %v1885
      %2051 = vmatpush.msra.mxu0 %v1883
      %2052 = vmatpush.msra.mxu0 %v1881
      %2053 = vmatmul.f32.gmra.mxu0 %v1431
      %v2054 = vpop.f32.mrf.mxu0
      %v2055 = vadd.f32 %v2035, %v2054
      %2056 = vdwg.mxu0
      %2057 = vmatpush.msra.mxu0 %v1943
      %2058 = vmatpush.msra.mxu0 %v1941
      %2059 = vmatpush.msra.mxu0 %v1939
      %2060 = vmatpush.msra.mxu0 %v1937
      %2061 = vmatpush.msra.mxu0 %v1935
      %2062 = vmatpush.msra.mxu0 %v1933
      %2063 = vmatpush.msra.mxu0 %v1931
      %2064 = vmatpush.msra.mxu0 %v1929
      %2065 = vmatpush.msra.mxu0 %v1927
      %2066 = vmatpush.msra.mxu0 %v1925
      %2067 = vmatpush.msra.mxu0 %v1923
      %2068 = vmatpush.msra.mxu0 %v1921
      %2069 = vmatpush.msra.mxu0 %v1919
      %2070 = vmatpush.msra.mxu0 %v1917
      %2071 = vmatpush.msra.mxu0 %v1915
      %2072 = vmatpush.msra.mxu0 %v1913
      %2073 = vmatmul.f32.gmra.mxu0 %v1432
      %v2074 = vpop.f32.mrf.mxu0
      %v2075 = vadd.f32 %v2055, %v2074
      %2076 = vdwg.mxu0
      %2077 = vmatpush.msra.mxu0 %v1975
      %2078 = vmatpush.msra.mxu0 %v1973
      %2079 = vmatpush.msra.mxu0 %v1971
      %2080 = vmatpush.msra.mxu0 %v1969
      %2081 = vmatpush.msra.mxu0 %v1967
      %2082 = vmatpush.msra.mxu0 %v1965
      %2083 = vmatpush.msra.mxu0 %v1963
      %2084 = vmatpush.msra.mxu0 %v1961
      %2085 = vmatpush.msra.mxu0 %v1959
      %2086 = vmatpush.msra.mxu0 %v1957
      %2087 = vmatpush.msra.mxu0 %v1955
      %2088 = vmatpush.msra.mxu0 %v1953
      %2089 = vmatpush.msra.mxu0 %v1951
      %2090 = vmatpush.msra.mxu0 %v1949
      %2091 = vmatpush.msra.mxu0 %v1947
      %2092 = vmatpush.msra.mxu0 %v1945
      %2093 = vmatmul.f32.gmra.mxu0 %v1433
      %v2094 = vpop.f32.mrf.mxu0
      %v2095 = vadd.f32 %v2075, %v2094
      %2096 = vdwg.mxu0
      %2097 = vmatpush.msra.mxu0 %v2007
      %2098 = vmatpush.msra.mxu0 %v2005
      %2099 = vmatpush.msra.mxu0 %v2003
      %2100 = vmatpush.msra.mxu0 %v2001
      %2101 = vmatpush.msra.mxu0 %v1999
      %2102 = vmatpush.msra.mxu0 %v1997
      %2103 = vmatpush.msra.mxu0 %v1995
      %2104 = vmatpush.msra.mxu0 %v1993
      %2105 = vmatpush.msra.mxu0 %v1991
      %2106 = vmatpush.msra.mxu0 %v1989
      %2107 = vmatpush.msra.mxu0 %v1987
      %2108 = vmatpush.msra.mxu0 %v1985
      %2109 = vmatpush.msra.mxu0 %v1983
      %2110 = vmatpush.msra.mxu0 %v1981
      %2111 = vmatpush.msra.mxu0 %v1979
      %2112 = vmatpush.msra.mxu0 %v1977
      %2113 = vmatmul.f32.gmra.mxu0 %v1434
      %v2114 = vpop.f32.mrf.mxu0
      %v2115 = vadd.f32 %v2095, %v2114
      %2116 = vdwg.mxu0
      %2117 = vmatpush.msra.mxu0 0.0
      %2118 = vmatpush.msra.mxu0 0.0
      %2119 = vmatpush.msra.mxu0 0.0
      %2120 = vmatpush.msra.mxu0 0.0
      %2121 = vmatpush.msra.mxu0 0.0
      %2122 = vmatpush.msra.mxu0 0.0
      %2123 = vmatpush.msra.mxu0 0.0
      %2124 = vmatpush.msra.mxu0 0.0
      %2125 = vmatpush.msra.mxu0 0.0
      %2126 = vmatpush.msra.mxu0 0.0
      %2127 = vmatpush.msra.mxu0 0.0
      %2128 = vmatpush.msra.mxu0 0.0
      %2129 = vmatpush.msra.mxu0 %v2015
      %2130 = vmatpush.msra.mxu0 %v2013
      %2131 = vmatpush.msra.mxu0 %v2011
      %2132 = vmatpush.msra.mxu0 %v2009
      %2133 = vmatmul.f32.gmra.mxu0 %v1606
      %v2134 = vpop.f32.mrf.mxu0
      %v2135 = vadd.f32 %v2115, %v2134
      %2136 = vdwg.mxu0
      %2137 = vmatpush.msra.mxu0 %v1880
      %2138 = vmatpush.msra.mxu0 %v1878
      %2139 = vmatpush.msra.mxu0 %v1876
      %2140 = vmatpush.msra.mxu0 %v1874
      %2141 = vmatpush.msra.mxu0 %v1872
      %2142 = vmatpush.msra.mxu0 %v1870
      %2143 = vmatpush.msra.mxu0 %v1868
      %2144 = vmatpush.msra.mxu0 %v1866
      %2145 = vmatpush.msra.mxu0 %v1864
      %2146 = vmatpush.msra.mxu0 %v1862
      %2147 = vmatpush.msra.mxu0 %v1860
      %2148 = vmatpush.msra.mxu0 %v1858
      %2149 = vmatpush.msra.mxu0 %v1856
      %2150 = vmatpush.msra.mxu0 %v1854
      %2151 = vmatpush.msra.mxu0 %v1852
      %2152 = vmatpush.msra.mxu0 %v1850
      %2153 = vmatmul.f32.gmra.mxu0 %v1430
      %v2154 = vpop.f32.mrf.mxu0
      %v2155 = vadd.f32 0.0, %v2154
      %2156 = vdwg.mxu0
      %2157 = vmatpush.msra.mxu0 %v1912
      %2158 = vmatpush.msra.mxu0 %v1910
      %2159 = vmatpush.msra.mxu0 %v1908
      %2160 = vmatpush.msra.mxu0 %v1906
      %2161 = vmatpush.msra.mxu0 %v1904
      %2162 = vmatpush.msra.mxu0 %v1902
      %2163 = vmatpush.msra.mxu0 %v1900
      %2164 = vmatpush.msra.mxu0 %v1898
      %2165 = vmatpush.msra.mxu0 %v1896
      %2166 = vmatpush.msra.mxu0 %v1894
      %2167 = vmatpush.msra.mxu0 %v1892
      %2168 = vmatpush.msra.mxu0 %v1890
      %2169 = vmatpush.msra.mxu0 %v1888
      %2170 = vmatpush.msra.mxu0 %v1886
      %2171 = vmatpush.msra.mxu0 %v1884
      %2172 = vmatpush.msra.mxu0 %v1882
      %2173 = vmatmul.f32.gmra.mxu0 %v1431
      %v2174 = vpop.f32.mrf.mxu0
      %v2175 = vadd.f32 %v2155, %v2174
      %2176 = vdwg.mxu0
      %2177 = vmatpush.msra.mxu0 %v1944
      %2178 = vmatpush.msra.mxu0 %v1942
      %2179 = vmatpush.msra.mxu0 %v1940
      %2180 = vmatpush.msra.mxu0 %v1938
      %2181 = vmatpush.msra.mxu0 %v1936
      %2182 = vmatpush.msra.mxu0 %v1934
      %2183 = vmatpush.msra.mxu0 %v1932
      %2184 = vmatpush.msra.mxu0 %v1930
      %2185 = vmatpush.msra.mxu0 %v1928
      %2186 = vmatpush.msra.mxu0 %v1926
      %2187 = vmatpush.msra.mxu0 %v1924
      %2188 = vmatpush.msra.mxu0 %v1922
      %2189 = vmatpush.msra.mxu0 %v1920
      %2190 = vmatpush.msra.mxu0 %v1918
      %2191 = vmatpush.msra.mxu0 %v1916
      %2192 = vmatpush.msra.mxu0 %v1914
      %2193 = vmatmul.f32.gmra.mxu0 %v1432
      %v2194 = vpop.f32.mrf.mxu0
      %v2195 = vadd.f32 %v2175, %v2194
      %2196 = vdwg.mxu0
      %2197 = vmatpush.msra.mxu0 %v1976
      %2198 = vmatpush.msra.mxu0 %v1974
      %2199 = vmatpush.msra.mxu0 %v1972
      %2200 = vmatpush.msra.mxu0 %v1970
      %2201 = vmatpush.msra.mxu0 %v1968
      %2202 = vmatpush.msra.mxu0 %v1966
      %2203 = vmatpush.msra.mxu0 %v1964
      %2204 = vmatpush.msra.mxu0 %v1962
      %2205 = vmatpush.msra.mxu0 %v1960
      %2206 = vmatpush.msra.mxu0 %v1958
      %2207 = vmatpush.msra.mxu0 %v1956
      %2208 = vmatpush.msra.mxu0 %v1954
      %2209 = vmatpush.msra.mxu0 %v1952
      %2210 = vmatpush.msra.mxu0 %v1950
      %2211 = vmatpush.msra.mxu0 %v1948
      %2212 = vmatpush.msra.mxu0 %v1946
      %2213 = vmatmul.f32.gmra.mxu0 %v1433
      %v2214 = vpop.f32.mrf.mxu0
      %v2215 = vadd.f32 %v2195, %v2214
      %2216 = vdwg.mxu0
      %2217 = vmatpush.msra.mxu0 %v2008
      %2218 = vmatpush.msra.mxu0 %v2006
      %2219 = vmatpush.msra.mxu0 %v2004
      %2220 = vmatpush.msra.mxu0 %v2002
      %2221 = vmatpush.msra.mxu0 %v2000
      %2222 = vmatpush.msra.mxu0 %v1998
      %2223 = vmatpush.msra.mxu0 %v1996
      %2224 = vmatpush.msra.mxu0 %v1994
      %2225 = vmatpush.msra.mxu0 %v1992
      %2226 = vmatpush.msra.mxu0 %v1990
      %2227 = vmatpush.msra.mxu0 %v1988
      %2228 = vmatpush.msra.mxu0 %v1986
      %2229 = vmatpush.msra.mxu0 %v1984
      %2230 = vmatpush.msra.mxu0 %v1982
      %2231 = vmatpush.msra.mxu0 %v1980
      %2232 = vmatpush.msra.mxu0 %v1978
      %2233 = vmatmul.f32.gmra.mxu0 %v1434
      %v2234 = vpop.f32.mrf.mxu0
      %v2235 = vadd.f32 %v2215, %v2234
      %2236 = vdwg.mxu0
      %2237 = vmatpush.msra.mxu0 0.0
      %2238 = vmatpush.msra.mxu0 0.0
      %2239 = vmatpush.msra.mxu0 0.0
      %2240 = vmatpush.msra.mxu0 0.0
      %2241 = vmatpush.msra.mxu0 0.0
      %2242 = vmatpush.msra.mxu0 0.0
      %2243 = vmatpush.msra.mxu0 0.0
      %2244 = vmatpush.msra.mxu0 0.0
      %2245 = vmatpush.msra.mxu0 0.0
      %2246 = vmatpush.msra.mxu0 0.0
      %2247 = vmatpush.msra.mxu0 0.0
      %2248 = vmatpush.msra.mxu0 0.0
      %2249 = vmatpush.msra.mxu0 %v2016
      %2250 = vmatpush.msra.mxu0 %v2014
      %2251 = vmatpush.msra.mxu0 %v2012
      %2252 = vmatpush.msra.mxu0 %v2010
      %2253 = vmatmul.f32.gmra.mxu0 %v1606
      %v2254 = vpop.f32.mrf.mxu0
      %v2255 = vadd.f32 %v2235, %v2254
      %2256 = vdwg.mxu0
      %v2257 = vmax.f32 %v1726, %v2135
      %v2258 = vmax.f32 %v1846, %v2255
      %s2259 = scalar_lea.vmem %s3, 2688
      %v2260 = vld [vmem:[%s2259] sm:$0xff]
      %v2261 = vld [vmem:[%s2259 + $0x8] sm:$0xff]
      %v2262 = vld [vmem:[%s2259 + $0x10] sm:$0xff]
      %v2263 = vld [vmem:[%s2259 + $0x18] sm:$0xff]
      %v2264 = vld [vmem:[%s2259 + $0x20] sm:$0xff]
      %v2265 = vld [vmem:[%s2259 + $0x28] sm:$0xff]
      %v2266 = vld [vmem:[%s2259 + $0x30] sm:$0xff]
      %v2267 = vld [vmem:[%s2259 + $0x38] sm:$0xff]
      %v2268 = vld [vmem:[%s2259 + $0x40] sm:$0xff]
      %v2269 = vld [vmem:[%s2259 + $0x48] sm:$0xff]
      %v2270 = vld [vmem:[%s2259 + $0x50] sm:$0xff]
      %v2271 = vld [vmem:[%s2259 + $0x58] sm:$0xff]
      %v2272 = vld [vmem:[%s2259 + $0x60] sm:$0xff]
      %v2273 = vld [vmem:[%s2259 + $0x68] sm:$0xff]
      %v2274 = vld [vmem:[%s2259 + $0x70] sm:$0xff]
      %v2275 = vld [vmem:[%s2259 + $0x78] sm:$0xff]
      %v2276 = vld [vmem:[%s2259 + $0x80] sm:$0xff]
      %v2277 = vld [vmem:[%s2259 + $0x88] sm:$0xff]
      %v2278 = vld [vmem:[%s2259 + $0x90] sm:$0xff]
      %v2279 = vld [vmem:[%s2259 + $0x98] sm:$0xff]
      %v2280 = vld [vmem:[%s2259 + $0xa0] sm:$0xff]
      %v2281 = vld [vmem:[%s2259 + $0xa8] sm:$0xff]
      %v2282 = vld [vmem:[%s2259 + $0xb0] sm:$0xff]
      %v2283 = vld [vmem:[%s2259 + $0xb8] sm:$0xff]
      %v2284 = vld [vmem:[%s2259 + $0xc0] sm:$0xff]
      %v2285 = vld [vmem:[%s2259 + $0xc8] sm:$0xff]
      %v2286 = vld [vmem:[%s2259 + $0xd0] sm:$0xff]
      %v2287 = vld [vmem:[%s2259 + $0xd8] sm:$0xff]
      %v2288 = vld [vmem:[%s2259 + $0xe0] sm:$0xff]
      %v2289 = vld [vmem:[%s2259 + $0xe8] sm:$0xff]
      %v2290 = vld [vmem:[%s2259 + $0xf0] sm:$0xff]
      %v2291 = vld [vmem:[%s2259 + $0xf8] sm:$0xff]
      %v2292 = vld [vmem:[%s2259 + $0x100] sm:$0xff]
      %v2293 = vld [vmem:[%s2259 + $0x108] sm:$0xff]
      %v2294 = vld [vmem:[%s2259 + $0x110] sm:$0xff]
      %v2295 = vld [vmem:[%s2259 + $0x118] sm:$0xff]
      %v2296 = vld [vmem:[%s2259 + $0x120] sm:$0xff]
      %v2297 = vld [vmem:[%s2259 + $0x128] sm:$0xff]
      %v2298 = vld [vmem:[%s2259 + $0x130] sm:$0xff]
      %v2299 = vld [vmem:[%s2259 + $0x138] sm:$0xff]
      %v2300 = vld [vmem:[%s2259 + $0x140] sm:$0xff]
      %v2301 = vld [vmem:[%s2259 + $0x148] sm:$0xff]
      %v2302 = vld [vmem:[%s2259 + $0x150] sm:$0xff]
      %v2303 = vld [vmem:[%s2259 + $0x158] sm:$0xff]
      %v2304 = vld [vmem:[%s2259 + $0x160] sm:$0xff]
      %v2305 = vld [vmem:[%s2259 + $0x168] sm:$0xff]
      %v2306 = vld [vmem:[%s2259 + $0x170] sm:$0xff]
      %v2307 = vld [vmem:[%s2259 + $0x178] sm:$0xff]
      %v2308 = vld [vmem:[%s2259 + $0x180] sm:$0xff]
      %v2309 = vld [vmem:[%s2259 + $0x188] sm:$0xff]
      %v2310 = vld [vmem:[%s2259 + $0x190] sm:$0xff]
      %v2311 = vld [vmem:[%s2259 + $0x198] sm:$0xff]
      %v2312 = vld [vmem:[%s2259 + $0x1a0] sm:$0xff]
      %v2313 = vld [vmem:[%s2259 + $0x1a8] sm:$0xff]
      %v2314 = vld [vmem:[%s2259 + $0x1b0] sm:$0xff]
      %v2315 = vld [vmem:[%s2259 + $0x1b8] sm:$0xff]
      %v2316 = vld [vmem:[%s2259 + $0x1c0] sm:$0xff]
      %v2317 = vld [vmem:[%s2259 + $0x1c8] sm:$0xff]
      %v2318 = vld [vmem:[%s2259 + $0x1d0] sm:$0xff]
      %v2319 = vld [vmem:[%s2259 + $0x1d8] sm:$0xff]
      %v2320 = vld [vmem:[%s2259 + $0x1e0] sm:$0xff]
      %v2321 = vld [vmem:[%s2259 + $0x1e8] sm:$0xff]
      %v2322 = vld [vmem:[%s2259 + $0x1f0] sm:$0xff]
      %v2323 = vld [vmem:[%s2259 + $0x1f8] sm:$0xff]
      %v2324 = vld [vmem:[%s2259 + $0x200] sm:$0xff]
      %v2325 = vld [vmem:[%s2259 + $0x208] sm:$0xff]
      %v2326 = vld [vmem:[%s2259 + $0x210] sm:$0xff]
      %v2327 = vld [vmem:[%s2259 + $0x218] sm:$0xff]
      %v2328 = vld [vmem:[%s2259 + $0x220] sm:$0xff]
      %v2329 = vld [vmem:[%s2259 + $0x228] sm:$0xff]
      %v2330 = vld [vmem:[%s2259 + $0x230] sm:$0xff]
      %v2331 = vld [vmem:[%s2259 + $0x238] sm:$0xff]
      %v2332 = vld [vmem:[%s2259 + $0x240] sm:$0xff]
      %v2333 = vld [vmem:[%s2259 + $0x248] sm:$0xff]
      %v2334 = vld [vmem:[%s2259 + $0x250] sm:$0xff]
      %v2335 = vld [vmem:[%s2259 + $0x258] sm:$0xff]
      %v2336 = vld [vmem:[%s2259 + $0x260] sm:$0xff]
      %v2337 = vld [vmem:[%s2259 + $0x268] sm:$0xff]
      %v2338 = vld [vmem:[%s2259 + $0x270] sm:$0xff]
      %v2339 = vld [vmem:[%s2259 + $0x278] sm:$0xff]
      %v2340 = vld [vmem:[%s2259 + $0x280] sm:$0xff]
      %v2341 = vld [vmem:[%s2259 + $0x288] sm:$0xff]
      %v2342 = vld [vmem:[%s2259 + $0x290] sm:$0xff]
      %v2343 = vld [vmem:[%s2259 + $0x298] sm:$0xff]
      %v2344 = vld [vmem:[%s2259 + $0x2a0] sm:$0xff]
      %v2345 = vld [vmem:[%s2259 + $0x2a8] sm:$0xff]
      %v2346 = vld [vmem:[%s2259 + $0x2b0] sm:$0xff]
      %v2347 = vld [vmem:[%s2259 + $0x2b8] sm:$0xff]
      %v2348 = vld [vmem:[%s2259 + $0x2c0] sm:$0xff]
      %v2349 = vld [vmem:[%s2259 + $0x2c8] sm:$0xff]
      %v2350 = vld [vmem:[%s2259 + $0x2d0] sm:$0xff]
      %v2351 = vld [vmem:[%s2259 + $0x2d8] sm:$0xff]
      %v2352 = vld [vmem:[%s2259 + $0x2e0] sm:$0xff]
      %v2353 = vld [vmem:[%s2259 + $0x2e8] sm:$0xff]
      %v2354 = vld [vmem:[%s2259 + $0x2f0] sm:$0xff]
      %v2355 = vld [vmem:[%s2259 + $0x2f8] sm:$0xff]
      %v2356 = vld [vmem:[%s2259 + $0x300] sm:$0xff]
      %v2357 = vld [vmem:[%s2259 + $0x308] sm:$0xff]
      %v2358 = vld [vmem:[%s2259 + $0x310] sm:$0xff]
      %v2359 = vld [vmem:[%s2259 + $0x318] sm:$0xff]
      %v2360 = vld [vmem:[%s2259 + $0x320] sm:$0xff]
      %v2361 = vld [vmem:[%s2259 + $0x328] sm:$0xff]
      %v2362 = vld [vmem:[%s2259 + $0x330] sm:$0xff]
      %v2363 = vld [vmem:[%s2259 + $0x338] sm:$0xff]
      %v2364 = vld [vmem:[%s2259 + $0x340] sm:$0xff]
      %v2365 = vld [vmem:[%s2259 + $0x348] sm:$0xff]
      %v2366 = vld [vmem:[%s2259 + $0x350] sm:$0xff]
      %v2367 = vld [vmem:[%s2259 + $0x358] sm:$0xff]
      %v2368 = vld [vmem:[%s2259 + $0x360] sm:$0xff]
      %v2369 = vld [vmem:[%s2259 + $0x368] sm:$0xff]
      %v2370 = vld [vmem:[%s2259 + $0x370] sm:$0xff]
      %v2371 = vld [vmem:[%s2259 + $0x378] sm:$0xff]
      %v2372 = vld [vmem:[%s2259 + $0x380] sm:$0xff]
      %v2373 = vld [vmem:[%s2259 + $0x388] sm:$0xff]
      %v2374 = vld [vmem:[%s2259 + $0x390] sm:$0xff]
      %v2375 = vld [vmem:[%s2259 + $0x398] sm:$0xff]
      %v2376 = vld [vmem:[%s2259 + $0x3a0] sm:$0xff]
      %v2377 = vld [vmem:[%s2259 + $0x3a8] sm:$0xff]
      %v2378 = vld [vmem:[%s2259 + $0x3b0] sm:$0xff]
      %v2379 = vld [vmem:[%s2259 + $0x3b8] sm:$0xff]
      %v2380 = vld [vmem:[%s2259 + $0x3c0] sm:$0xff]
      %v2381 = vld [vmem:[%s2259 + $0x3c8] sm:$0xff]
      %v2382 = vld [vmem:[%s2259 + $0x3d0] sm:$0xff]
      %v2383 = vld [vmem:[%s2259 + $0x3d8] sm:$0xff]
      %v2384 = vld [vmem:[%s2259 + $0x3e0] sm:$0xff]
      %v2385 = vld [vmem:[%s2259 + $0x3e8] sm:$0xff]
      %v2386 = vld [vmem:[%s2259 + $0x3f0] sm:$0xff]
      %v2387 = vld [vmem:[%s2259 + $0x3f8] sm:$0xff]
      %v2388 = vld [vmem:[%s2259 + $0x400] sm:$0xff]
      %v2389 = vld [vmem:[%s2259 + $0x408] sm:$0xff]
      %v2390 = vld [vmem:[%s2259 + $0x410] sm:$0xff]
      %v2391 = vld [vmem:[%s2259 + $0x418] sm:$0xff]
      %v2392 = vld [vmem:[%s2259 + $0x420] sm:$0xff]
      %v2393 = vld [vmem:[%s2259 + $0x428] sm:$0xff]
      %v2394 = vld [vmem:[%s2259 + $0x430] sm:$0xff]
      %v2395 = vld [vmem:[%s2259 + $0x438] sm:$0xff]
      %v2396 = vld [vmem:[%s2259 + $0x440] sm:$0xff]
      %v2397 = vld [vmem:[%s2259 + $0x448] sm:$0xff]
      %v2398 = vld [vmem:[%s2259 + $0x450] sm:$0xff]
      %v2399 = vld [vmem:[%s2259 + $0x458] sm:$0xff]
      %v2400 = vld [vmem:[%s2259 + $0x460] sm:$0xff]
      %v2401 = vld [vmem:[%s2259 + $0x468] sm:$0xff]
      %v2402 = vld [vmem:[%s2259 + $0x470] sm:$0xff]
      %v2403 = vld [vmem:[%s2259 + $0x478] sm:$0xff]
      %v2404 = vld [vmem:[%s2259 + $0x480] sm:$0xff]
      %v2405 = vld [vmem:[%s2259 + $0x488] sm:$0xff]
      %v2406 = vld [vmem:[%s2259 + $0x490] sm:$0xff]
      %v2407 = vld [vmem:[%s2259 + $0x498] sm:$0xff]
      %v2408 = vld [vmem:[%s2259 + $0x4a0] sm:$0xff]
      %v2409 = vld [vmem:[%s2259 + $0x4a8] sm:$0xff]
      %v2410 = vld [vmem:[%s2259 + $0x4b0] sm:$0xff]
      %v2411 = vld [vmem:[%s2259 + $0x4b8] sm:$0xff]
      %v2412 = vld [vmem:[%s2259 + $0x4c0] sm:$0xff]
      %v2413 = vld [vmem:[%s2259 + $0x4c8] sm:$0xff]
      %v2414 = vld [vmem:[%s2259 + $0x4d0] sm:$0xff]
      %v2415 = vld [vmem:[%s2259 + $0x4d8] sm:$0xff]
      %v2416 = vld [vmem:[%s2259 + $0x4e0] sm:$0xff]
      %v2417 = vld [vmem:[%s2259 + $0x4e8] sm:$0xff]
      %v2418 = vld [vmem:[%s2259 + $0x4f0] sm:$0xff]
      %v2419 = vld [vmem:[%s2259 + $0x4f8] sm:$0xff]
      %v2420 = vld [vmem:[%s2259 + $0x500] sm:$0xff]
      %v2421 = vld [vmem:[%s2259 + $0x508] sm:$0xff]
      %v2422 = vld [vmem:[%s2259 + $0x510] sm:$0xff]
      %v2423 = vld [vmem:[%s2259 + $0x518] sm:$0xff]
      %v2424 = vld [vmem:[%s2259 + $0x520] sm:$0xff]
      %v2425 = vld [vmem:[%s2259 + $0x528] sm:$0xff]
      %v2426 = vld [vmem:[%s2259 + $0x530] sm:$0xff]
      %v2427 = vld [vmem:[%s2259 + $0x538] sm:$0xff]
      %2428 = vmatpush.msra.mxu0 %v2290
      %2429 = vmatpush.msra.mxu0 %v2288
      %2430 = vmatpush.msra.mxu0 %v2286
      %2431 = vmatpush.msra.mxu0 %v2284
      %2432 = vmatpush.msra.mxu0 %v2282
      %2433 = vmatpush.msra.mxu0 %v2280
      %2434 = vmatpush.msra.mxu0 %v2278
      %2435 = vmatpush.msra.mxu0 %v2276
      %2436 = vmatpush.msra.mxu0 %v2274
      %2437 = vmatpush.msra.mxu0 %v2272
      %2438 = vmatpush.msra.mxu0 %v2270
      %2439 = vmatpush.msra.mxu0 %v2268
      %2440 = vmatpush.msra.mxu0 %v2266
      %2441 = vmatpush.msra.mxu0 %v2264
      %2442 = vmatpush.msra.mxu0 %v2262
      %2443 = vmatpush.msra.mxu0 %v2260
      %2444 = vmatmul.f32.gmra.mxu0 %v1430
      %v2445 = vpop.f32.mrf.mxu0
      %v2446 = vadd.f32 0.0, %v2445
      %2447 = vdwg.mxu0
      %2448 = vmatpush.msra.mxu0 %v2322
      %2449 = vmatpush.msra.mxu0 %v2320
      %2450 = vmatpush.msra.mxu0 %v2318
      %2451 = vmatpush.msra.mxu0 %v2316
      %2452 = vmatpush.msra.mxu0 %v2314
      %2453 = vmatpush.msra.mxu0 %v2312
      %2454 = vmatpush.msra.mxu0 %v2310
      %2455 = vmatpush.msra.mxu0 %v2308
      %2456 = vmatpush.msra.mxu0 %v2306
      %2457 = vmatpush.msra.mxu0 %v2304
      %2458 = vmatpush.msra.mxu0 %v2302
      %2459 = vmatpush.msra.mxu0 %v2300
      %2460 = vmatpush.msra.mxu0 %v2298
      %2461 = vmatpush.msra.mxu0 %v2296
      %2462 = vmatpush.msra.mxu0 %v2294
      %2463 = vmatpush.msra.mxu0 %v2292
      %2464 = vmatmul.f32.gmra.mxu0 %v1431
      %v2465 = vpop.f32.mrf.mxu0
      %v2466 = vadd.f32 %v2446, %v2465
      %2467 = vdwg.mxu0
      %2468 = vmatpush.msra.mxu0 %v2354
      %2469 = vmatpush.msra.mxu0 %v2352
      %2470 = vmatpush.msra.mxu0 %v2350
      %2471 = vmatpush.msra.mxu0 %v2348
      %2472 = vmatpush.msra.mxu0 %v2346
      %2473 = vmatpush.msra.mxu0 %v2344
      %2474 = vmatpush.msra.mxu0 %v2342
      %2475 = vmatpush.msra.mxu0 %v2340
      %2476 = vmatpush.msra.mxu0 %v2338
      %2477 = vmatpush.msra.mxu0 %v2336
      %2478 = vmatpush.msra.mxu0 %v2334
      %2479 = vmatpush.msra.mxu0 %v2332
      %2480 = vmatpush.msra.mxu0 %v2330
      %2481 = vmatpush.msra.mxu0 %v2328
      %2482 = vmatpush.msra.mxu0 %v2326
      %2483 = vmatpush.msra.mxu0 %v2324
      %2484 = vmatmul.f32.gmra.mxu0 %v1432
      %v2485 = vpop.f32.mrf.mxu0
      %v2486 = vadd.f32 %v2466, %v2485
      %2487 = vdwg.mxu0
      %2488 = vmatpush.msra.mxu0 %v2386
      %2489 = vmatpush.msra.mxu0 %v2384
      %2490 = vmatpush.msra.mxu0 %v2382
      %2491 = vmatpush.msra.mxu0 %v2380
      %2492 = vmatpush.msra.mxu0 %v2378
      %2493 = vmatpush.msra.mxu0 %v2376
      %2494 = vmatpush.msra.mxu0 %v2374
      %2495 = vmatpush.msra.mxu0 %v2372
      %2496 = vmatpush.msra.mxu0 %v2370
      %2497 = vmatpush.msra.mxu0 %v2368
      %2498 = vmatpush.msra.mxu0 %v2366
      %2499 = vmatpush.msra.mxu0 %v2364
      %2500 = vmatpush.msra.mxu0 %v2362
      %2501 = vmatpush.msra.mxu0 %v2360
      %2502 = vmatpush.msra.mxu0 %v2358
      %2503 = vmatpush.msra.mxu0 %v2356
      %2504 = vmatmul.f32.gmra.mxu0 %v1433
      %v2505 = vpop.f32.mrf.mxu0
      %v2506 = vadd.f32 %v2486, %v2505
      %2507 = vdwg.mxu0
      %2508 = vmatpush.msra.mxu0 %v2418
      %2509 = vmatpush.msra.mxu0 %v2416
      %2510 = vmatpush.msra.mxu0 %v2414
      %2511 = vmatpush.msra.mxu0 %v2412
      %2512 = vmatpush.msra.mxu0 %v2410
      %2513 = vmatpush.msra.mxu0 %v2408
      %2514 = vmatpush.msra.mxu0 %v2406
      %2515 = vmatpush.msra.mxu0 %v2404
      %2516 = vmatpush.msra.mxu0 %v2402
      %2517 = vmatpush.msra.mxu0 %v2400
      %2518 = vmatpush.msra.mxu0 %v2398
      %2519 = vmatpush.msra.mxu0 %v2396
      %2520 = vmatpush.msra.mxu0 %v2394
      %2521 = vmatpush.msra.mxu0 %v2392
      %2522 = vmatpush.msra.mxu0 %v2390
      %2523 = vmatpush.msra.mxu0 %v2388
      %2524 = vmatmul.f32.gmra.mxu0 %v1434
      %v2525 = vpop.f32.mrf.mxu0
      %v2526 = vadd.f32 %v2506, %v2525
      %2527 = vdwg.mxu0
      %2528 = vmatpush.msra.mxu0 0.0
      %2529 = vmatpush.msra.mxu0 0.0
      %2530 = vmatpush.msra.mxu0 0.0
      %2531 = vmatpush.msra.mxu0 0.0
      %2532 = vmatpush.msra.mxu0 0.0
      %2533 = vmatpush.msra.mxu0 0.0
      %2534 = vmatpush.msra.mxu0 0.0
      %2535 = vmatpush.msra.mxu0 0.0
      %2536 = vmatpush.msra.mxu0 0.0
      %2537 = vmatpush.msra.mxu0 0.0
      %2538 = vmatpush.msra.mxu0 0.0
      %2539 = vmatpush.msra.mxu0 0.0
      %2540 = vmatpush.msra.mxu0 %v2426
      %2541 = vmatpush.msra.mxu0 %v2424
      %2542 = vmatpush.msra.mxu0 %v2422
      %2543 = vmatpush.msra.mxu0 %v2420
      %2544 = vmatmul.f32.gmra.mxu0 %v1606
      %v2545 = vpop.f32.mrf.mxu0
      %v2546 = vadd.f32 %v2526, %v2545
      %2547 = vdwg.mxu0
      %2548 = vmatpush.msra.mxu0 %v2291
      %2549 = vmatpush.msra.mxu0 %v2289
      %2550 = vmatpush.msra.mxu0 %v2287
      %2551 = vmatpush.msra.mxu0 %v2285
      %2552 = vmatpush.msra.mxu0 %v2283
      %2553 = vmatpush.msra.mxu0 %v2281
      %2554 = vmatpush.msra.mxu0 %v2279
      %2555 = vmatpush.msra.mxu0 %v2277
      %2556 = vmatpush.msra.mxu0 %v2275
      %2557 = vmatpush.msra.mxu0 %v2273
      %2558 = vmatpush.msra.mxu0 %v2271
      %2559 = vmatpush.msra.mxu0 %v2269
      %2560 = vmatpush.msra.mxu0 %v2267
      %2561 = vmatpush.msra.mxu0 %v2265
      %2562 = vmatpush.msra.mxu0 %v2263
      %2563 = vmatpush.msra.mxu0 %v2261
      %2564 = vmatmul.f32.gmra.mxu0 %v1430
      %v2565 = vpop.f32.mrf.mxu0
      %v2566 = vadd.f32 0.0, %v2565
      %2567 = vdwg.mxu0
      %2568 = vmatpush.msra.mxu0 %v2323
      %2569 = vmatpush.msra.mxu0 %v2321
      %2570 = vmatpush.msra.mxu0 %v2319
      %2571 = vmatpush.msra.mxu0 %v2317
      %2572 = vmatpush.msra.mxu0 %v2315
      %2573 = vmatpush.msra.mxu0 %v2313
      %2574 = vmatpush.msra.mxu0 %v2311
      %2575 = vmatpush.msra.mxu0 %v2309
      %2576 = vmatpush.msra.mxu0 %v2307
      %2577 = vmatpush.msra.mxu0 %v2305
      %2578 = vmatpush.msra.mxu0 %v2303
      %2579 = vmatpush.msra.mxu0 %v2301
      %2580 = vmatpush.msra.mxu0 %v2299
      %2581 = vmatpush.msra.mxu0 %v2297
      %2582 = vmatpush.msra.mxu0 %v2295
      %2583 = vmatpush.msra.mxu0 %v2293
      %2584 = vmatmul.f32.gmra.mxu0 %v1431
      %v2585 = vpop.f32.mrf.mxu0
      %v2586 = vadd.f32 %v2566, %v2585
      %2587 = vdwg.mxu0
      %2588 = vmatpush.msra.mxu0 %v2355
      %2589 = vmatpush.msra.mxu0 %v2353
      %2590 = vmatpush.msra.mxu0 %v2351
      %2591 = vmatpush.msra.mxu0 %v2349
      %2592 = vmatpush.msra.mxu0 %v2347
      %2593 = vmatpush.msra.mxu0 %v2345
      %2594 = vmatpush.msra.mxu0 %v2343
      %2595 = vmatpush.msra.mxu0 %v2341
      %2596 = vmatpush.msra.mxu0 %v2339
      %2597 = vmatpush.msra.mxu0 %v2337
      %2598 = vmatpush.msra.mxu0 %v2335
      %2599 = vmatpush.msra.mxu0 %v2333
      %2600 = vmatpush.msra.mxu0 %v2331
      %2601 = vmatpush.msra.mxu0 %v2329
      %2602 = vmatpush.msra.mxu0 %v2327
      %2603 = vmatpush.msra.mxu0 %v2325
      %2604 = vmatmul.f32.gmra.mxu0 %v1432
      %v2605 = vpop.f32.mrf.mxu0
      %v2606 = vadd.f32 %v2586, %v2605
      %2607 = vdwg.mxu0
      %2608 = vmatpush.msra.mxu0 %v2387
      %2609 = vmatpush.msra.mxu0 %v2385
      %2610 = vmatpush.msra.mxu0 %v2383
      %2611 = vmatpush.msra.mxu0 %v2381
      %2612 = vmatpush.msra.mxu0 %v2379
      %2613 = vmatpush.msra.mxu0 %v2377
      %2614 = vmatpush.msra.mxu0 %v2375
      %2615 = vmatpush.msra.mxu0 %v2373
      %2616 = vmatpush.msra.mxu0 %v2371
      %2617 = vmatpush.msra.mxu0 %v2369
      %2618 = vmatpush.msra.mxu0 %v2367
      %2619 = vmatpush.msra.mxu0 %v2365
      %2620 = vmatpush.msra.mxu0 %v2363
      %2621 = vmatpush.msra.mxu0 %v2361
      %2622 = vmatpush.msra.mxu0 %v2359
      %2623 = vmatpush.msra.mxu0 %v2357
      %2624 = vmatmul.f32.gmra.mxu0 %v1433
      %v2625 = vpop.f32.mrf.mxu0
      %v2626 = vadd.f32 %v2606, %v2625
      %2627 = vdwg.mxu0
      %2628 = vmatpush.msra.mxu0 %v2419
      %2629 = vmatpush.msra.mxu0 %v2417
      %2630 = vmatpush.msra.mxu0 %v2415
      %2631 = vmatpush.msra.mxu0 %v2413
      %2632 = vmatpush.msra.mxu0 %v2411
      %2633 = vmatpush.msra.mxu0 %v2409
      %2634 = vmatpush.msra.mxu0 %v2407
      %2635 = vmatpush.msra.mxu0 %v2405
      %2636 = vmatpush.msra.mxu0 %v2403
      %2637 = vmatpush.msra.mxu0 %v2401
      %2638 = vmatpush.msra.mxu0 %v2399
      %2639 = vmatpush.msra.mxu0 %v2397
      %2640 = vmatpush.msra.mxu0 %v2395
      %2641 = vmatpush.msra.mxu0 %v2393
      %2642 = vmatpush.msra.mxu0 %v2391
      %2643 = vmatpush.msra.mxu0 %v2389
      %2644 = vmatmul.f32.gmra.mxu0 %v1434
      %v2645 = vpop.f32.mrf.mxu0
      %v2646 = vadd.f32 %v2626, %v2645
      %2647 = vdwg.mxu0
      %2648 = vmatpush.msra.mxu0 0.0
      %2649 = vmatpush.msra.mxu0 0.0
      %2650 = vmatpush.msra.mxu0 0.0
      %2651 = vmatpush.msra.mxu0 0.0
      %2652 = vmatpush.msra.mxu0 0.0
      %2653 = vmatpush.msra.mxu0 0.0
      %2654 = vmatpush.msra.mxu0 0.0
      %2655 = vmatpush.msra.mxu0 0.0
      %2656 = vmatpush.msra.mxu0 0.0
      %2657 = vmatpush.msra.mxu0 0.0
      %2658 = vmatpush.msra.mxu0 0.0
      %2659 = vmatpush.msra.mxu0 0.0
      %2660 = vmatpush.msra.mxu0 %v2427
      %2661 = vmatpush.msra.mxu0 %v2425
      %2662 = vmatpush.msra.mxu0 %v2423
      %2663 = vmatpush.msra.mxu0 %v2421
      %2664 = vmatmul.f32.gmra.mxu0 %v1606
      %v2665 = vpop.f32.mrf.mxu0
      %v2666 = vadd.f32 %v2646, %v2665
      %2667 = vdwg.mxu0
      %v2668 = vmax.f32 %v2257, %v2546
      %v2669 = vmax.f32 %v2258, %v2666
      %s2670 = scalar_lea.vmem %s3, 4032
      %v2671 = vld [vmem:[%s2670] sm:$0xff]
      %v2672 = vld [vmem:[%s2670 + $0x8] sm:$0xff]
      %v2673 = vld [vmem:[%s2670 + $0x10] sm:$0xff]
      %v2674 = vld [vmem:[%s2670 + $0x18] sm:$0xff]
      %v2675 = vld [vmem:[%s2670 + $0x20] sm:$0xff]
      %v2676 = vld [vmem:[%s2670 + $0x28] sm:$0xff]
      %v2677 = vld [vmem:[%s2670 + $0x30] sm:$0xff]
      %v2678 = vld [vmem:[%s2670 + $0x38] sm:$0xff]
      %v2679 = vld [vmem:[%s2670 + $0x40] sm:$0xff]
      %v2680 = vld [vmem:[%s2670 + $0x48] sm:$0xff]
      %v2681 = vld [vmem:[%s2670 + $0x50] sm:$0xff]
      %v2682 = vld [vmem:[%s2670 + $0x58] sm:$0xff]
      %v2683 = vld [vmem:[%s2670 + $0x60] sm:$0xff]
      %v2684 = vld [vmem:[%s2670 + $0x68] sm:$0xff]
      %v2685 = vld [vmem:[%s2670 + $0x70] sm:$0xff]
      %v2686 = vld [vmem:[%s2670 + $0x78] sm:$0xff]
      %v2687 = vld [vmem:[%s2670 + $0x80] sm:$0xff]
      %v2688 = vld [vmem:[%s2670 + $0x88] sm:$0xff]
      %v2689 = vld [vmem:[%s2670 + $0x90] sm:$0xff]
      %v2690 = vld [vmem:[%s2670 + $0x98] sm:$0xff]
      %v2691 = vld [vmem:[%s2670 + $0xa0] sm:$0xff]
      %v2692 = vld [vmem:[%s2670 + $0xa8] sm:$0xff]
      %v2693 = vld [vmem:[%s2670 + $0xb0] sm:$0xff]
      %v2694 = vld [vmem:[%s2670 + $0xb8] sm:$0xff]
      %v2695 = vld [vmem:[%s2670 + $0xc0] sm:$0xff]
      %v2696 = vld [vmem:[%s2670 + $0xc8] sm:$0xff]
      %v2697 = vld [vmem:[%s2670 + $0xd0] sm:$0xff]
      %v2698 = vld [vmem:[%s2670 + $0xd8] sm:$0xff]
      %v2699 = vld [vmem:[%s2670 + $0xe0] sm:$0xff]
      %v2700 = vld [vmem:[%s2670 + $0xe8] sm:$0xff]
      %v2701 = vld [vmem:[%s2670 + $0xf0] sm:$0xff]
      %v2702 = vld [vmem:[%s2670 + $0xf8] sm:$0xff]
      %v2703 = vld [vmem:[%s2670 + $0x100] sm:$0xff]
      %v2704 = vld [vmem:[%s2670 + $0x108] sm:$0xff]
      %v2705 = vld [vmem:[%s2670 + $0x110] sm:$0xff]
      %v2706 = vld [vmem:[%s2670 + $0x118] sm:$0xff]
      %v2707 = vld [vmem:[%s2670 + $0x120] sm:$0xff]
      %v2708 = vld [vmem:[%s2670 + $0x128] sm:$0xff]
      %v2709 = vld [vmem:[%s2670 + $0x130] sm:$0xff]
      %v2710 = vld [vmem:[%s2670 + $0x138] sm:$0xff]
      %v2711 = vld [vmem:[%s2670 + $0x140] sm:$0xff]
      %v2712 = vld [vmem:[%s2670 + $0x148] sm:$0xff]
      %v2713 = vld [vmem:[%s2670 + $0x150] sm:$0xff]
      %v2714 = vld [vmem:[%s2670 + $0x158] sm:$0xff]
      %v2715 = vld [vmem:[%s2670 + $0x160] sm:$0xff]
      %v2716 = vld [vmem:[%s2670 + $0x168] sm:$0xff]
      %v2717 = vld [vmem:[%s2670 + $0x170] sm:$0xff]
      %v2718 = vld [vmem:[%s2670 + $0x178] sm:$0xff]
      %v2719 = vld [vmem:[%s2670 + $0x180] sm:$0xff]
      %v2720 = vld [vmem:[%s2670 + $0x188] sm:$0xff]
      %v2721 = vld [vmem:[%s2670 + $0x190] sm:$0xff]
      %v2722 = vld [vmem:[%s2670 + $0x198] sm:$0xff]
      %v2723 = vld [vmem:[%s2670 + $0x1a0] sm:$0xff]
      %v2724 = vld [vmem:[%s2670 + $0x1a8] sm:$0xff]
      %v2725 = vld [vmem:[%s2670 + $0x1b0] sm:$0xff]
      %v2726 = vld [vmem:[%s2670 + $0x1b8] sm:$0xff]
      %v2727 = vld [vmem:[%s2670 + $0x1c0] sm:$0xff]
      %v2728 = vld [vmem:[%s2670 + $0x1c8] sm:$0xff]
      %v2729 = vld [vmem:[%s2670 + $0x1d0] sm:$0xff]
      %v2730 = vld [vmem:[%s2670 + $0x1d8] sm:$0xff]
      %v2731 = vld [vmem:[%s2670 + $0x1e0] sm:$0xff]
      %v2732 = vld [vmem:[%s2670 + $0x1e8] sm:$0xff]
      %v2733 = vld [vmem:[%s2670 + $0x1f0] sm:$0xff]
      %v2734 = vld [vmem:[%s2670 + $0x1f8] sm:$0xff]
      %v2735 = vld [vmem:[%s2670 + $0x200] sm:$0xff]
      %v2736 = vld [vmem:[%s2670 + $0x208] sm:$0xff]
      %v2737 = vld [vmem:[%s2670 + $0x210] sm:$0xff]
      %v2738 = vld [vmem:[%s2670 + $0x218] sm:$0xff]
      %v2739 = vld [vmem:[%s2670 + $0x220] sm:$0xff]
      %v2740 = vld [vmem:[%s2670 + $0x228] sm:$0xff]
      %v2741 = vld [vmem:[%s2670 + $0x230] sm:$0xff]
      %v2742 = vld [vmem:[%s2670 + $0x238] sm:$0xff]
      %v2743 = vld [vmem:[%s2670 + $0x240] sm:$0xff]
      %v2744 = vld [vmem:[%s2670 + $0x248] sm:$0xff]
      %v2745 = vld [vmem:[%s2670 + $0x250] sm:$0xff]
      %v2746 = vld [vmem:[%s2670 + $0x258] sm:$0xff]
      %v2747 = vld [vmem:[%s2670 + $0x260] sm:$0xff]
      %v2748 = vld [vmem:[%s2670 + $0x268] sm:$0xff]
      %v2749 = vld [vmem:[%s2670 + $0x270] sm:$0xff]
      %v2750 = vld [vmem:[%s2670 + $0x278] sm:$0xff]
      %v2751 = vld [vmem:[%s2670 + $0x280] sm:$0xff]
      %v2752 = vld [vmem:[%s2670 + $0x288] sm:$0xff]
      %v2753 = vld [vmem:[%s2670 + $0x290] sm:$0xff]
      %v2754 = vld [vmem:[%s2670 + $0x298] sm:$0xff]
      %v2755 = vld [vmem:[%s2670 + $0x2a0] sm:$0xff]
      %v2756 = vld [vmem:[%s2670 + $0x2a8] sm:$0xff]
      %v2757 = vld [vmem:[%s2670 + $0x2b0] sm:$0xff]
      %v2758 = vld [vmem:[%s2670 + $0x2b8] sm:$0xff]
      %v2759 = vld [vmem:[%s2670 + $0x2c0] sm:$0xff]
      %v2760 = vld [vmem:[%s2670 + $0x2c8] sm:$0xff]
      %v2761 = vld [vmem:[%s2670 + $0x2d0] sm:$0xff]
      %v2762 = vld [vmem:[%s2670 + $0x2d8] sm:$0xff]
      %v2763 = vld [vmem:[%s2670 + $0x2e0] sm:$0xff]
      %v2764 = vld [vmem:[%s2670 + $0x2e8] sm:$0xff]
      %v2765 = vld [vmem:[%s2670 + $0x2f0] sm:$0xff]
      %v2766 = vld [vmem:[%s2670 + $0x2f8] sm:$0xff]
      %v2767 = vld [vmem:[%s2670 + $0x300] sm:$0xff]
      %v2768 = vld [vmem:[%s2670 + $0x308] sm:$0xff]
      %v2769 = vld [vmem:[%s2670 + $0x310] sm:$0xff]
      %v2770 = vld [vmem:[%s2670 + $0x318] sm:$0xff]
      %v2771 = vld [vmem:[%s2670 + $0x320] sm:$0xff]
      %v2772 = vld [vmem:[%s2670 + $0x328] sm:$0xff]
      %v2773 = vld [vmem:[%s2670 + $0x330] sm:$0xff]
      %v2774 = vld [vmem:[%s2670 + $0x338] sm:$0xff]
      %v2775 = vld [vmem:[%s2670 + $0x340] sm:$0xff]
      %v2776 = vld [vmem:[%s2670 + $0x348] sm:$0xff]
      %v2777 = vld [vmem:[%s2670 + $0x350] sm:$0xff]
      %v2778 = vld [vmem:[%s2670 + $0x358] sm:$0xff]
      %v2779 = vld [vmem:[%s2670 + $0x360] sm:$0xff]
      %v2780 = vld [vmem:[%s2670 + $0x368] sm:$0xff]
      %v2781 = vld [vmem:[%s2670 + $0x370] sm:$0xff]
      %v2782 = vld [vmem:[%s2670 + $0x378] sm:$0xff]
      %v2783 = vld [vmem:[%s2670 + $0x380] sm:$0xff]
      %v2784 = vld [vmem:[%s2670 + $0x388] sm:$0xff]
      %v2785 = vld [vmem:[%s2670 + $0x390] sm:$0xff]
      %v2786 = vld [vmem:[%s2670 + $0x398] sm:$0xff]
      %v2787 = vld [vmem:[%s2670 + $0x3a0] sm:$0xff]
      %v2788 = vld [vmem:[%s2670 + $0x3a8] sm:$0xff]
      %v2789 = vld [vmem:[%s2670 + $0x3b0] sm:$0xff]
      %v2790 = vld [vmem:[%s2670 + $0x3b8] sm:$0xff]
      %v2791 = vld [vmem:[%s2670 + $0x3c0] sm:$0xff]
      %v2792 = vld [vmem:[%s2670 + $0x3c8] sm:$0xff]
      %v2793 = vld [vmem:[%s2670 + $0x3d0] sm:$0xff]
      %v2794 = vld [vmem:[%s2670 + $0x3d8] sm:$0xff]
      %v2795 = vld [vmem:[%s2670 + $0x3e0] sm:$0xff]
      %v2796 = vld [vmem:[%s2670 + $0x3e8] sm:$0xff]
      %v2797 = vld [vmem:[%s2670 + $0x3f0] sm:$0xff]
      %v2798 = vld [vmem:[%s2670 + $0x3f8] sm:$0xff]
      %v2799 = vld [vmem:[%s2670 + $0x400] sm:$0xff]
      %v2800 = vld [vmem:[%s2670 + $0x408] sm:$0xff]
      %v2801 = vld [vmem:[%s2670 + $0x410] sm:$0xff]
      %v2802 = vld [vmem:[%s2670 + $0x418] sm:$0xff]
      %v2803 = vld [vmem:[%s2670 + $0x420] sm:$0xff]
      %v2804 = vld [vmem:[%s2670 + $0x428] sm:$0xff]
      %v2805 = vld [vmem:[%s2670 + $0x430] sm:$0xff]
      %v2806 = vld [vmem:[%s2670 + $0x438] sm:$0xff]
      %v2807 = vld [vmem:[%s2670 + $0x440] sm:$0xff]
      %v2808 = vld [vmem:[%s2670 + $0x448] sm:$0xff]
      %v2809 = vld [vmem:[%s2670 + $0x450] sm:$0xff]
      %v2810 = vld [vmem:[%s2670 + $0x458] sm:$0xff]
      %v2811 = vld [vmem:[%s2670 + $0x460] sm:$0xff]
      %v2812 = vld [vmem:[%s2670 + $0x468] sm:$0xff]
      %v2813 = vld [vmem:[%s2670 + $0x470] sm:$0xff]
      %v2814 = vld [vmem:[%s2670 + $0x478] sm:$0xff]
      %v2815 = vld [vmem:[%s2670 + $0x480] sm:$0xff]
      %v2816 = vld [vmem:[%s2670 + $0x488] sm:$0xff]
      %v2817 = vld [vmem:[%s2670 + $0x490] sm:$0xff]
      %v2818 = vld [vmem:[%s2670 + $0x498] sm:$0xff]
      %v2819 = vld [vmem:[%s2670 + $0x4a0] sm:$0xff]
      %v2820 = vld [vmem:[%s2670 + $0x4a8] sm:$0xff]
      %v2821 = vld [vmem:[%s2670 + $0x4b0] sm:$0xff]
      %v2822 = vld [vmem:[%s2670 + $0x4b8] sm:$0xff]
      %v2823 = vld [vmem:[%s2670 + $0x4c0] sm:$0xff]
      %v2824 = vld [vmem:[%s2670 + $0x4c8] sm:$0xff]
      %v2825 = vld [vmem:[%s2670 + $0x4d0] sm:$0xff]
      %v2826 = vld [vmem:[%s2670 + $0x4d8] sm:$0xff]
      %v2827 = vld [vmem:[%s2670 + $0x4e0] sm:$0xff]
      %v2828 = vld [vmem:[%s2670 + $0x4e8] sm:$0xff]
      %v2829 = vld [vmem:[%s2670 + $0x4f0] sm:$0xff]
      %v2830 = vld [vmem:[%s2670 + $0x4f8] sm:$0xff]
      %v2831 = vld [vmem:[%s2670 + $0x500] sm:$0xff]
      %v2832 = vld [vmem:[%s2670 + $0x508] sm:$0xff]
      %v2833 = vld [vmem:[%s2670 + $0x510] sm:$0xff]
      %v2834 = vld [vmem:[%s2670 + $0x518] sm:$0xff]
      %v2835 = vld [vmem:[%s2670 + $0x520] sm:$0xff]
      %v2836 = vld [vmem:[%s2670 + $0x528] sm:$0xff]
      %v2837 = vld [vmem:[%s2670 + $0x530] sm:$0xff]
      %v2838 = vld [vmem:[%s2670 + $0x538] sm:$0xff]
      %2839 = vmatpush.msra.mxu0 %v2701
      %2840 = vmatpush.msra.mxu0 %v2699
      %2841 = vmatpush.msra.mxu0 %v2697
      %2842 = vmatpush.msra.mxu0 %v2695
      %2843 = vmatpush.msra.mxu0 %v2693
      %2844 = vmatpush.msra.mxu0 %v2691
      %2845 = vmatpush.msra.mxu0 %v2689
      %2846 = vmatpush.msra.mxu0 %v2687
      %2847 = vmatpush.msra.mxu0 %v2685
      %2848 = vmatpush.msra.mxu0 %v2683
      %2849 = vmatpush.msra.mxu0 %v2681
      %2850 = vmatpush.msra.mxu0 %v2679
      %2851 = vmatpush.msra.mxu0 %v2677
      %2852 = vmatpush.msra.mxu0 %v2675
      %2853 = vmatpush.msra.mxu0 %v2673
      %2854 = vmatpush.msra.mxu0 %v2671
      %2855 = vmatmul.f32.gmra.mxu0 %v1430
      %v2856 = vpop.f32.mrf.mxu0
      %v2857 = vadd.f32 0.0, %v2856
      %2858 = vdwg.mxu0
      %2859 = vmatpush.msra.mxu0 %v2733
      %2860 = vmatpush.msra.mxu0 %v2731
      %2861 = vmatpush.msra.mxu0 %v2729
      %2862 = vmatpush.msra.mxu0 %v2727
      %2863 = vmatpush.msra.mxu0 %v2725
      %2864 = vmatpush.msra.mxu0 %v2723
      %2865 = vmatpush.msra.mxu0 %v2721
      %2866 = vmatpush.msra.mxu0 %v2719
      %2867 = vmatpush.msra.mxu0 %v2717
      %2868 = vmatpush.msra.mxu0 %v2715
      %2869 = vmatpush.msra.mxu0 %v2713
      %2870 = vmatpush.msra.mxu0 %v2711
      %2871 = vmatpush.msra.mxu0 %v2709
      %2872 = vmatpush.msra.mxu0 %v2707
      %2873 = vmatpush.msra.mxu0 %v2705
      %2874 = vmatpush.msra.mxu0 %v2703
      %2875 = vmatmul.f32.gmra.mxu0 %v1431
      %v2876 = vpop.f32.mrf.mxu0
      %v2877 = vadd.f32 %v2857, %v2876
      %2878 = vdwg.mxu0
      %2879 = vmatpush.msra.mxu0 %v2765
      %2880 = vmatpush.msra.mxu0 %v2763
      %2881 = vmatpush.msra.mxu0 %v2761
      %2882 = vmatpush.msra.mxu0 %v2759
      %2883 = vmatpush.msra.mxu0 %v2757
      %2884 = vmatpush.msra.mxu0 %v2755
      %2885 = vmatpush.msra.mxu0 %v2753
      %2886 = vmatpush.msra.mxu0 %v2751
      %2887 = vmatpush.msra.mxu0 %v2749
      %2888 = vmatpush.msra.mxu0 %v2747
      %2889 = vmatpush.msra.mxu0 %v2745
      %2890 = vmatpush.msra.mxu0 %v2743
      %2891 = vmatpush.msra.mxu0 %v2741
      %2892 = vmatpush.msra.mxu0 %v2739
      %2893 = vmatpush.msra.mxu0 %v2737
      %2894 = vmatpush.msra.mxu0 %v2735
      %2895 = vmatmul.f32.gmra.mxu0 %v1432
      %v2896 = vpop.f32.mrf.mxu0
      %v2897 = vadd.f32 %v2877, %v2896
      %2898 = vdwg.mxu0
      %2899 = vmatpush.msra.mxu0 %v2797
      %2900 = vmatpush.msra.mxu0 %v2795
      %2901 = vmatpush.msra.mxu0 %v2793
      %2902 = vmatpush.msra.mxu0 %v2791
      %2903 = vmatpush.msra.mxu0 %v2789
      %2904 = vmatpush.msra.mxu0 %v2787
      %2905 = vmatpush.msra.mxu0 %v2785
      %2906 = vmatpush.msra.mxu0 %v2783
      %2907 = vmatpush.msra.mxu0 %v2781
      %2908 = vmatpush.msra.mxu0 %v2779
      %2909 = vmatpush.msra.mxu0 %v2777
      %2910 = vmatpush.msra.mxu0 %v2775
      %2911 = vmatpush.msra.mxu0 %v2773
      %2912 = vmatpush.msra.mxu0 %v2771
      %2913 = vmatpush.msra.mxu0 %v2769
      %2914 = vmatpush.msra.mxu0 %v2767
      %2915 = vmatmul.f32.gmra.mxu0 %v1433
      %v2916 = vpop.f32.mrf.mxu0
      %v2917 = vadd.f32 %v2897, %v2916
      %2918 = vdwg.mxu0
      %2919 = vmatpush.msra.mxu0 %v2829
      %2920 = vmatpush.msra.mxu0 %v2827
      %2921 = vmatpush.msra.mxu0 %v2825
      %2922 = vmatpush.msra.mxu0 %v2823
      %2923 = vmatpush.msra.mxu0 %v2821
      %2924 = vmatpush.msra.mxu0 %v2819
      %2925 = vmatpush.msra.mxu0 %v2817
      %2926 = vmatpush.msra.mxu0 %v2815
      %2927 = vmatpush.msra.mxu0 %v2813
      %2928 = vmatpush.msra.mxu0 %v2811
      %2929 = vmatpush.msra.mxu0 %v2809
      %2930 = vmatpush.msra.mxu0 %v2807
      %2931 = vmatpush.msra.mxu0 %v2805
      %2932 = vmatpush.msra.mxu0 %v2803
      %2933 = vmatpush.msra.mxu0 %v2801
      %2934 = vmatpush.msra.mxu0 %v2799
      %2935 = vmatmul.f32.gmra.mxu0 %v1434
      %v2936 = vpop.f32.mrf.mxu0
      %v2937 = vadd.f32 %v2917, %v2936
      %2938 = vdwg.mxu0
      %2939 = vmatpush.msra.mxu0 0.0
      %2940 = vmatpush.msra.mxu0 0.0
      %2941 = vmatpush.msra.mxu0 0.0
      %2942 = vmatpush.msra.mxu0 0.0
      %2943 = vmatpush.msra.mxu0 0.0
      %2944 = vmatpush.msra.mxu0 0.0
      %2945 = vmatpush.msra.mxu0 0.0
      %2946 = vmatpush.msra.mxu0 0.0
      %2947 = vmatpush.msra.mxu0 0.0
      %2948 = vmatpush.msra.mxu0 0.0
      %2949 = vmatpush.msra.mxu0 0.0
      %2950 = vmatpush.msra.mxu0 0.0
      %2951 = vmatpush.msra.mxu0 %v2837
      %2952 = vmatpush.msra.mxu0 %v2835
      %2953 = vmatpush.msra.mxu0 %v2833
      %2954 = vmatpush.msra.mxu0 %v2831
      %2955 = vmatmul.f32.gmra.mxu0 %v1606
      %v2956 = vpop.f32.mrf.mxu0
      %v2957 = vadd.f32 %v2937, %v2956
      %2958 = vdwg.mxu0
      %2959 = vmatpush.msra.mxu0 %v2702
      %2960 = vmatpush.msra.mxu0 %v2700
      %2961 = vmatpush.msra.mxu0 %v2698
      %2962 = vmatpush.msra.mxu0 %v2696
      %2963 = vmatpush.msra.mxu0 %v2694
      %2964 = vmatpush.msra.mxu0 %v2692
      %2965 = vmatpush.msra.mxu0 %v2690
      %2966 = vmatpush.msra.mxu0 %v2688
      %2967 = vmatpush.msra.mxu0 %v2686
      %2968 = vmatpush.msra.mxu0 %v2684
      %2969 = vmatpush.msra.mxu0 %v2682
      %2970 = vmatpush.msra.mxu0 %v2680
      %2971 = vmatpush.msra.mxu0 %v2678
      %2972 = vmatpush.msra.mxu0 %v2676
      %2973 = vmatpush.msra.mxu0 %v2674
      %2974 = vmatpush.msra.mxu0 %v2672
      %2975 = vmatmul.f32.gmra.mxu0 %v1430
      %v2976 = vpop.f32.mrf.mxu0
      %v2977 = vadd.f32 0.0, %v2976
      %2978 = vdwg.mxu0
      %2979 = vmatpush.msra.mxu0 %v2734
      %2980 = vmatpush.msra.mxu0 %v2732
      %2981 = vmatpush.msra.mxu0 %v2730
      %2982 = vmatpush.msra.mxu0 %v2728
      %2983 = vmatpush.msra.mxu0 %v2726
      %2984 = vmatpush.msra.mxu0 %v2724
      %2985 = vmatpush.msra.mxu0 %v2722
      %2986 = vmatpush.msra.mxu0 %v2720
      %2987 = vmatpush.msra.mxu0 %v2718
      %2988 = vmatpush.msra.mxu0 %v2716
      %2989 = vmatpush.msra.mxu0 %v2714
      %2990 = vmatpush.msra.mxu0 %v2712
      %2991 = vmatpush.msra.mxu0 %v2710
      %2992 = vmatpush.msra.mxu0 %v2708
      %2993 = vmatpush.msra.mxu0 %v2706
      %2994 = vmatpush.msra.mxu0 %v2704
      %2995 = vmatmul.f32.gmra.mxu0 %v1431
      %v2996 = vpop.f32.mrf.mxu0
      %v2997 = vadd.f32 %v2977, %v2996
      %2998 = vdwg.mxu0
      %2999 = vmatpush.msra.mxu0 %v2766
      %3000 = vmatpush.msra.mxu0 %v2764
      %3001 = vmatpush.msra.mxu0 %v2762
      %3002 = vmatpush.msra.mxu0 %v2760
      %3003 = vmatpush.msra.mxu0 %v2758
      %3004 = vmatpush.msra.mxu0 %v2756
      %3005 = vmatpush.msra.mxu0 %v2754
      %3006 = vmatpush.msra.mxu0 %v2752
      %3007 = vmatpush.msra.mxu0 %v2750
      %3008 = vmatpush.msra.mxu0 %v2748
      %3009 = vmatpush.msra.mxu0 %v2746
      %3010 = vmatpush.msra.mxu0 %v2744
      %3011 = vmatpush.msra.mxu0 %v2742
      %3012 = vmatpush.msra.mxu0 %v2740
      %3013 = vmatpush.msra.mxu0 %v2738
      %3014 = vmatpush.msra.mxu0 %v2736
      %3015 = vmatmul.f32.gmra.mxu0 %v1432
      %v3016 = vpop.f32.mrf.mxu0
      %v3017 = vadd.f32 %v2997, %v3016
      %3018 = vdwg.mxu0
      %3019 = vmatpush.msra.mxu0 %v2798
      %3020 = vmatpush.msra.mxu0 %v2796
      %3021 = vmatpush.msra.mxu0 %v2794
      %3022 = vmatpush.msra.mxu0 %v2792
      %3023 = vmatpush.msra.mxu0 %v2790
      %3024 = vmatpush.msra.mxu0 %v2788
      %3025 = vmatpush.msra.mxu0 %v2786
      %3026 = vmatpush.msra.mxu0 %v2784
      %3027 = vmatpush.msra.mxu0 %v2782
      %3028 = vmatpush.msra.mxu0 %v2780
      %3029 = vmatpush.msra.mxu0 %v2778
      %3030 = vmatpush.msra.mxu0 %v2776
      %3031 = vmatpush.msra.mxu0 %v2774
      %3032 = vmatpush.msra.mxu0 %v2772
      %3033 = vmatpush.msra.mxu0 %v2770
      %3034 = vmatpush.msra.mxu0 %v2768
      %3035 = vmatmul.f32.gmra.mxu0 %v1433
      %v3036 = vpop.f32.mrf.mxu0
      %v3037 = vadd.f32 %v3017, %v3036
      %3038 = vdwg.mxu0
      %3039 = vmatpush.msra.mxu0 %v2830
      %3040 = vmatpush.msra.mxu0 %v2828
      %3041 = vmatpush.msra.mxu0 %v2826
      %3042 = vmatpush.msra.mxu0 %v2824
      %3043 = vmatpush.msra.mxu0 %v2822
      %3044 = vmatpush.msra.mxu0 %v2820
      %3045 = vmatpush.msra.mxu0 %v2818
      %3046 = vmatpush.msra.mxu0 %v2816
      %3047 = vmatpush.msra.mxu0 %v2814
      %3048 = vmatpush.msra.mxu0 %v2812
      %3049 = vmatpush.msra.mxu0 %v2810
      %3050 = vmatpush.msra.mxu0 %v2808
      %3051 = vmatpush.msra.mxu0 %v2806
      %3052 = vmatpush.msra.mxu0 %v2804
      %3053 = vmatpush.msra.mxu0 %v2802
      %3054 = vmatpush.msra.mxu0 %v2800
      %3055 = vmatmul.f32.gmra.mxu0 %v1434
      %v3056 = vpop.f32.mrf.mxu0
      %v3057 = vadd.f32 %v3037, %v3056
      %3058 = vdwg.mxu0
      %3059 = vmatpush.msra.mxu0 0.0
      %3060 = vmatpush.msra.mxu0 0.0
      %3061 = vmatpush.msra.mxu0 0.0
      %3062 = vmatpush.msra.mxu0 0.0
      %3063 = vmatpush.msra.mxu0 0.0
      %3064 = vmatpush.msra.mxu0 0.0
      %3065 = vmatpush.msra.mxu0 0.0
      %3066 = vmatpush.msra.mxu0 0.0
      %3067 = vmatpush.msra.mxu0 0.0
      %3068 = vmatpush.msra.mxu0 0.0
      %3069 = vmatpush.msra.mxu0 0.0
      %3070 = vmatpush.msra.mxu0 0.0
      %3071 = vmatpush.msra.mxu0 %v2838
      %3072 = vmatpush.msra.mxu0 %v2836
      %3073 = vmatpush.msra.mxu0 %v2834
      %3074 = vmatpush.msra.mxu0 %v2832
      %3075 = vmatmul.f32.gmra.mxu0 %v1606
      %v3076 = vpop.f32.mrf.mxu0
      %v3077 = vadd.f32 %v3057, %v3076
      %3078 = vdwg.mxu0
      %v3079 = vmax.f32 %v2668, %v2957
      %v3080 = vmax.f32 %v2669, %v3077
      %v3081 = vmax.f32 %v3079, 0.0
      %v3082 = vmax.f32 %v3080, 0.0
      %3083 = vst [vmem:[%s194] sm:$0x3f] %v3081
      %vm3084 = vcmask 160768
      %3085 = vst.msk [vmem:[%s194 + $0x8] sm:$0x3f] %vm3084, %v3082
      %p3086 = scmp.lt.s32.totalorder %s15, 1
      %s3087 = scalar_select %p3086, %s15, 1
      %s3088 = smul.addr %s3087, 2
      %s3089 = smul.addr %s3088, 8
      %s3090 = scalar_lea.vmem %s4, %s3089
      // Predicated region
      $region37: #{forward.3} parent=35 // pred_check
        %p3091 = pneg %p122
      $region38: #{forward.3} parent=35 // pred_check_branch
        %3093 = sbr.rel (%p3091) target = $region40
      $region39: #{forward.3} parent=35 // pred_region
        _
      $region40: #{forward.3} parent=35 // pred_fallthru
        _
    $region36: #{forward.3} parent=5 // pred_fallthru
      _
    %p3094 = scmp.le.s32.totalorder 2, %s10
    // Predicated region
    $region41: #{forward.3} parent=5 // pred_check
      %p3095 = pneg %p3094
    $region42: #{forward.3} parent=5 // pred_check_branch
      %3097 = sbr.rel (%p3095) target = $region44
    $region43: #{forward.3} parent=5 // pred_region
      %s3098 = ssub.s32 %s10, 2
      // Predicated region
      $region45: #{forward.3} parent=43 // pred_check
        %p3099 = pneg %p128
      $region46: #{forward.3} parent=43 // pred_check_branch
        %3101 = sbr.rel (%p3099) target = $region48
      $region47: #{forward.3} parent=43 // pred_region
        %p3102 = scmp.lt.s32.totalorder %s16, 1
        %s3103 = scalar_select %p3102, %s16, 1
        %s3104 = smul.addr %s3103, 2
        %s3105 = smul.addr %s3104, 8
        %s3106 = scalar_lea.vmem %s4, %s3105
      $region48: #{forward.3} parent=43 // pred_fallthru
        _
    $region44: #{forward.3} parent=5 // pred_fallthru
      _
  $region6: #{forward.3} parent=0 // loop_footer
    %s14 = sadd.s32 1, %s10
  $region7: #{forward.3} parent=0 // loop_footer_branch
    %9 = sbr.rel target = $region3
  $region8: #{forward.3} parent=0 // loop_exit
    _

</llo_original>
